<compile_context>
chip_gen: v6e
topology: v6e:2x2x1
jax: 0.10.0
libtpu: 0.0.40
codegen_flags: <defaults>
</compile_context>

<pallas_src>
import math
import functools

import jax
import jax.numpy as jnp
from jax.experimental import pallas as pl
from jax.experimental.pallas import tpu as pltpu

BATCH_NORM_EPSILON = 1e-05
_LANE = 128                      # pad Cout to multiples of this (lane-dense matmul N)
# Scoped-VMEM budget: well under v7x's 64 MiB physical per-TC, generous on
# v5e/v6e (128 MiB physical).  Per-step working set here is far below it.
_VMEM_LIMIT = 48 * 1024 * 1024


def _round_up(x, m):
    return (x + m - 1) // m * m


# ----------------------------- implicit-GEMM conv ------------------------------
def _implicit_gemm_conv(x_ref, w_ref, *, k, stride, dilation, ho, wo):
    """Conv for one image via K*K shifted matmuls.  Returns (Ho*Wo, C_pad) f32.

    x_ref: (1, Hp, Wp, Cin)   bf16 spatially pre-padded NHWC image block
    w_ref: (K*K, Cin, C_pad)  bf16 tap-major weight (tap t = kh*K + kw)
    """
    cin = x_ref.shape[-1]
    c_pad = w_ref.shape[-1]
    m_img = ho * wo

    img = x_ref[0]                                   # (Hp, Wp, Cin) bf16
    acc = jnp.zeros((m_img, c_pad), jnp.float32)
    # TODO(synk): for stride==1 the (kw, Cin) taps could be folded into the MXU
    # contraction dim (one (M, K*Cin) matmul per kh) for better MXU occupancy
    # when Cin is tiny; kept as K*K skinny matmuls for full generality.
    for kh in range(k):
        for kw in range(k):
            r0 = kh * dilation
            c0 = kw * dilation
            xt = img[r0:r0 + (ho - 1) * stride + 1:stride,
                     c0:c0 + (wo - 1) * stride + 1:stride, :]   # (Ho, Wo, Cin)
            xt = xt.reshape(m_img, cin)
            acc = acc + jnp.dot(xt, w_ref[kh * k + kw],
                                preferred_element_type=jnp.float32)
    return acc


# ---------------------- pass 1: per-channel BN statistics ----------------------
def _conv_stats_kernel(x_ref, w_ref, sum_ref, sq_ref, *, k, stride, dilation, ho, wo):
    """Stats-only pass: accumulate per-channel sum / sum(x^2) of the conv output.

    sum_ref / sq_ref: (1, 8, C_pad) f32 partial-stat blocks, one per outer
    ("parallel") chunk.  All 8 sublane rows hold the same totals -- the 8-row
    shape keeps the output BlockSpec (8, 128)-aligned with unmasked stores.
    """
    i = pl.program_id(1)            # image index inside this chunk ("arbitrary")

    conv = _implicit_gemm_conv(x_ref, w_ref, k=k, stride=stride,
                               dilation=dilation, ho=ho, wo=wo)
    s = jnp.sum(conv, axis=0, keepdims=True)                 # (1, C_pad)
    ss = jnp.sum(conv * conv, axis=0, keepdims=True)         # (1, C_pad)
    # TODO(synk): E[x^2]-mean^2 in f32 can cancel badly for huge N*Ho*Wo; switch
    # to a pivoted/centered accumulation if strict parity is ever required.

    @pl.when(i == 0)
    def _():
        sum_ref[...] = jnp.zeros_like(sum_ref)
        sq_ref[...] = jnp.zeros_like(sq_ref)

    sum_ref[...] = sum_ref[...] + jnp.broadcast_to(s[None], sum_ref.shape)
    sq_ref[...] = sq_ref[...] + jnp.broadcast_to(ss[None], sq_ref.shape)


# ------------------- pass 2: conv recompute + fused scale/shift ----------------
def _conv_bn_apply_kernel(x_ref, w_ref, scale_ref, shift_ref, o_ref, *,
                          k, stride, dilation, ho, wo, cout):
    """Recompute the conv for one image, apply y = conv*scale + shift, and write
    the result channel-major: o_ref is (1, Cout, Ho*Wo) so the lane axis is the
    (dense) flattened spatial dim and no external transpose is needed."""
    m_img = ho * wo
    conv = _implicit_gemm_conv(x_ref, w_ref, k=k, stride=stride,
                               dilation=dilation, ho=ho, wo=wo)
    y = conv * scale_ref[...] + shift_ref[...]               # (Ho*Wo, C_pad) f32
    # Null activation (identity).
    # TODO(synk): fuse a non-null activation_fn here if the module configures one.
    yt = y.T                                                 # (C_pad, Ho*Wo), XLU
    o_ref[...] = yt[:cout, :].reshape(1, cout, m_img).astype(o_ref.dtype)


# ------------------------------- wrapper / glue --------------------------------
@functools.partial(
    jax.jit,
    static_argnames=("kernel_size", "stride", "padding", "dilation"))
def conv_batch_norm_block(x, weight, bias, gamma, beta, *,
                          kernel_size, stride, padding, dilation):
    """x: (N, Cin, H, W) NCHW. Returns (N, Cout, Ho, Wo) NCHW (training-mode BN)."""
    # Under training-mode BatchNorm the conv bias cancels exactly (the mean
    # removes any per-channel constant), so its add and DMA are skipped.
    # TODO(synk): add the bias back if eval-mode (running-stats) BN is needed.
    del bias

    n, cin, h, w = x.shape
    cout = weight.shape[0]
    k = kernel_size
    ho = (h + 2 * padding - dilation * (k - 1) - 1) // stride + 1
    wo = (w + 2 * padding - dilation * (k - 1) - 1) // stride + 1
    hp, wp = h + 2 * padding, w + 2 * padding
    m_img = ho * wo
    m_total = n * m_img
    c_pad = _round_up(cout, _LANE)

    # NCHW -> NHWC once at the PyTorch-interface boundary; spatial zero-pad is
    # the conv's own padding; bf16 matmul inputs (f32 accumulation in-kernel).
    # TODO(synk): if the producer already supplies NHWC, drop this transpose.
    x_nhwc = jnp.transpose(x, (0, 2, 3, 1))
    x_pad = jnp.pad(
        x_nhwc, ((0, 0), (padding, padding), (padding, padding), (0, 0))
    ).astype(jnp.bfloat16)

    # Tap-major weight: w_taps[kh*K+kw, cin, cout] = weight[cout, cin, kh, kw].
    w_taps = jnp.transpose(weight, (2, 3, 1, 0)).reshape(k * k, cin, cout)
    w_taps = jnp.pad(w_taps, ((0, 0), (0, 0), (0, c_pad - cout))).astype(jnp.bfloat16)

    # Outer "parallel" chunk axis so both v7x TensorCores contribute to pass-1
    # stats (no-op on single-TC v5e/v6e); inner "arbitrary" axis accumulates.
    n_chunks = 2 if (n % 2 == 0 and n >= 2) else 1
    n_per_chunk = n // n_chunks

    # ---- pass 1: per-channel sum / sumsq partials (no conv intermediate) ------
    stats_kernel = functools.partial(
        _conv_stats_kernel, k=k, stride=stride, dilation=dilation, ho=ho, wo=wo)
    sums, sqs = pl.pallas_call(
        stats_kernel,
        out_shape=(jax.ShapeDtypeStruct((n_chunks, 8, c_pad), jnp.float32),
                   jax.ShapeDtypeStruct((n_chunks, 8, c_pad), jnp.float32)),
        grid_spec=pltpu.PrefetchScalarGridSpec(
            num_scalar_prefetch=0,
            grid=(n_chunks, n_per_chunk),
            in_specs=[
                pl.BlockSpec((1, hp, wp, cin),
                             lambda c, i: (c * n_per_chunk + i, 0, 0, 0)),
                pl.BlockSpec((k * k, cin, c_pad), lambda c, i: (0, 0, 0)),
            ],
            out_specs=[
                pl.BlockSpec((1, 8, c_pad), lambda c, i: (c, 0, 0)),
                pl.BlockSpec((1, 8, c_pad), lambda c, i: (c, 0, 0)),
            ],
        ),
        compiler_params=pltpu.CompilerParams(
            dimension_semantics=("parallel", "arbitrary"),
            vmem_limit_bytes=_VMEM_LIMIT),
    )(x_pad, w_taps)

    # ---- reduce partials + fold BN into one scale/shift (tiny, plain JAX) -----
    ch_sum = jnp.sum(sums[:, 0, :], axis=0)      # rows 0..7 are identical
    ch_sq = jnp.sum(sqs[:, 0, :], axis=0)
    inv_m = 1.0 / float(m_total)
    mean = ch_sum * inv_m
    var = jnp.maximum(ch_sq * inv_m - mean * mean, 0.0)      # biased variance
    inv_std = jax.lax.rsqrt(var + BATCH_NORM_EPSILON)
    g_pad = jnp.pad(gamma.astype(jnp.float32), (0, c_pad - cout))
    b_pad = jnp.pad(beta.astype(jnp.float32), (0, c_pad - cout))
    scale = (g_pad * inv_std).reshape(1, c_pad)
    shift = (b_pad - mean * g_pad * inv_std).reshape(1, c_pad)

    # ---- pass 2: recompute conv + fused scale/shift, channel-major output -----
    apply_kernel = functools.partial(
        _conv_bn_apply_kernel, k=k, stride=stride, dilation=dilation,
        ho=ho, wo=wo, cout=cout)
    out_flat = pl.pallas_call(
        apply_kernel,
        out_shape=jax.ShapeDtypeStruct((n, cout, m_img), jnp.float32),
        grid_spec=pltpu.PrefetchScalarGridSpec(
            num_scalar_prefetch=0,
            grid=(n,),
            in_specs=[
                pl.BlockSpec((1, hp, wp, cin), lambda b: (b, 0, 0, 0)),
                pl.BlockSpec((k * k, cin, c_pad), lambda b: (0, 0, 0)),
                pl.BlockSpec((1, c_pad), lambda b: (0, 0)),
                pl.BlockSpec((1, c_pad), lambda b: (0, 0)),
            ],
            out_specs=pl.BlockSpec((1, cout, m_img), lambda b: (b, 0, 0)),
        ),
        compiler_params=pltpu.CompilerParams(
            dimension_semantics=("parallel",),
            vmem_limit_bytes=_VMEM_LIMIT),
    )(x_pad, w_taps, scale, shift)

    # Free trailing-dim split: (N, Cout, Ho*Wo) -> (N, Cout, Ho, Wo).  No
    # transpose and no padded-channel slice needed.
    return out_flat.reshape(n, cout, ho, wo)


# ------------------------------ reference / init --------------------------------
def _reference(x, weight, bias, gamma, beta, stride, padding, dilation):
    """Pure-JAX f32 reference: Conv2d(+bias) -> training-mode BatchNorm2d -> id."""
    conv = jax.lax.conv_general_dilated(
        x, weight,
        window_strides=(stride, stride),
        padding=[(padding, padding), (padding, padding)],
        rhs_dilation=(dilation, dilation),
        dimension_numbers=("NCHW", "OIHW", "NCHW"),
        precision=jax.lax.Precision.HIGHEST)
    conv = conv + bias.reshape(1, -1, 1, 1)
    mean = conv.mean(axis=(0, 2, 3), keepdims=True)
    var = ((conv - mean) ** 2).mean(axis=(0, 2, 3), keepdims=True)
    normed = (conv - mean) * jax.lax.rsqrt(var + BATCH_NORM_EPSILON)
    return gamma.reshape(1, -1, 1, 1) * normed + beta.reshape(1, -1, 1, 1)


def _xavier_uniform(key, shape):
    """torch.nn.init.xavier_uniform_ for conv weight (Cout, Cin, K, K)."""
    cout, cin, kh, kw = shape
    fan_in = cin * kh * kw
    fan_out = cout * kh * kw
    bound = math.sqrt(6.0 / (fan_in + fan_out))
    return jax.random.uniform(key, shape, jnp.float32, -bound, bound)


if __name__ == "__main__":
    # Small shapes consistent with the module.
    N, Cin, H, W = 2, 4, 16, 16
    Cout, K, stride, padding, dilation = 8, 3, 1, 1, 1

    key = jax.random.PRNGKey(0)
    kx, kw, kb = jax.random.split(key, 3)

    x = jax.random.normal(kx, (N, Cin, H, W), jnp.float32)

    # Conv parameters (xavier-uniform weight, PyTorch-default uniform bias).
    weight = _xavier_uniform(kw, (Cout, Cin, K, K))
    b_bound = 1.0 / math.sqrt(Cin * K * K)
    bias = jax.random.uniform(kb, (Cout,), jnp.float32, -b_bound, b_bound)

    # BatchNorm affine parameters (PyTorch defaults: gamma=1, beta=0).
    gamma = jnp.ones((Cout,), jnp.float32)
    beta = jnp.zeros((Cout,), jnp.float32)

    out = conv_batch_norm_block(
        x, weight, bias, gamma, beta,
        kernel_size=K, stride=stride, padding=padding, dilation=dilation)
    jax.block_until_ready(out)

    assert out.shape == (N, Cout, H, W), out.shape

    # Correctness check against a pure-JAX f32 reference (bf16 matmul inside the
    # kernel -> loose tolerance).
    ref = _reference(x, weight, bias, gamma, beta, stride, padding, dilation)
    max_err = float(jnp.max(jnp.abs(out - ref)))
    assert max_err < 5e-2, f"max abs err {max_err}"

    print("KERNEL_OK")
</pallas_src>

<mosaic_0001>
module attributes {stable_mosaic.version = 11 : i64} {
  func.func @_conv_stats_kernel(%arg0: i32, %arg1: i32, %arg2: memref<1x18x18x4xbf16, #tpu.memory_space<vmem>>, %arg3: memref<9x4x128xbf16, #tpu.memory_space<vmem>>, %arg4: memref<1x8x128xf32, #tpu.memory_space<vmem>>, %arg5: memref<1x8x128xf32, #tpu.memory_space<vmem>>) attributes {dimension_semantics = [#tpu.dimension_semantics<parallel>, #tpu.dimension_semantics<arbitrary>], iteration_bounds = array<i64: 2, 1>, scalar_prefetch = 0 : i64, scratch_operands = 0 : i64, tpu.core_type = #tpu.core_type<tc>, window_params = [{transform_indices = @transform_0, window_bounds = array<i64: 1, 18, 18, 4>}, {pipeline_mode = #tpu.pipeline_mode<synchronous>, transform_indices = @transform_1, window_bounds = array<i64: 9, 4, 128>}, {transform_indices = @transform_2, window_bounds = array<i64: 1, 8, 128>}, {transform_indices = @transform_3, window_bounds = array<i64: 1, 8, 128>}]} {
    %c0 = arith.constant 0 : index
    %c0_0 = arith.constant 0 : index
    %c0_1 = arith.constant 0 : index
    %c0_2 = arith.constant 0 : index
    %0 = vector.load %arg2[%c0, %c0_0, %c0_1, %c0_2] : memref<1x18x18x4xbf16, #tpu.memory_space<vmem>>, vector<1x18x18x4xbf16>
    %1 = vector.shape_cast %0 : vector<1x18x18x4xbf16> to vector<18x18x4xbf16>
    %cst = arith.constant 0.000000e+00 : f32
    %2 = vector.broadcast %cst : f32 to vector<256x128xf32>
    %3 = vector.extract_strided_slice %1 {offsets = [0, 0, 0], sizes = [16, 16, 4], strides = [1, 1, 1]} : vector<18x18x4xbf16> to vector<16x16x4xbf16>
    %4 = vector.shape_cast %3 : vector<16x16x4xbf16> to vector<256x4xbf16>
    %c0_3 = arith.constant 0 : index
    %c0_4 = arith.constant 0 : index
    %c0_5 = arith.constant 0 : index
    %5 = vector.load %arg3[%c0_3, %c0_4, %c0_5] : memref<9x4x128xbf16, #tpu.memory_space<vmem>>, vector<1x4x128xbf16>
    %6 = vector.shape_cast %5 : vector<1x4x128xbf16> to vector<4x128xbf16>
    %cst_6 = arith.constant dense<0.000000e+00> : vector<256x128xf32>
    %7 = tpu.matmul %4, %6, %cst_6 {dimension_numbers = #tpu.dot_dimension_numbers<[1], [0], [0], [1], [0, 0, 1, 1], [], []>} : vector<256x4xbf16>, vector<4x128xbf16>, vector<256x128xf32> -> vector<256x128xf32>
    %8 = arith.addf %2, %7 : vector<256x128xf32>
    %9 = vector.extract_strided_slice %1 {offsets = [0, 1, 0], sizes = [16, 16, 4], strides = [1, 1, 1]} : vector<18x18x4xbf16> to vector<16x16x4xbf16>
    %10 = vector.shape_cast %9 : vector<16x16x4xbf16> to vector<256x4xbf16>
    %c1 = arith.constant 1 : index
    %c0_7 = arith.constant 0 : index
    %c0_8 = arith.constant 0 : index
    %11 = vector.load %arg3[%c1, %c0_7, %c0_8] : memref<9x4x128xbf16, #tpu.memory_space<vmem>>, vector<1x4x128xbf16>
    %12 = vector.shape_cast %11 : vector<1x4x128xbf16> to vector<4x128xbf16>
    %cst_9 = arith.constant dense<0.000000e+00> : vector<256x128xf32>
    %13 = tpu.matmul %10, %12, %cst_9 {dimension_numbers = #tpu.dot_dimension_numbers<[1], [0], [0], [1], [0, 0, 1, 1], [], []>} : vector<256x4xbf16>, vector<4x128xbf16>, vector<256x128xf32> -> vector<256x128xf32>
    %14 = arith.addf %8, %13 : vector<256x128xf32>
    %15 = vector.extract_strided_slice %1 {offsets = [0, 2, 0], sizes = [16, 16, 4], strides = [1, 1, 1]} : vector<18x18x4xbf16> to vector<16x16x4xbf16>
    %16 = vector.shape_cast %15 : vector<16x16x4xbf16> to vector<256x4xbf16>
    %c2 = arith.constant 2 : index
    %c0_10 = arith.constant 0 : index
    %c0_11 = arith.constant 0 : index
    %17 = vector.load %arg3[%c2, %c0_10, %c0_11] : memref<9x4x128xbf16, #tpu.memory_space<vmem>>, vector<1x4x128xbf16>
    %18 = vector.shape_cast %17 : vector<1x4x128xbf16> to vector<4x128xbf16>
    %cst_12 = arith.constant dense<0.000000e+00> : vector<256x128xf32>
    %19 = tpu.matmul %16, %18, %cst_12 {dimension_numbers = #tpu.dot_dimension_numbers<[1], [0], [0], [1], [0, 0, 1, 1], [], []>} : vector<256x4xbf16>, vector<4x128xbf16>, vector<256x128xf32> -> vector<256x128xf32>
    %20 = arith.addf %14, %19 : vector<256x128xf32>
    %21 = vector.extract_strided_slice %1 {offsets = [1, 0, 0], sizes = [16, 16, 4], strides = [1, 1, 1]} : vector<18x18x4xbf16> to vector<16x16x4xbf16>
    %22 = vector.shape_cast %21 : vector<16x16x4xbf16> to vector<256x4xbf16>
    %c3 = arith.constant 3 : index
    %c0_13 = arith.constant 0 : index
    %c0_14 = arith.constant 0 : index
    %23 = vector.load %arg3[%c3, %c0_13, %c0_14] : memref<9x4x128xbf16, #tpu.memory_space<vmem>>, vector<1x4x128xbf16>
    %24 = vector.shape_cast %23 : vector<1x4x128xbf16> to vector<4x128xbf16>
    %cst_15 = arith.constant dense<0.000000e+00> : vector<256x128xf32>
    %25 = tpu.matmul %22, %24, %cst_15 {dimension_numbers = #tpu.dot_dimension_numbers<[1], [0], [0], [1], [0, 0, 1, 1], [], []>} : vector<256x4xbf16>, vector<4x128xbf16>, vector<256x128xf32> -> vector<256x128xf32>
    %26 = arith.addf %20, %25 : vector<256x128xf32>
    %27 = vector.extract_strided_slice %1 {offsets = [1, 1, 0], sizes = [16, 16, 4], strides = [1, 1, 1]} : vector<18x18x4xbf16> to vector<16x16x4xbf16>
    %28 = vector.shape_cast %27 : vector<16x16x4xbf16> to vector<256x4xbf16>
    %c4 = arith.constant 4 : index
    %c0_16 = arith.constant 0 : index
    %c0_17 = arith.constant 0 : index
    %29 = vector.load %arg3[%c4, %c0_16, %c0_17] : memref<9x4x128xbf16, #tpu.memory_space<vmem>>, vector<1x4x128xbf16>
    %30 = vector.shape_cast %29 : vector<1x4x128xbf16> to vector<4x128xbf16>
    %cst_18 = arith.constant dense<0.000000e+00> : vector<256x128xf32>
    %31 = tpu.matmul %28, %30, %cst_18 {dimension_numbers = #tpu.dot_dimension_numbers<[1], [0], [0], [1], [0, 0, 1, 1], [], []>} : vector<256x4xbf16>, vector<4x128xbf16>, vector<256x128xf32> -> vector<256x128xf32>
    %32 = arith.addf %26, %31 : vector<256x128xf32>
    %33 = vector.extract_strided_slice %1 {offsets = [1, 2, 0], sizes = [16, 16, 4], strides = [1, 1, 1]} : vector<18x18x4xbf16> to vector<16x16x4xbf16>
    %34 = vector.shape_cast %33 : vector<16x16x4xbf16> to vector<256x4xbf16>
    %c5 = arith.constant 5 : index
    %c0_19 = arith.constant 0 : index
    %c0_20 = arith.constant 0 : index
    %35 = vector.load %arg3[%c5, %c0_19, %c0_20] : memref<9x4x128xbf16, #tpu.memory_space<vmem>>, vector<1x4x128xbf16>
    %36 = vector.shape_cast %35 : vector<1x4x128xbf16> to vector<4x128xbf16>
    %cst_21 = arith.constant dense<0.000000e+00> : vector<256x128xf32>
    %37 = tpu.matmul %34, %36, %cst_21 {dimension_numbers = #tpu.dot_dimension_numbers<[1], [0], [0], [1], [0, 0, 1, 1], [], []>} : vector<256x4xbf16>, vector<4x128xbf16>, vector<256x128xf32> -> vector<256x128xf32>
    %38 = arith.addf %32, %37 : vector<256x128xf32>
    %39 = vector.extract_strided_slice %1 {offsets = [2, 0, 0], sizes = [16, 16, 4], strides = [1, 1, 1]} : vector<18x18x4xbf16> to vector<16x16x4xbf16>
    %40 = vector.shape_cast %39 : vector<16x16x4xbf16> to vector<256x4xbf16>
    %c6 = arith.constant 6 : index
    %c0_22 = arith.constant 0 : index
    %c0_23 = arith.constant 0 : index
    %41 = vector.load %arg3[%c6, %c0_22, %c0_23] : memref<9x4x128xbf16, #tpu.memory_space<vmem>>, vector<1x4x128xbf16>
    %42 = vector.shape_cast %41 : vector<1x4x128xbf16> to vector<4x128xbf16>
    %cst_24 = arith.constant dense<0.000000e+00> : vector<256x128xf32>
    %43 = tpu.matmul %40, %42, %cst_24 {dimension_numbers = #tpu.dot_dimension_numbers<[1], [0], [0], [1], [0, 0, 1, 1], [], []>} : vector<256x4xbf16>, vector<4x128xbf16>, vector<256x128xf32> -> vector<256x128xf32>
    %44 = arith.addf %38, %43 : vector<256x128xf32>
    %45 = vector.extract_strided_slice %1 {offsets = [2, 1, 0], sizes = [16, 16, 4], strides = [1, 1, 1]} : vector<18x18x4xbf16> to vector<16x16x4xbf16>
    %46 = vector.shape_cast %45 : vector<16x16x4xbf16> to vector<256x4xbf16>
    %c7 = arith.constant 7 : index
    %c0_25 = arith.constant 0 : index
    %c0_26 = arith.constant 0 : index
    %47 = vector.load %arg3[%c7, %c0_25, %c0_26] : memref<9x4x128xbf16, #tpu.memory_space<vmem>>, vector<1x4x128xbf16>
    %48 = vector.shape_cast %47 : vector<1x4x128xbf16> to vector<4x128xbf16>
    %cst_27 = arith.constant dense<0.000000e+00> : vector<256x128xf32>
    %49 = tpu.matmul %46, %48, %cst_27 {dimension_numbers = #tpu.dot_dimension_numbers<[1], [0], [0], [1], [0, 0, 1, 1], [], []>} : vector<256x4xbf16>, vector<4x128xbf16>, vector<256x128xf32> -> vector<256x128xf32>
    %50 = arith.addf %44, %49 : vector<256x128xf32>
    %51 = vector.extract_strided_slice %1 {offsets = [2, 2, 0], sizes = [16, 16, 4], strides = [1, 1, 1]} : vector<18x18x4xbf16> to vector<16x16x4xbf16>
    %52 = vector.shape_cast %51 : vector<16x16x4xbf16> to vector<256x4xbf16>
    %c8 = arith.constant 8 : index
    %c0_28 = arith.constant 0 : index
    %c0_29 = arith.constant 0 : index
    %53 = vector.load %arg3[%c8, %c0_28, %c0_29] : memref<9x4x128xbf16, #tpu.memory_space<vmem>>, vector<1x4x128xbf16>
    %54 = vector.shape_cast %53 : vector<1x4x128xbf16> to vector<4x128xbf16>
    %cst_30 = arith.constant dense<0.000000e+00> : vector<256x128xf32>
    %55 = tpu.matmul %52, %54, %cst_30 {dimension_numbers = #tpu.dot_dimension_numbers<[1], [0], [0], [1], [0, 0, 1, 1], [], []>} : vector<256x4xbf16>, vector<4x128xbf16>, vector<256x128xf32> -> vector<256x128xf32>
    %56 = arith.addf %50, %55 : vector<256x128xf32>
    %cst_31 = arith.constant dense<0.000000e+00> : vector<128xf32>
    %57 = vector.multi_reduction <add>, %56, %cst_31 [0] : vector<256x128xf32> to vector<128xf32>
    %58 = vector.shape_cast %57 : vector<128xf32> to vector<1x128xf32>
    %59 = arith.mulf %56, %56 : vector<256x128xf32>
    %cst_32 = arith.constant dense<0.000000e+00> : vector<128xf32>
    %60 = vector.multi_reduction <add>, %59, %cst_32 [0] : vector<256x128xf32> to vector<128xf32>
    %61 = vector.shape_cast %60 : vector<128xf32> to vector<1x128xf32>
    %c0_i32 = arith.constant 0 : i32
    %62 = arith.cmpi eq, %arg1, %c0_i32 : i32
    %63 = arith.extui %62 : i1 to i32
    %c0_i32_33 = arith.constant 0 : i32
    %64 = arith.cmpi ne, %63, %c0_i32_33 : i32
    scf.if %64 {
      %cst_46 = arith.constant 0.000000e+00 : f32
      %77 = vector.broadcast %cst_46 : f32 to vector<1x8x128xf32>
      %c0_47 = arith.constant 0 : index
      %c0_48 = arith.constant 0 : index
      %c0_49 = arith.constant 0 : index
      %78 = vector.load %arg4[%c0_47, %c0_48, %c0_49] : memref<1x8x128xf32, #tpu.memory_space<vmem>>, vector<1x8x128xf32>
      tpu.vector_store %arg4[%c0_47, %c0_48, %c0_49], %77 {strides = array<i32>} : memref<1x8x128xf32, #tpu.memory_space<vmem>>, vector<1x8x128xf32>,
      %cst_50 = arith.constant 0.000000e+00 : f32
      %79 = vector.broadcast %cst_50 : f32 to vector<1x8x128xf32>
      %c0_51 = arith.constant 0 : index
      %c0_52 = arith.constant 0 : index
      %c0_53 = arith.constant 0 : index
      %80 = vector.load %arg5[%c0_51, %c0_52, %c0_53] : memref<1x8x128xf32, #tpu.memory_space<vmem>>, vector<1x8x128xf32>
      tpu.vector_store %arg5[%c0_51, %c0_52, %c0_53], %79 {strides = array<i32>} : memref<1x8x128xf32, #tpu.memory_space<vmem>>, vector<1x8x128xf32>,
    } else {
    }
    %c0_34 = arith.constant 0 : index
    %c0_35 = arith.constant 0 : index
    %c0_36 = arith.constant 0 : index
    %65 = vector.load %arg4[%c0_34, %c0_35, %c0_36] : memref<1x8x128xf32, #tpu.memory_space<vmem>>, vector<1x8x128xf32>
    %66 = vector.shape_cast %58 : vector<1x128xf32> to vector<1x1x128xf32>
    %67 = vector.shape_cast %66 : vector<1x1x128xf32> to vector<1x1x128xf32>
    %68 = vector.broadcast %67 : vector<1x1x128xf32> to vector<1x8x128xf32>
    %69 = arith.addf %65, %68 : vector<1x8x128xf32>
    %c0_37 = arith.constant 0 : index
    %c0_38 = arith.constant 0 : index
    %c0_39 = arith.constant 0 : index
    %70 = vector.load %arg4[%c0_37, %c0_38, %c0_39] : memref<1x8x128xf32, #tpu.memory_space<vmem>>, vector<1x8x128xf32>
    tpu.vector_store %arg4[%c0_37, %c0_38, %c0_39], %69 {strides = array<i32>} : memref<1x8x128xf32, #tpu.memory_space<vmem>>, vector<1x8x128xf32>,
    %c0_40 = arith.constant 0 : index
    %c0_41 = arith.constant 0 : index
    %c0_42 = arith.constant 0 : index
    %71 = vector.load %arg5[%c0_40, %c0_41, %c0_42] : memref<1x8x128xf32, #tpu.memory_space<vmem>>, vector<1x8x128xf32>
    %72 = vector.shape_cast %61 : vector<1x128xf32> to vector<1x1x128xf32>
    %73 = vector.shape_cast %72 : vector<1x1x128xf32> to vector<1x1x128xf32>
    %74 = vector.broadcast %73 : vector<1x1x128xf32> to vector<1x8x128xf32>
    %75 = arith.addf %71, %74 : vector<1x8x128xf32>
    %c0_43 = arith.constant 0 : index
    %c0_44 = arith.constant 0 : index
    %c0_45 = arith.constant 0 : index
    %76 = vector.load %arg5[%c0_43, %c0_44, %c0_45] : memref<1x8x128xf32, #tpu.memory_space<vmem>>, vector<1x8x128xf32>
    tpu.vector_store %arg5[%c0_43, %c0_44, %c0_45], %75 {strides = array<i32>} : memref<1x8x128xf32, #tpu.memory_space<vmem>>, vector<1x8x128xf32>,
    return
  }
  func.func @transform_0(%arg0: i32, %arg1: i32) -> (i32, i32, i32, i32) {
    %c1_i32 = arith.constant 1 : i32
    %0 = arith.muli %arg0, %c1_i32 : i32
    %1 = arith.addi %0, %arg1 : i32
    %c0_i32 = arith.constant 0 : i32
    %c0_i32_0 = arith.constant 0 : i32
    %c0_i32_1 = arith.constant 0 : i32
    %c0_i32_2 = arith.constant 0 : i32
    return %1, %c0_i32, %c0_i32_0, %c0_i32_1 : i32, i32, i32, i32
  }
  func.func @transform_1(%arg0: i32, %arg1: i32) -> (i32, i32, i32) {
    %c0_i32 = arith.constant 0 : i32
    %c0_i32_0 = arith.constant 0 : i32
    %c0_i32_1 = arith.constant 0 : i32
    %c0_i32_2 = arith.constant 0 : i32
    return %c0_i32, %c0_i32_0, %c0_i32_1 : i32, i32, i32
  }
  func.func @transform_2(%arg0: i32, %arg1: i32) -> (i32, i32, i32) {
    %c0_i32 = arith.constant 0 : i32
    %c0_i32_0 = arith.constant 0 : i32
    %c0_i32_1 = arith.constant 0 : i32
    return %arg0, %c0_i32, %c0_i32_0 : i32, i32, i32
  }
  func.func @transform_3(%arg0: i32, %arg1: i32) -> (i32, i32, i32) {
    %c0_i32 = arith.constant 0 : i32
    %c0_i32_0 = arith.constant 0 : i32
    %c0_i32_1 = arith.constant 0 : i32
    return %arg0, %c0_i32, %c0_i32_0 : i32, i32, i32
  }
}

module attributes {stable_mosaic.version = 11 : i64} {
  func.func @_conv_bn_apply_kernel(%arg0: i32, %arg1: memref<1x18x18x4xbf16, #tpu.memory_space<vmem>>, %arg2: memref<9x4x128xbf16, #tpu.memory_space<vmem>>, %arg3: memref<1x128xf32, #tpu.memory_space<vmem>>, %arg4: memref<1x128xf32, #tpu.memory_space<vmem>>, %arg5: memref<1x8x256xf32, #tpu.memory_space<vmem>>) attributes {dimension_semantics = [#tpu.dimension_semantics<parallel>], iteration_bounds = array<i64: 2>, scalar_prefetch = 0 : i64, scratch_operands = 0 : i64, tpu.core_type = #tpu.core_type<tc>, window_params = [{transform_indices = @transform_0, window_bounds = array<i64: 1, 18, 18, 4>}, {pipeline_mode = #tpu.pipeline_mode<synchronous>, transform_indices = @transform_1, window_bounds = array<i64: 9, 4, 128>}, {pipeline_mode = #tpu.pipeline_mode<synchronous>, transform_indices = @transform_2, window_bounds = array<i64: 1, 128>}, {pipeline_mode = #tpu.pipeline_mode<synchronous>, transform_indices = @transform_3, window_bounds = array<i64: 1, 128>}, {transform_indices = @transform_4, window_bounds = array<i64: 1, 8, 256>}]} {
    %c0 = arith.constant 0 : index
    %c0_0 = arith.constant 0 : index
    %c0_1 = arith.constant 0 : index
    %c0_2 = arith.constant 0 : index
    %0 = vector.load %arg1[%c0, %c0_0, %c0_1, %c0_2] : memref<1x18x18x4xbf16, #tpu.memory_space<vmem>>, vector<1x18x18x4xbf16>
    %1 = vector.shape_cast %0 : vector<1x18x18x4xbf16> to vector<18x18x4xbf16>
    %cst = arith.constant 0.000000e+00 : f32
    %2 = vector.broadcast %cst : f32 to vector<256x128xf32>
    %3 = vector.extract_strided_slice %1 {offsets = [0, 0, 0], sizes = [16, 16, 4], strides = [1, 1, 1]} : vector<18x18x4xbf16> to vector<16x16x4xbf16>
    %4 = vector.shape_cast %3 : vector<16x16x4xbf16> to vector<256x4xbf16>
    %c0_3 = arith.constant 0 : index
    %c0_4 = arith.constant 0 : index
    %c0_5 = arith.constant 0 : index
    %5 = vector.load %arg2[%c0_3, %c0_4, %c0_5] : memref<9x4x128xbf16, #tpu.memory_space<vmem>>, vector<1x4x128xbf16>
    %6 = vector.shape_cast %5 : vector<1x4x128xbf16> to vector<4x128xbf16>
    %cst_6 = arith.constant dense<0.000000e+00> : vector<256x128xf32>
    %7 = tpu.matmul %4, %6, %cst_6 {dimension_numbers = #tpu.dot_dimension_numbers<[1], [0], [0], [1], [0, 0, 1, 1], [], []>} : vector<256x4xbf16>, vector<4x128xbf16>, vector<256x128xf32> -> vector<256x128xf32>
    %8 = arith.addf %2, %7 : vector<256x128xf32>
    %9 = vector.extract_strided_slice %1 {offsets = [0, 1, 0], sizes = [16, 16, 4], strides = [1, 1, 1]} : vector<18x18x4xbf16> to vector<16x16x4xbf16>
    %10 = vector.shape_cast %9 : vector<16x16x4xbf16> to vector<256x4xbf16>
    %c1 = arith.constant 1 : index
    %c0_7 = arith.constant 0 : index
    %c0_8 = arith.constant 0 : index
    %11 = vector.load %arg2[%c1, %c0_7, %c0_8] : memref<9x4x128xbf16, #tpu.memory_space<vmem>>, vector<1x4x128xbf16>
    %12 = vector.shape_cast %11 : vector<1x4x128xbf16> to vector<4x128xbf16>
    %cst_9 = arith.constant dense<0.000000e+00> : vector<256x128xf32>
    %13 = tpu.matmul %10, %12, %cst_9 {dimension_numbers = #tpu.dot_dimension_numbers<[1], [0], [0], [1], [0, 0, 1, 1], [], []>} : vector<256x4xbf16>, vector<4x128xbf16>, vector<256x128xf32> -> vector<256x128xf32>
    %14 = arith.addf %8, %13 : vector<256x128xf32>
    %15 = vector.extract_strided_slice %1 {offsets = [0, 2, 0], sizes = [16, 16, 4], strides = [1, 1, 1]} : vector<18x18x4xbf16> to vector<16x16x4xbf16>
    %16 = vector.shape_cast %15 : vector<16x16x4xbf16> to vector<256x4xbf16>
    %c2 = arith.constant 2 : index
    %c0_10 = arith.constant 0 : index
    %c0_11 = arith.constant 0 : index
    %17 = vector.load %arg2[%c2, %c0_10, %c0_11] : memref<9x4x128xbf16, #tpu.memory_space<vmem>>, vector<1x4x128xbf16>
    %18 = vector.shape_cast %17 : vector<1x4x128xbf16> to vector<4x128xbf16>
    %cst_12 = arith.constant dense<0.000000e+00> : vector<256x128xf32>
    %19 = tpu.matmul %16, %18, %cst_12 {dimension_numbers = #tpu.dot_dimension_numbers<[1], [0], [0], [1], [0, 0, 1, 1], [], []>} : vector<256x4xbf16>, vector<4x128xbf16>, vector<256x128xf32> -> vector<256x128xf32>
    %20 = arith.addf %14, %19 : vector<256x128xf32>
    %21 = vector.extract_strided_slice %1 {offsets = [1, 0, 0], sizes = [16, 16, 4], strides = [1, 1, 1]} : vector<18x18x4xbf16> to vector<16x16x4xbf16>
    %22 = vector.shape_cast %21 : vector<16x16x4xbf16> to vector<256x4xbf16>
    %c3 = arith.constant 3 : index
    %c0_13 = arith.constant 0 : index
    %c0_14 = arith.constant 0 : index
    %23 = vector.load %arg2[%c3, %c0_13, %c0_14] : memref<9x4x128xbf16, #tpu.memory_space<vmem>>, vector<1x4x128xbf16>
    %24 = vector.shape_cast %23 : vector<1x4x128xbf16> to vector<4x128xbf16>
    %cst_15 = arith.constant dense<0.000000e+00> : vector<256x128xf32>
    %25 = tpu.matmul %22, %24, %cst_15 {dimension_numbers = #tpu.dot_dimension_numbers<[1], [0], [0], [1], [0, 0, 1, 1], [], []>} : vector<256x4xbf16>, vector<4x128xbf16>, vector<256x128xf32> -> vector<256x128xf32>
    %26 = arith.addf %20, %25 : vector<256x128xf32>
    %27 = vector.extract_strided_slice %1 {offsets = [1, 1, 0], sizes = [16, 16, 4], strides = [1, 1, 1]} : vector<18x18x4xbf16> to vector<16x16x4xbf16>
    %28 = vector.shape_cast %27 : vector<16x16x4xbf16> to vector<256x4xbf16>
    %c4 = arith.constant 4 : index
    %c0_16 = arith.constant 0 : index
    %c0_17 = arith.constant 0 : index
    %29 = vector.load %arg2[%c4, %c0_16, %c0_17] : memref<9x4x128xbf16, #tpu.memory_space<vmem>>, vector<1x4x128xbf16>
    %30 = vector.shape_cast %29 : vector<1x4x128xbf16> to vector<4x128xbf16>
    %cst_18 = arith.constant dense<0.000000e+00> : vector<256x128xf32>
    %31 = tpu.matmul %28, %30, %cst_18 {dimension_numbers = #tpu.dot_dimension_numbers<[1], [0], [0], [1], [0, 0, 1, 1], [], []>} : vector<256x4xbf16>, vector<4x128xbf16>, vector<256x128xf32> -> vector<256x128xf32>
    %32 = arith.addf %26, %31 : vector<256x128xf32>
    %33 = vector.extract_strided_slice %1 {offsets = [1, 2, 0], sizes = [16, 16, 4], strides = [1, 1, 1]} : vector<18x18x4xbf16> to vector<16x16x4xbf16>
    %34 = vector.shape_cast %33 : vector<16x16x4xbf16> to vector<256x4xbf16>
    %c5 = arith.constant 5 : index
    %c0_19 = arith.constant 0 : index
    %c0_20 = arith.constant 0 : index
    %35 = vector.load %arg2[%c5, %c0_19, %c0_20] : memref<9x4x128xbf16, #tpu.memory_space<vmem>>, vector<1x4x128xbf16>
    %36 = vector.shape_cast %35 : vector<1x4x128xbf16> to vector<4x128xbf16>
    %cst_21 = arith.constant dense<0.000000e+00> : vector<256x128xf32>
    %37 = tpu.matmul %34, %36, %cst_21 {dimension_numbers = #tpu.dot_dimension_numbers<[1], [0], [0], [1], [0, 0, 1, 1], [], []>} : vector<256x4xbf16>, vector<4x128xbf16>, vector<256x128xf32> -> vector<256x128xf32>
    %38 = arith.addf %32, %37 : vector<256x128xf32>
    %39 = vector.extract_strided_slice %1 {offsets = [2, 0, 0], sizes = [16, 16, 4], strides = [1, 1, 1]} : vector<18x18x4xbf16> to vector<16x16x4xbf16>
    %40 = vector.shape_cast %39 : vector<16x16x4xbf16> to vector<256x4xbf16>
    %c6 = arith.constant 6 : index
    %c0_22 = arith.constant 0 : index
    %c0_23 = arith.constant 0 : index
    %41 = vector.load %arg2[%c6, %c0_22, %c0_23] : memref<9x4x128xbf16, #tpu.memory_space<vmem>>, vector<1x4x128xbf16>
    %42 = vector.shape_cast %41 : vector<1x4x128xbf16> to vector<4x128xbf16>
    %cst_24 = arith.constant dense<0.000000e+00> : vector<256x128xf32>
    %43 = tpu.matmul %40, %42, %cst_24 {dimension_numbers = #tpu.dot_dimension_numbers<[1], [0], [0], [1], [0, 0, 1, 1], [], []>} : vector<256x4xbf16>, vector<4x128xbf16>, vector<256x128xf32> -> vector<256x128xf32>
    %44 = arith.addf %38, %43 : vector<256x128xf32>
    %45 = vector.extract_strided_slice %1 {offsets = [2, 1, 0], sizes = [16, 16, 4], strides = [1, 1, 1]} : vector<18x18x4xbf16> to vector<16x16x4xbf16>
    %46 = vector.shape_cast %45 : vector<16x16x4xbf16> to vector<256x4xbf16>
    %c7 = arith.constant 7 : index
    %c0_25 = arith.constant 0 : index
    %c0_26 = arith.constant 0 : index
    %47 = vector.load %arg2[%c7, %c0_25, %c0_26] : memref<9x4x128xbf16, #tpu.memory_space<vmem>>, vector<1x4x128xbf16>
    %48 = vector.shape_cast %47 : vector<1x4x128xbf16> to vector<4x128xbf16>
    %cst_27 = arith.constant dense<0.000000e+00> : vector<256x128xf32>
    %49 = tpu.matmul %46, %48, %cst_27 {dimension_numbers = #tpu.dot_dimension_numbers<[1], [0], [0], [1], [0, 0, 1, 1], [], []>} : vector<256x4xbf16>, vector<4x128xbf16>, vector<256x128xf32> -> vector<256x128xf32>
    %50 = arith.addf %44, %49 : vector<256x128xf32>
    %51 = vector.extract_strided_slice %1 {offsets = [2, 2, 0], sizes = [16, 16, 4], strides = [1, 1, 1]} : vector<18x18x4xbf16> to vector<16x16x4xbf16>
    %52 = vector.shape_cast %51 : vector<16x16x4xbf16> to vector<256x4xbf16>
    %c8 = arith.constant 8 : index
    %c0_28 = arith.constant 0 : index
    %c0_29 = arith.constant 0 : index
    %53 = vector.load %arg2[%c8, %c0_28, %c0_29] : memref<9x4x128xbf16, #tpu.memory_space<vmem>>, vector<1x4x128xbf16>
    %54 = vector.shape_cast %53 : vector<1x4x128xbf16> to vector<4x128xbf16>
    %cst_30 = arith.constant dense<0.000000e+00> : vector<256x128xf32>
    %55 = tpu.matmul %52, %54, %cst_30 {dimension_numbers = #tpu.dot_dimension_numbers<[1], [0], [0], [1], [0, 0, 1, 1], [], []>} : vector<256x4xbf16>, vector<4x128xbf16>, vector<256x128xf32> -> vector<256x128xf32>
    %56 = arith.addf %50, %55 : vector<256x128xf32>
    %c0_31 = arith.constant 0 : index
    %c0_32 = arith.constant 0 : index
    %57 = vector.load %arg3[%c0_31, %c0_32] : memref<1x128xf32, #tpu.memory_space<vmem>>, vector<1x128xf32>
    %58 = vector.broadcast %57 : vector<1x128xf32> to vector<256x128xf32>
    %59 = arith.mulf %56, %58 : vector<256x128xf32>
    %c0_33 = arith.constant 0 : index
    %c0_34 = arith.constant 0 : index
    %60 = vector.load %arg4[%c0_33, %c0_34] : memref<1x128xf32, #tpu.memory_space<vmem>>, vector<1x128xf32>
    %61 = vector.broadcast %60 : vector<1x128xf32> to vector<256x128xf32>
    %62 = arith.addf %59, %61 : vector<256x128xf32>
    %63 = tpu.transpose %62, [1, 0] : vector<256x128xf32> -> vector<128x256xf32>
    %64 = vector.extract_strided_slice %63 {offsets = [0, 0], sizes = [8, 256], strides = [1, 1]} : vector<128x256xf32> to vector<8x256xf32>
    %65 = vector.shape_cast %64 : vector<8x256xf32> to vector<1x8x256xf32>
    %c0_35 = arith.constant 0 : index
    %c0_36 = arith.constant 0 : index
    %c0_37 = arith.constant 0 : index
    %66 = vector.load %arg5[%c0_35, %c0_36, %c0_37] : memref<1x8x256xf32, #tpu.memory_space<vmem>>, vector<1x8x256xf32>
    tpu.vector_store %arg5[%c0_35, %c0_36, %c0_37], %65 {strides = array<i32>} : memref<1x8x256xf32, #tpu.memory_space<vmem>>, vector<1x8x256xf32>,
    return
  }
  func.func @transform_0(%arg0: i32) -> (i32, i32, i32, i32) {
    %c0_i32 = arith.constant 0 : i32
    %c0_i32_0 = arith.constant 0 : i32
    %c0_i32_1 = arith.constant 0 : i32
    %c0_i32_2 = arith.constant 0 : i32
    return %arg0, %c0_i32, %c0_i32_0, %c0_i32_1 : i32, i32, i32, i32
  }
  func.func @transform_1(%arg0: i32) -> (i32, i32, i32) {
    %c0_i32 = arith.constant 0 : i32
    %c0_i32_0 = arith.constant 0 : i32
    %c0_i32_1 = arith.constant 0 : i32
    %c0_i32_2 = arith.constant 0 : i32
    return %c0_i32, %c0_i32_0, %c0_i32_1 : i32, i32, i32
  }
  func.func @transform_2(%arg0: i32) -> (i32, i32) {
    %c0_i32 = arith.constant 0 : i32
    %c0_i32_0 = arith.constant 0 : i32
    %c0_i32_1 = arith.constant 0 : i32
    return %c0_i32, %c0_i32_0 : i32, i32
  }
  func.func @transform_3(%arg0: i32) -> (i32, i32) {
    %c0_i32 = arith.constant 0 : i32
    %c0_i32_0 = arith.constant 0 : i32
    %c0_i32_1 = arith.constant 0 : i32
    return %c0_i32, %c0_i32_0 : i32, i32
  }
  func.func @transform_4(%arg0: i32) -> (i32, i32, i32) {
    %c0_i32 = arith.constant 0 : i32
    %c0_i32_0 = arith.constant 0 : i32
    %c0_i32_1 = arith.constant 0 : i32
    return %arg0, %c0_i32, %c0_i32_0 : i32, i32, i32
  }
}

</mosaic_0001>

<llo_original>
// kernel: conv_batch_norm_block.3
$region0: #{conv_batch_norm_block.3}
  #allocation0 [shape = 'u32[]', space=smem, size = 0x4, offset = 0x4, fixed_abs, tag = 'smem constant byte address 0x4 - core index']
  #allocation1 [shape = 'u32[144,128]{1,0:T(1,128)}', space=vmem, size = 0x12000, scoped, tag = 'internal scratch']
  %s0 = inlined_call_operand.vmem [shape: bf16[2,18,18,4], index: 0, kind: input, shape index: {}]
  %s1 = inlined_call_operand.vmem [shape: bf16[9,4,128], index: 1, kind: input, shape index: {}]
  %s2 = inlined_call_operand.vmem [shape: f32[1,128], index: 2, kind: input, shape index: {}]
  %s3 = inlined_call_operand.vmem [shape: f32[1,128], index: 3, kind: input, shape index: {}]
  %s4 = inlined_call_operand.vmem [shape: f32[2,8,256], index: 4, kind: output, shape index: {}]
  %s5 = sld [smem:[#allocation0]]
  $region49: #{conv_batch_norm_block.3} parent=0
    _
  %s7 = ssub.s32 1, %s5
  %s8 = scalar_select 0, %s7, %s5
  loop: start=0, step=1, limit=4
  $region2: #{conv_batch_norm_block.3} parent=0 // loop_pre_header
    _
  $region3: #{conv_batch_norm_block.3} parent=0 // loop_header
    %s10 = sphi 0, %s14
    %p11 = scmp.ge.s32.totalorder %s10, 4
    %s20 = sphi 0, %s22
    %s23 = sphi 0, %s20
    %s24 = sphi 0, %s23
    %s40 = sphi 0, %s24
    %s44 = sphi 0, %s44
    %s46 = sphi 0, %s44
    %s47 = sphi 0, %s46
    %s61 = sphi 0, %s47
    %s65 = sphi 0, %s65
    %s67 = sphi 0, %s65
    %s68 = sphi 0, %s67
    %s82 = sphi 0, %s68
    %s86 = sphi 0, %s86
    %s88 = sphi 0, %s86
    %s89 = sphi 0, %s88
    %s103 = sphi 0, %s89
    %s109 = sphi 0, %s111
    %s112 = sphi 0, %s109
    %s113 = sphi 0, %s112
    %s129 = sphi 0, %s113
  $region4: #{conv_batch_norm_block.3} parent=0 // loop_header_branch
    %13 = sbr.rel (%p11) target = $region8
  $region5: #{conv_batch_norm_block.3} parent=0 // loop_body
    %s15 = ssub.s32 %s10, 1
    %s16 = ssub.s32 %s10, 2
    %s17 = sadd.s32 %s10, 1
    %s18 = ssub.s32 %s10, %s17
    %p19 = scmp.eq.s32.totalorder %s18, 0
    %s21 = sadd.s32 %s20, 1
    %s22 = scalar_select %p19, %s20, %s21
    %p25 = pneg %p19
    %p26 = scmp.eq.s32.totalorder %s10, 1
    %p27 = por %p25, %p26
    %p28 = scmp.ne.s32.totalorder %s20, %s23
    %p29 = scmp.eq.s32.totalorder %s10, 0
    %p30 = por %p28, %p29
    %p31 = scmp.ne.s32.totalorder %s20, %s23
    %p32 = scmp.eq.s32.totalorder %s15, 1
    %p33 = por %p31, %p32
    %p34 = scmp.ne.s32.totalorder %s23, %s24
    %p35 = scmp.eq.s32.totalorder %s15, 0
    %p36 = por %p34, %p35
    %p37 = scmp.ne.s32.totalorder %s23, %s24
    %p38 = scmp.eq.s32.totalorder %s16, 1
    %p39 = por %p37, %p38
    %p41 = scmp.ne.s32.totalorder %s24, %s40
    %p42 = scmp.eq.s32.totalorder %s16, 0
    %p43 = por %p41, %p42
    %s45 = sadd.s32 %s44, 1
    %p48 = scmp.eq.s32.totalorder %s10, 1
    %p49 = scmp.ne.s32.totalorder %s44, %s46
    %p50 = scmp.eq.s32.totalorder %s10, 0
    %p51 = por %p49, %p50
    %p52 = scmp.ne.s32.totalorder %s44, %s46
    %p53 = scmp.eq.s32.totalorder %s15, 1
    %p54 = por %p52, %p53
    %p55 = scmp.ne.s32.totalorder %s46, %s47
    %p56 = scmp.eq.s32.totalorder %s15, 0
    %p57 = por %p55, %p56
    %p58 = scmp.ne.s32.totalorder %s46, %s47
    %p59 = scmp.eq.s32.totalorder %s16, 1
    %p60 = por %p58, %p59
    %p62 = scmp.ne.s32.totalorder %s47, %s61
    %p63 = scmp.eq.s32.totalorder %s16, 0
    %p64 = por %p62, %p63
    %s66 = sadd.s32 %s65, 1
    %p69 = scmp.eq.s32.totalorder %s10, 1
    %p70 = scmp.ne.s32.totalorder %s65, %s67
    %p71 = scmp.eq.s32.totalorder %s10, 0
    %p72 = por %p70, %p71
    %p73 = scmp.ne.s32.totalorder %s65, %s67
    %p74 = scmp.eq.s32.totalorder %s15, 1
    %p75 = por %p73, %p74
    %p76 = scmp.ne.s32.totalorder %s67, %s68
    %p77 = scmp.eq.s32.totalorder %s15, 0
    %p78 = por %p76, %p77
    %p79 = scmp.ne.s32.totalorder %s67, %s68
    %p80 = scmp.eq.s32.totalorder %s16, 1
    %p81 = por %p79, %p80
    %p83 = scmp.ne.s32.totalorder %s68, %s82
    %p84 = scmp.eq.s32.totalorder %s16, 0
    %p85 = por %p83, %p84
    %s87 = sadd.s32 %s86, 1
    %p90 = scmp.eq.s32.totalorder %s10, 1
    %p91 = scmp.ne.s32.totalorder %s86, %s88
    %p92 = scmp.eq.s32.totalorder %s10, 0
    %p93 = por %p91, %p92
    %p94 = scmp.ne.s32.totalorder %s86, %s88
    %p95 = scmp.eq.s32.totalorder %s15, 1
    %p96 = por %p94, %p95
    %p97 = scmp.ne.s32.totalorder %s88, %s89
    %p98 = scmp.eq.s32.totalorder %s15, 0
    %p99 = por %p97, %p98
    %p100 = scmp.ne.s32.totalorder %s88, %s89
    %p101 = scmp.eq.s32.totalorder %s16, 1
    %p102 = por %p100, %p101
    %p104 = scmp.ne.s32.totalorder %s89, %s103
    %p105 = scmp.eq.s32.totalorder %s16, 0
    %p106 = por %p104, %p105
    %s107 = ssub.s32 %s10, %s17
    %p108 = scmp.eq.s32.totalorder %s107, 0
    %s110 = sadd.s32 %s109, 1
    %s111 = scalar_select %p108, %s109, %s110
    %p114 = pneg %p108
    %p115 = scmp.eq.s32.totalorder %s10, 1
    %p116 = por %p114, %p115
    %p117 = scmp.ne.s32.totalorder %s109, %s112
    %p118 = scmp.eq.s32.totalorder %s10, 0
    %p119 = por %p117, %p118
    %p120 = scmp.ne.s32.totalorder %s109, %s112
    %p121 = scmp.eq.s32.totalorder %s15, 1
    %p122 = por %p120, %p121
    %p123 = scmp.ne.s32.totalorder %s112, %s113
    %p124 = scmp.eq.s32.totalorder %s15, 0
    %p125 = por %p123, %p124
    %p126 = scmp.ne.s32.totalorder %s112, %s113
    %p127 = scmp.eq.s32.totalorder %s16, 1
    %p128 = por %p126, %p127
    %p130 = scmp.ne.s32.totalorder %s113, %s129
    %p131 = scmp.eq.s32.totalorder %s16, 0
    %p132 = por %p130, %p131
    %p133 = scmp.le.s32.totalorder 1, %s10
    %p134 = scmp.lt.s32.totalorder %s10, 3
    %p135 = pnand %p133, %p134
    %p136 = pneg %p135
    // Predicated region
    $region9: #{conv_batch_norm_block.3} parent=5 // pred_check
      _
    $region10: #{conv_batch_norm_block.3} parent=5 // pred_check_branch
      %138 = sbr.rel (%p135) target = $region12
    $region11: #{conv_batch_norm_block.3} parent=5 // pred_region
      %s139 = ssub.s32 %s10, 1
      // Predicated region
      $region13: #{conv_batch_norm_block.3} parent=11 // pred_check
        %p140 = pneg %p57
      $region14: #{conv_batch_norm_block.3} parent=11 // pred_check_branch
        %142 = sbr.rel (%p140) target = $region16
      $region15: #{conv_batch_norm_block.3} parent=11 // pred_region
        _
      $region16: #{conv_batch_norm_block.3} parent=11 // pred_fallthru
        _
      // Predicated region
      $region17: #{conv_batch_norm_block.3} parent=11 // pred_check
        %p143 = pneg %p78
      $region18: #{conv_batch_norm_block.3} parent=11 // pred_check_branch
        %145 = sbr.rel (%p143) target = $region20
      $region19: #{conv_batch_norm_block.3} parent=11 // pred_region
        _
      $region20: #{conv_batch_norm_block.3} parent=11 // pred_fallthru
        _
      // Predicated region
      $region21: #{conv_batch_norm_block.3} parent=11 // pred_check
        %p146 = pneg %p99
      $region22: #{conv_batch_norm_block.3} parent=11 // pred_check_branch
        %148 = sbr.rel (%p146) target = $region24
      $region23: #{conv_batch_norm_block.3} parent=11 // pred_region
        _
      $region24: #{conv_batch_norm_block.3} parent=11 // pred_fallthru
        _
    $region12: #{conv_batch_norm_block.3} parent=5 // pred_fallthru
      _
    %p149 = scmp.lt.s32.totalorder %s10, 2
    // Predicated region
    $region25: #{conv_batch_norm_block.3} parent=5 // pred_check
      %p150 = pneg %p149
    $region26: #{conv_batch_norm_block.3} parent=5 // pred_check_branch
      %152 = sbr.rel (%p150) target = $region28
    $region27: #{conv_batch_norm_block.3} parent=5 // pred_region
      // Predicated region
      $region29: #{conv_batch_norm_block.3} parent=27 // pred_check
        %p153 = pneg %p30
      $region30: #{conv_batch_norm_block.3} parent=27 // pred_check_branch
        %155 = sbr.rel (%p153) target = $region32
      $region31: #{conv_batch_norm_block.3} parent=27 // pred_region
        %p156 = scmp.lt.s32.totalorder %s10, 1
        %s157 = scalar_select %p156, %s10, 1
        %s158 = smul.addr %s157, 54
        %s159 = smul.addr %s158, 4
        %s160 = scalar_lea.vmem %s0, %s159
      $region32: #{conv_batch_norm_block.3} parent=27 // pred_fallthru
        _
    $region28: #{conv_batch_norm_block.3} parent=5 // pred_fallthru
      _
    %p161 = scmp.le.s32.totalorder 1, %s10
    %p162 = scmp.lt.s32.totalorder %s10, 3
    %p163 = pnand %p161, %p162
    %p164 = pneg %p163
    // Predicated region
    $region33: #{conv_batch_norm_block.3} parent=5 // pred_check
      _
    $region34: #{conv_batch_norm_block.3} parent=5 // pred_check_branch
      %166 = sbr.rel (%p163) target = $region36
    $region35: #{conv_batch_norm_block.3} parent=5 // pred_region
      %s167 = ssub.s32 %s10, 1
      %p168 = scmp.lt.s32.totalorder %s15, 1
      %s169 = scalar_select %p168, %s15, 1
      %s170 = smul.addr %s169, 54
      %s171 = smul.addr %s170, 4
      %s172 = scalar_lea.vmem %s0, %s171
      %p173 = pneg %p36
      %p174 = pneg %p33
      %p175 = pneg %p57
      %p176 = pneg %p54
      %p177 = pneg %p78
      %p178 = pneg %p75
      %p179 = pneg %p99
      %p180 = pneg %p96
      %p181 = pneg %p125
      %p182 = pneg %p122
      %p183 = scmp.lt.s32.totalorder %s15, 1
      %s184 = scalar_select %p183, %s15, 1
      %s185 = smul.addr %s184, 2
      %s186 = smul.addr %s185, 8
      %s187 = scalar_lea.vmem %s4, %s186
      %p188 = scmp.lt.s32.totalorder %s15, 1
      %s189 = scalar_select %p188, %s15, 1
      %s190 = smul.addr %s189, 54
      %s191 = smul.addr %s190, 4
      %s192 = scalar_lea.vmem %s0, %s191
      %p193 = scmp.lt.s32.totalorder %s15, 1
      %s194 = scalar_select %p193, %s15, 1
      %s195 = smul.addr %s194, 2
      %s196 = smul.addr %s195, 8
      %s197 = scalar_lea.vmem %s4, %s196
      %v199 = vld [vmem:[%s192] sm:$0xf]
      %v200 = vld [vmem:[%s192 + $0x4] sm:$0xf]
      %v201 = vld [vmem:[%s192 + $0x8] sm:$0x1]
      %v202 = vld [vmem:[%s192 + $0xc] sm:$0xf]
      %v203 = vld [vmem:[%s192 + $0x10] sm:$0xf]
      %v204 = vld [vmem:[%s192 + $0x14] sm:$0x1]
      %v205 = vld [vmem:[%s192 + $0x18] sm:$0xf]
      %v206 = vld [vmem:[%s192 + $0x1c] sm:$0xf]
      %v207 = vld [vmem:[%s192 + $0x20] sm:$0x1]
      %v208 = vld [vmem:[%s192 + $0x24] sm:$0xf]
      %v209 = vld [vmem:[%s192 + $0x28] sm:$0xf]
      %v210 = vld [vmem:[%s192 + $0x2c] sm:$0x1]
      %v211 = vld [vmem:[%s192 + $0x30] sm:$0xf]
      %v212 = vld [vmem:[%s192 + $0x34] sm:$0xf]
      %v213 = vld [vmem:[%s192 + $0x38] sm:$0x1]
      %v214 = vld [vmem:[%s192 + $0x3c] sm:$0xf]
      %v215 = vld [vmem:[%s192 + $0x40] sm:$0xf]
      %v216 = vld [vmem:[%s192 + $0x44] sm:$0x1]
      %v217 = vld [vmem:[%s192 + $0x48] sm:$0xf]
      %v218 = vld [vmem:[%s192 + $0x4c] sm:$0xf]
      %v219 = vld [vmem:[%s192 + $0x50] sm:$0x1]
      %v220 = vld [vmem:[%s192 + $0x54] sm:$0xf]
      %v221 = vld [vmem:[%s192 + $0x58] sm:$0xf]
      %v222 = vld [vmem:[%s192 + $0x5c] sm:$0x1]
      %v223 = vld [vmem:[%s192 + $0x60] sm:$0xf]
      %v224 = vld [vmem:[%s192 + $0x64] sm:$0xf]
      %v225 = vld [vmem:[%s192 + $0x68] sm:$0x1]
      %v226 = vld [vmem:[%s192 + $0x6c] sm:$0xf]
      %v227 = vld [vmem:[%s192 + $0x70] sm:$0xf]
      %v228 = vld [vmem:[%s192 + $0x74] sm:$0x1]
      %v229 = vld [vmem:[%s192 + $0x78] sm:$0xf]
      %v230 = vld [vmem:[%s192 + $0x7c] sm:$0xf]
      %v231 = vld [vmem:[%s192 + $0x80] sm:$0x1]
      %v232 = vld [vmem:[%s192 + $0x84] sm:$0xf]
      %v233 = vld [vmem:[%s192 + $0x88] sm:$0xf]
      %v234 = vld [vmem:[%s192 + $0x8c] sm:$0x1]
      %v235 = vld [vmem:[%s192 + $0x90] sm:$0xf]
      %v236 = vld [vmem:[%s192 + $0x94] sm:$0xf]
      %v237 = vld [vmem:[%s192 + $0x98] sm:$0x1]
      %v238 = vld [vmem:[%s192 + $0x9c] sm:$0xf]
      %v239 = vld [vmem:[%s192 + $0xa0] sm:$0xf]
      %v240 = vld [vmem:[%s192 + $0xa4] sm:$0x1]
      %v241 = vld [vmem:[%s192 + $0xa8] sm:$0xf]
      %v242 = vld [vmem:[%s192 + $0xac] sm:$0xf]
      %v243 = vld [vmem:[%s192 + $0xb0] sm:$0x1]
      %v244 = vld [vmem:[%s192 + $0xb4] sm:$0xf]
      %v245 = vld [vmem:[%s192 + $0xb8] sm:$0xf]
      %v246 = vld [vmem:[%s192 + $0xbc] sm:$0x1]
      %v247 = vld [vmem:[%s192 + $0xc0] sm:$0xf]
      %v248 = vld [vmem:[%s192 + $0xc4] sm:$0xf]
      %v249 = vld [vmem:[%s192 + $0xc8] sm:$0x1]
      %v250 = vld [vmem:[%s192 + $0xcc] sm:$0xf]
      %v251 = vld [vmem:[%s192 + $0xd0] sm:$0xf]
      %v252 = vld [vmem:[%s192 + $0xd4] sm:$0x1]
      %v253 = vld [vmem:[%s1] sm:$0x3]
      %vm254 = vsmask.f32 3328
      %vm255 = vsmask.f32 7440
      %vm256 = vmor %vm254, %vm255
      %v258 = vshrl.u32 %v199, 16
      %v260 = vrot.slane %v258, 4
      %v261 = vshll.u32 %v199, 16
      %v263 = vrot.slane %v261, 5
      %v264 = vor.u32 %v260, %v263
      %v265 = vrot.slane %v264, 4
      %v267 = vshll.u32 %v200, 16
      %v269 = vrot.slane %v267, 5
      %v270 = vsel %vm256, %v265, %v269
      %v271 = vshrl.u32 %v200, 16
      %v273 = vrot.slane %v271, 4
      %v274 = vor.u32 %v273, %v269
      %v275 = vrot.slane %v274, 4
      %v277 = vshll.u32 %v201, 16
      %v279 = vrot.slane %v277, 5
      %v280 = vsel %vm256, %v275, %v279
      %v282 = vshrl.u32 %v202, 16
      %v284 = vrot.slane %v282, 4
      %v285 = vshll.u32 %v202, 16
      %v287 = vrot.slane %v285, 5
      %v288 = vor.u32 %v284, %v287
      %v289 = vrot.slane %v288, 4
      %v291 = vshll.u32 %v203, 16
      %v293 = vrot.slane %v291, 5
      %v294 = vsel %vm256, %v289, %v293
      %v295 = vshrl.u32 %v203, 16
      %v297 = vrot.slane %v295, 4
      %v298 = vor.u32 %v297, %v293
      %v299 = vrot.slane %v298, 4
      %v301 = vshll.u32 %v204, 16
      %v303 = vrot.slane %v301, 5
      %v304 = vsel %vm256, %v299, %v303
      %v306 = vshrl.u32 %v205, 16
      %v308 = vrot.slane %v306, 4
      %v309 = vshll.u32 %v205, 16
      %v311 = vrot.slane %v309, 5
      %v312 = vor.u32 %v308, %v311
      %v313 = vrot.slane %v312, 4
      %v315 = vshll.u32 %v206, 16
      %v317 = vrot.slane %v315, 5
      %v318 = vsel %vm256, %v313, %v317
      %v319 = vshrl.u32 %v206, 16
      %v321 = vrot.slane %v319, 4
      %v322 = vor.u32 %v321, %v317
      %v323 = vrot.slane %v322, 4
      %v325 = vshll.u32 %v207, 16
      %v327 = vrot.slane %v325, 5
      %v328 = vsel %vm256, %v323, %v327
      %v330 = vshrl.u32 %v208, 16
      %v332 = vrot.slane %v330, 4
      %v333 = vshll.u32 %v208, 16
      %v335 = vrot.slane %v333, 5
      %v336 = vor.u32 %v332, %v335
      %v337 = vrot.slane %v336, 4
      %v339 = vshll.u32 %v209, 16
      %v341 = vrot.slane %v339, 5
      %v342 = vsel %vm256, %v337, %v341
      %v343 = vshrl.u32 %v209, 16
      %v345 = vrot.slane %v343, 4
      %v346 = vor.u32 %v345, %v341
      %v347 = vrot.slane %v346, 4
      %v349 = vshll.u32 %v210, 16
      %v351 = vrot.slane %v349, 5
      %v352 = vsel %vm256, %v347, %v351
      %v354 = vshrl.u32 %v211, 16
      %v356 = vrot.slane %v354, 4
      %v357 = vshll.u32 %v211, 16
      %v359 = vrot.slane %v357, 5
      %v360 = vor.u32 %v356, %v359
      %v361 = vrot.slane %v360, 4
      %v363 = vshll.u32 %v212, 16
      %v365 = vrot.slane %v363, 5
      %v366 = vsel %vm256, %v361, %v365
      %v367 = vshrl.u32 %v212, 16
      %v369 = vrot.slane %v367, 4
      %v370 = vor.u32 %v369, %v365
      %v371 = vrot.slane %v370, 4
      %v373 = vshll.u32 %v213, 16
      %v375 = vrot.slane %v373, 5
      %v376 = vsel %vm256, %v371, %v375
      %v378 = vshrl.u32 %v214, 16
      %v380 = vrot.slane %v378, 4
      %v381 = vshll.u32 %v214, 16
      %v383 = vrot.slane %v381, 5
      %v384 = vor.u32 %v380, %v383
      %v385 = vrot.slane %v384, 4
      %v387 = vshll.u32 %v215, 16
      %v389 = vrot.slane %v387, 5
      %v390 = vsel %vm256, %v385, %v389
      %v391 = vshrl.u32 %v215, 16
      %v393 = vrot.slane %v391, 4
      %v394 = vor.u32 %v393, %v389
      %v395 = vrot.slane %v394, 4
      %v397 = vshll.u32 %v216, 16
      %v399 = vrot.slane %v397, 5
      %v400 = vsel %vm256, %v395, %v399
      %v402 = vshrl.u32 %v217, 16
      %v404 = vrot.slane %v402, 4
      %v405 = vshll.u32 %v217, 16
      %v407 = vrot.slane %v405, 5
      %v408 = vor.u32 %v404, %v407
      %v409 = vrot.slane %v408, 4
      %v411 = vshll.u32 %v218, 16
      %v413 = vrot.slane %v411, 5
      %v414 = vsel %vm256, %v409, %v413
      %v415 = vshrl.u32 %v218, 16
      %v417 = vrot.slane %v415, 4
      %v418 = vor.u32 %v417, %v413
      %v419 = vrot.slane %v418, 4
      %v421 = vshll.u32 %v219, 16
      %v423 = vrot.slane %v421, 5
      %v424 = vsel %vm256, %v419, %v423
      %v426 = vshrl.u32 %v220, 16
      %v428 = vrot.slane %v426, 4
      %v429 = vshll.u32 %v220, 16
      %v431 = vrot.slane %v429, 5
      %v432 = vor.u32 %v428, %v431
      %v433 = vrot.slane %v432, 4
      %v435 = vshll.u32 %v221, 16
      %v437 = vrot.slane %v435, 5
      %v438 = vsel %vm256, %v433, %v437
      %v439 = vshrl.u32 %v221, 16
      %v441 = vrot.slane %v439, 4
      %v442 = vor.u32 %v441, %v437
      %v443 = vrot.slane %v442, 4
      %v445 = vshll.u32 %v222, 16
      %v447 = vrot.slane %v445, 5
      %v448 = vsel %vm256, %v443, %v447
      %v450 = vshrl.u32 %v223, 16
      %v452 = vrot.slane %v450, 4
      %v453 = vshll.u32 %v223, 16
      %v455 = vrot.slane %v453, 5
      %v456 = vor.u32 %v452, %v455
      %v457 = vrot.slane %v456, 4
      %v459 = vshll.u32 %v224, 16
      %v461 = vrot.slane %v459, 5
      %v462 = vsel %vm256, %v457, %v461
      %v463 = vshrl.u32 %v224, 16
      %v465 = vrot.slane %v463, 4
      %v466 = vor.u32 %v465, %v461
      %v467 = vrot.slane %v466, 4
      %v469 = vshll.u32 %v225, 16
      %v471 = vrot.slane %v469, 5
      %v472 = vsel %vm256, %v467, %v471
      %v474 = vshrl.u32 %v226, 16
      %v476 = vrot.slane %v474, 4
      %v477 = vshll.u32 %v226, 16
      %v479 = vrot.slane %v477, 5
      %v480 = vor.u32 %v476, %v479
      %v481 = vrot.slane %v480, 4
      %v483 = vshll.u32 %v227, 16
      %v485 = vrot.slane %v483, 5
      %v486 = vsel %vm256, %v481, %v485
      %v487 = vshrl.u32 %v227, 16
      %v489 = vrot.slane %v487, 4
      %v490 = vor.u32 %v489, %v485
      %v491 = vrot.slane %v490, 4
      %v493 = vshll.u32 %v228, 16
      %v495 = vrot.slane %v493, 5
      %v496 = vsel %vm256, %v491, %v495
      %v498 = vshrl.u32 %v229, 16
      %v500 = vrot.slane %v498, 4
      %v501 = vshll.u32 %v229, 16
      %v503 = vrot.slane %v501, 5
      %v504 = vor.u32 %v500, %v503
      %v505 = vrot.slane %v504, 4
      %v507 = vshll.u32 %v230, 16
      %v509 = vrot.slane %v507, 5
      %v510 = vsel %vm256, %v505, %v509
      %v511 = vshrl.u32 %v230, 16
      %v513 = vrot.slane %v511, 4
      %v514 = vor.u32 %v513, %v509
      %v515 = vrot.slane %v514, 4
      %v517 = vshll.u32 %v231, 16
      %v519 = vrot.slane %v517, 5
      %v520 = vsel %vm256, %v515, %v519
      %v522 = vshrl.u32 %v232, 16
      %v524 = vrot.slane %v522, 4
      %v525 = vshll.u32 %v232, 16
      %v527 = vrot.slane %v525, 5
      %v528 = vor.u32 %v524, %v527
      %v529 = vrot.slane %v528, 4
      %v531 = vshll.u32 %v233, 16
      %v533 = vrot.slane %v531, 5
      %v534 = vsel %vm256, %v529, %v533
      %v535 = vshrl.u32 %v233, 16
      %v537 = vrot.slane %v535, 4
      %v538 = vor.u32 %v537, %v533
      %v539 = vrot.slane %v538, 4
      %v541 = vshll.u32 %v234, 16
      %v543 = vrot.slane %v541, 5
      %v544 = vsel %vm256, %v539, %v543
      %v546 = vshrl.u32 %v235, 16
      %v548 = vrot.slane %v546, 4
      %v549 = vshll.u32 %v235, 16
      %v551 = vrot.slane %v549, 5
      %v552 = vor.u32 %v548, %v551
      %v553 = vrot.slane %v552, 4
      %v555 = vshll.u32 %v236, 16
      %v557 = vrot.slane %v555, 5
      %v558 = vsel %vm256, %v553, %v557
      %v559 = vshrl.u32 %v236, 16
      %v561 = vrot.slane %v559, 4
      %v562 = vor.u32 %v561, %v557
      %v563 = vrot.slane %v562, 4
      %v565 = vshll.u32 %v237, 16
      %v567 = vrot.slane %v565, 5
      %v568 = vsel %vm256, %v563, %v567
      %v570 = vshrl.u32 %v238, 16
      %v572 = vrot.slane %v570, 4
      %v573 = vshll.u32 %v238, 16
      %v575 = vrot.slane %v573, 5
      %v576 = vor.u32 %v572, %v575
      %v577 = vrot.slane %v576, 4
      %v579 = vshll.u32 %v239, 16
      %v581 = vrot.slane %v579, 5
      %v582 = vsel %vm256, %v577, %v581
      %v583 = vshrl.u32 %v239, 16
      %v585 = vrot.slane %v583, 4
      %v586 = vor.u32 %v585, %v581
      %v587 = vrot.slane %v586, 4
      %v589 = vshll.u32 %v240, 16
      %v591 = vrot.slane %v589, 5
      %v592 = vsel %vm256, %v587, %v591
      %v594 = vshrl.u32 %v241, 16
      %v596 = vrot.slane %v594, 4
      %v597 = vshll.u32 %v241, 16
      %v599 = vrot.slane %v597, 5
      %v600 = vor.u32 %v596, %v599
      %v601 = vrot.slane %v600, 4
      %v603 = vshll.u32 %v242, 16
      %v605 = vrot.slane %v603, 5
      %v606 = vsel %vm256, %v601, %v605
      %v607 = vshrl.u32 %v242, 16
      %v609 = vrot.slane %v607, 4
      %v610 = vor.u32 %v609, %v605
      %v611 = vrot.slane %v610, 4
      %v613 = vshll.u32 %v243, 16
      %v615 = vrot.slane %v613, 5
      %v616 = vsel %vm256, %v611, %v615
      %v618 = vshrl.u32 %v244, 16
      %v620 = vrot.slane %v618, 4
      %v621 = vshll.u32 %v244, 16
      %v623 = vrot.slane %v621, 5
      %v624 = vor.u32 %v620, %v623
      %v625 = vrot.slane %v624, 4
      %v627 = vshll.u32 %v245, 16
      %v629 = vrot.slane %v627, 5
      %v630 = vsel %vm256, %v625, %v629
      %v631 = vshrl.u32 %v245, 16
      %v633 = vrot.slane %v631, 4
      %v634 = vor.u32 %v633, %v629
      %v635 = vrot.slane %v634, 4
      %v637 = vshll.u32 %v246, 16
      %v639 = vrot.slane %v637, 5
      %v640 = vsel %vm256, %v635, %v639
      %s641 = scalar_lea.vmem %s1, 2
      %v642 = vld [vmem:[%s641] sm:$0x3]
      %v643 = vunpack.c.l.b16 %v270
      %v644 = vunpack.c.l.b16 %v280
      %v645 = vunpack.c.l.b16 %v294
      %v646 = vunpack.c.l.b16 %v304
      %v647 = vunpack.c.l.b16 %v318
      %v648 = vunpack.c.l.b16 %v328
      %v649 = vunpack.c.l.b16 %v342
      %v650 = vunpack.c.l.b16 %v352
      %v651 = vunpack.c.l.b16 %v366
      %v652 = vunpack.c.l.b16 %v376
      %v653 = vunpack.c.l.b16 %v390
      %v654 = vunpack.c.l.b16 %v400
      %v655 = vunpack.c.l.b16 %v414
      %v656 = vunpack.c.l.b16 %v424
      %v657 = vunpack.c.l.b16 %v438
      %v658 = vunpack.c.l.b16 %v448
      %v659 = vunpack.c.l.b16 %v462
      %v660 = vunpack.c.l.b16 %v472
      %v661 = vunpack.c.l.b16 %v486
      %v662 = vunpack.c.l.b16 %v496
      %v663 = vunpack.c.l.b16 %v510
      %v664 = vunpack.c.l.b16 %v520
      %v665 = vunpack.c.l.b16 %v534
      %v666 = vunpack.c.l.b16 %v544
      %v667 = vunpack.c.l.b16 %v558
      %v668 = vunpack.c.l.b16 %v568
      %v669 = vunpack.c.l.b16 %v582
      %v670 = vunpack.c.l.b16 %v592
      %v671 = vunpack.c.l.b16 %v606
      %v672 = vunpack.c.l.b16 %v616
      %v673 = vunpack.c.l.b16 %v630
      %v674 = vunpack.c.l.b16 %v640
      %v675 = vpack.c.b16 %v644, %v643
      %v676 = vpack.c.b16 %v646, %v645
      %v677 = vpack.c.b16 %v648, %v647
      %v678 = vpack.c.b16 %v650, %v649
      %v679 = vpack.c.b16 %v652, %v651
      %v680 = vpack.c.b16 %v654, %v653
      %v681 = vpack.c.b16 %v656, %v655
      %v682 = vpack.c.b16 %v658, %v657
      %v683 = vpack.c.b16 %v660, %v659
      %v684 = vpack.c.b16 %v662, %v661
      %v685 = vpack.c.b16 %v664, %v663
      %v686 = vpack.c.b16 %v666, %v665
      %v687 = vpack.c.b16 %v668, %v667
      %v688 = vpack.c.b16 %v670, %v669
      %v689 = vpack.c.b16 %v672, %v671
      %v690 = vpack.c.b16 %v674, %v673
      %vm691 = vcmask 31744
      %v693 = vsel %vm691, %v675, 0
      %v696 = vsel %vm691, %v676, 0
      %v699 = vsel %vm691, %v677, 0
      %v702 = vsel %vm691, %v678, 0
      %v705 = vsel %vm691, %v679, 0
      %v708 = vsel %vm691, %v680, 0
      %v711 = vsel %vm691, %v681, 0
      %v714 = vsel %vm691, %v682, 0
      %v717 = vsel %vm691, %v683, 0
      %v720 = vsel %vm691, %v684, 0
      %v723 = vsel %vm691, %v685, 0
      %v726 = vsel %vm691, %v686, 0
      %v729 = vsel %vm691, %v687, 0
      %v732 = vsel %vm691, %v688, 0
      %v735 = vsel %vm691, %v689, 0
      %v738 = vsel %vm691, %v690, 0
      %vm740 = vcmask 1041408
      %v742 = vsel %vm740, %v642, 0
      %744 = vmatprep.subr.bf16.mxu0 0
      %745 = vmatpush1.bf16.msra.mxu0 0
      %746 = vmatprep.subr.bf16.mxu0 0
      %747 = vmatpush1.bf16.msra.mxu0 0
      %748 = vmatprep.subr.bf16.mxu0 0
      %749 = vmatpush1.bf16.msra.mxu0 0
      %750 = vmatprep.subr.bf16.mxu0 0
      %751 = vmatpush1.bf16.msra.mxu0 0
      %752 = vmatprep.subr.bf16.mxu0 0
      %753 = vmatpush1.bf16.msra.mxu0 0
      %754 = vmatprep.subr.bf16.mxu0 0
      %755 = vmatpush1.bf16.msra.mxu0 0
      %756 = vmatprep.subr.bf16.mxu0 0
      %757 = vmatpush1.bf16.msra.mxu0 0
      %758 = vmatprep.subr.bf16.mxu0 0
      %759 = vmatpush1.bf16.msra.mxu0 %v742
      %760 = vmatprep.subr.bf16.mxu0 0
      %761 = vmatpush2.bf16.msra.mxu0 0
      %762 = vmatprep.subr.bf16.mxu0 0
      %763 = vmatpush2.bf16.msra.mxu0 0
      %764 = vmatprep.subr.bf16.mxu0 0
      %765 = vmatpush2.bf16.msra.mxu0 0
      %766 = vmatprep.subr.bf16.mxu0 0
      %767 = vmatpush2.bf16.msra.mxu0 0
      %768 = vmatprep.subr.bf16.mxu0 0
      %769 = vmatpush2.bf16.msra.mxu0 0
      %770 = vmatprep.subr.bf16.mxu0 0
      %771 = vmatpush2.bf16.msra.mxu0 0
      %772 = vmatprep.subr.bf16.mxu0 0
      %773 = vmatpush2.bf16.msra.mxu0 0
      %774 = vmatprep.subr.bf16.mxu0 0
      %775 = vmatpush2.bf16.msra.mxu0 0
      %776 = vmatprep.mubr.bf16.mxu0 0
      %777 = vmatmul.mubr.bf16.gmra.mxu0 %v693
      %v778 = vpop.f32.mrf.mxu0
      %v779 = vadd.f32 0.0, %v778
      %v780 = vpop.f32.mrf.mxu0
      %v781 = vpop.f32.mrf.mxu0
      %v782 = vadd.f32 0.0, %v781
      %v783 = vpop.f32.mrf.mxu0
      %784 = vmatprep.mubr.bf16.mxu0 0
      %785 = vmatmul.mubr.bf16.gmra.mxu0 %v696
      %v786 = vpop.f32.mrf.mxu0
      %v787 = vadd.f32 0.0, %v786
      %v788 = vpop.f32.mrf.mxu0
      %v789 = vpop.f32.mrf.mxu0
      %v790 = vadd.f32 0.0, %v789
      %v791 = vpop.f32.mrf.mxu0
      %792 = vmatprep.mubr.bf16.mxu0 0
      %793 = vmatmul.mubr.bf16.gmra.mxu0 %v699
      %v794 = vpop.f32.mrf.mxu0
      %v795 = vadd.f32 0.0, %v794
      %v796 = vpop.f32.mrf.mxu0
      %v797 = vpop.f32.mrf.mxu0
      %v798 = vadd.f32 0.0, %v797
      %v799 = vpop.f32.mrf.mxu0
      %800 = vmatprep.mubr.bf16.mxu0 0
      %801 = vmatmul.mubr.bf16.gmra.mxu0 %v702
      %v802 = vpop.f32.mrf.mxu0
      %v803 = vadd.f32 0.0, %v802
      %v804 = vpop.f32.mrf.mxu0
      %v805 = vpop.f32.mrf.mxu0
      %v806 = vadd.f32 0.0, %v805
      %v807 = vpop.f32.mrf.mxu0
      %808 = vmatprep.mubr.bf16.mxu0 0
      %809 = vmatmul.mubr.bf16.gmra.mxu0 %v705
      %v810 = vpop.f32.mrf.mxu0
      %v811 = vadd.f32 0.0, %v810
      %v812 = vpop.f32.mrf.mxu0
      %v813 = vpop.f32.mrf.mxu0
      %v814 = vadd.f32 0.0, %v813
      %v815 = vpop.f32.mrf.mxu0
      %816 = vmatprep.mubr.bf16.mxu0 0
      %817 = vmatmul.mubr.bf16.gmra.mxu0 %v708
      %v818 = vpop.f32.mrf.mxu0
      %v819 = vadd.f32 0.0, %v818
      %v820 = vpop.f32.mrf.mxu0
      %v821 = vpop.f32.mrf.mxu0
      %v822 = vadd.f32 0.0, %v821
      %v823 = vpop.f32.mrf.mxu0
      %824 = vmatprep.mubr.bf16.mxu0 0
      %825 = vmatmul.mubr.bf16.gmra.mxu0 %v711
      %v826 = vpop.f32.mrf.mxu0
      %v827 = vadd.f32 0.0, %v826
      %v828 = vpop.f32.mrf.mxu0
      %v829 = vpop.f32.mrf.mxu0
      %v830 = vadd.f32 0.0, %v829
      %v831 = vpop.f32.mrf.mxu0
      %832 = vmatprep.mubr.bf16.mxu0 0
      %833 = vmatmul.mubr.bf16.gmra.mxu0 %v714
      %v834 = vpop.f32.mrf.mxu0
      %v835 = vadd.f32 0.0, %v834
      %v836 = vpop.f32.mrf.mxu0
      %v837 = vpop.f32.mrf.mxu0
      %v838 = vadd.f32 0.0, %v837
      %v839 = vpop.f32.mrf.mxu0
      %840 = vmatprep.mubr.bf16.mxu0 0
      %841 = vmatmul.mubr.bf16.gmra.mxu0 %v717
      %v842 = vpop.f32.mrf.mxu0
      %v843 = vadd.f32 0.0, %v842
      %v844 = vpop.f32.mrf.mxu0
      %v845 = vpop.f32.mrf.mxu0
      %v846 = vadd.f32 0.0, %v845
      %v847 = vpop.f32.mrf.mxu0
      %848 = vmatprep.mubr.bf16.mxu0 0
      %849 = vmatmul.mubr.bf16.gmra.mxu0 %v720
      %v850 = vpop.f32.mrf.mxu0
      %v851 = vadd.f32 0.0, %v850
      %v852 = vpop.f32.mrf.mxu0
      %v853 = vpop.f32.mrf.mxu0
      %v854 = vadd.f32 0.0, %v853
      %v855 = vpop.f32.mrf.mxu0
      %856 = vmatprep.mubr.bf16.mxu0 0
      %857 = vmatmul.mubr.bf16.gmra.mxu0 %v723
      %v858 = vpop.f32.mrf.mxu0
      %v859 = vadd.f32 0.0, %v858
      %v860 = vpop.f32.mrf.mxu0
      %v861 = vpop.f32.mrf.mxu0
      %v862 = vadd.f32 0.0, %v861
      %v863 = vpop.f32.mrf.mxu0
      %864 = vmatprep.mubr.bf16.mxu0 0
      %865 = vmatmul.mubr.bf16.gmra.mxu0 %v726
      %v866 = vpop.f32.mrf.mxu0
      %v867 = vadd.f32 0.0, %v866
      %v868 = vpop.f32.mrf.mxu0
      %v869 = vpop.f32.mrf.mxu0
      %v870 = vadd.f32 0.0, %v869
      %v871 = vpop.f32.mrf.mxu0
      %872 = vmatprep.mubr.bf16.mxu0 0
      %873 = vmatmul.mubr.bf16.gmra.mxu0 %v729
      %v874 = vpop.f32.mrf.mxu0
      %v875 = vadd.f32 0.0, %v874
      %v876 = vpop.f32.mrf.mxu0
      %v877 = vpop.f32.mrf.mxu0
      %v878 = vadd.f32 0.0, %v877
      %v879 = vpop.f32.mrf.mxu0
      %880 = vmatprep.mubr.bf16.mxu0 0
      %881 = vmatmul.mubr.bf16.gmra.mxu0 %v732
      %v882 = vpop.f32.mrf.mxu0
      %v883 = vadd.f32 0.0, %v882
      %v884 = vpop.f32.mrf.mxu0
      %v885 = vpop.f32.mrf.mxu0
      %v886 = vadd.f32 0.0, %v885
      %v887 = vpop.f32.mrf.mxu0
      %888 = vmatprep.mubr.bf16.mxu0 0
      %889 = vmatmul.mubr.bf16.gmra.mxu0 %v735
      %v890 = vpop.f32.mrf.mxu0
      %v891 = vadd.f32 0.0, %v890
      %v892 = vpop.f32.mrf.mxu0
      %v893 = vpop.f32.mrf.mxu0
      %v894 = vadd.f32 0.0, %v893
      %v895 = vpop.f32.mrf.mxu0
      %896 = vmatprep.mubr.bf16.mxu0 0
      %897 = vmatmul.mubr.bf16.gmra.mxu0 %v738
      %v898 = vpop.f32.mrf.mxu0
      %v899 = vadd.f32 0.0, %v898
      %v900 = vpop.f32.mrf.mxu0
      %v901 = vpop.f32.mrf.mxu0
      %v902 = vadd.f32 0.0, %v901
      %v903 = vpop.f32.mrf.mxu0
      %904 = vdwg.mxu0
      %v937 = vunpack.c.l.b16 %v199
      %v938 = vunpack.c.l.b16 %v200
      %v939 = vunpack.c.l.b16 %v202
      %v940 = vunpack.c.l.b16 %v203
      %v941 = vunpack.c.l.b16 %v205
      %v942 = vunpack.c.l.b16 %v206
      %v943 = vunpack.c.l.b16 %v208
      %v944 = vunpack.c.l.b16 %v209
      %v945 = vunpack.c.l.b16 %v211
      %v946 = vunpack.c.l.b16 %v212
      %v947 = vunpack.c.l.b16 %v214
      %v948 = vunpack.c.l.b16 %v215
      %v949 = vunpack.c.l.b16 %v217
      %v950 = vunpack.c.l.b16 %v218
      %v951 = vunpack.c.l.b16 %v220
      %v952 = vunpack.c.l.b16 %v221
      %v953 = vunpack.c.l.b16 %v223
      %v954 = vunpack.c.l.b16 %v224
      %v955 = vunpack.c.l.b16 %v226
      %v956 = vunpack.c.l.b16 %v227
      %v957 = vunpack.c.l.b16 %v229
      %v958 = vunpack.c.l.b16 %v230
      %v959 = vunpack.c.l.b16 %v232
      %v960 = vunpack.c.l.b16 %v233
      %v961 = vunpack.c.l.b16 %v235
      %v962 = vunpack.c.l.b16 %v236
      %v963 = vunpack.c.l.b16 %v238
      %v964 = vunpack.c.l.b16 %v239
      %v965 = vunpack.c.l.b16 %v241
      %v966 = vunpack.c.l.b16 %v242
      %v967 = vunpack.c.l.b16 %v244
      %v968 = vunpack.c.l.b16 %v245
      %v969 = vpack.c.b16 %v938, %v937
      %v970 = vpack.c.b16 %v940, %v939
      %v971 = vpack.c.b16 %v942, %v941
      %v972 = vpack.c.b16 %v944, %v943
      %v973 = vpack.c.b16 %v946, %v945
      %v974 = vpack.c.b16 %v948, %v947
      %v975 = vpack.c.b16 %v950, %v949
      %v976 = vpack.c.b16 %v952, %v951
      %v977 = vpack.c.b16 %v954, %v953
      %v978 = vpack.c.b16 %v956, %v955
      %v979 = vpack.c.b16 %v958, %v957
      %v980 = vpack.c.b16 %v960, %v959
      %v981 = vpack.c.b16 %v962, %v961
      %v982 = vpack.c.b16 %v964, %v963
      %v983 = vpack.c.b16 %v966, %v965
      %v984 = vpack.c.b16 %v968, %v967
      %v986 = vsel %vm691, %v969, 0
      %v989 = vsel %vm691, %v970, 0
      %v992 = vsel %vm691, %v971, 0
      %v995 = vsel %vm691, %v972, 0
      %v998 = vsel %vm691, %v973, 0
      %v1001 = vsel %vm691, %v974, 0
      %v1004 = vsel %vm691, %v975, 0
      %v1007 = vsel %vm691, %v976, 0
      %v1010 = vsel %vm691, %v977, 0
      %v1013 = vsel %vm691, %v978, 0
      %v1016 = vsel %vm691, %v979, 0
      %v1019 = vsel %vm691, %v980, 0
      %v1022 = vsel %vm691, %v981, 0
      %v1025 = vsel %vm691, %v982, 0
      %v1028 = vsel %vm691, %v983, 0
      %v1031 = vsel %vm691, %v984, 0
      %v1034 = vsel %vm740, %v253, 0
      %1036 = vmatprep.subr.bf16.mxu0 0
      %1037 = vmatpush1.bf16.msra.mxu0 0
      %1038 = vmatprep.subr.bf16.mxu0 0
      %1039 = vmatpush1.bf16.msra.mxu0 0
      %1040 = vmatprep.subr.bf16.mxu0 0
      %1041 = vmatpush1.bf16.msra.mxu0 0
      %1042 = vmatprep.subr.bf16.mxu0 0
      %1043 = vmatpush1.bf16.msra.mxu0 0
      %1044 = vmatprep.subr.bf16.mxu0 0
      %1045 = vmatpush1.bf16.msra.mxu0 0
      %1046 = vmatprep.subr.bf16.mxu0 0
      %1047 = vmatpush1.bf16.msra.mxu0 0
      %1048 = vmatprep.subr.bf16.mxu0 0
      %1049 = vmatpush1.bf16.msra.mxu0 0
      %1050 = vmatprep.subr.bf16.mxu0 0
      %1051 = vmatpush1.bf16.msra.mxu0 %v1034
      %1052 = vmatprep.subr.bf16.mxu0 0
      %1053 = vmatpush2.bf16.msra.mxu0 0
      %1054 = vmatprep.subr.bf16.mxu0 0
      %1055 = vmatpush2.bf16.msra.mxu0 0
      %1056 = vmatprep.subr.bf16.mxu0 0
      %1057 = vmatpush2.bf16.msra.mxu0 0
      %1058 = vmatprep.subr.bf16.mxu0 0
      %1059 = vmatpush2.bf16.msra.mxu0 0
      %1060 = vmatprep.subr.bf16.mxu0 0
      %1061 = vmatpush2.bf16.msra.mxu0 0
      %1062 = vmatprep.subr.bf16.mxu0 0
      %1063 = vmatpush2.bf16.msra.mxu0 0
      %1064 = vmatprep.subr.bf16.mxu0 0
      %1065 = vmatpush2.bf16.msra.mxu0 0
      %1066 = vmatprep.subr.bf16.mxu0 0
      %1067 = vmatpush2.bf16.msra.mxu0 0
      %1068 = vmatprep.mubr.bf16.mxu0 0
      %1069 = vmatmul.mubr.bf16.gmra.mxu0 %v986
      %v1070 = vpop.f32.mrf.mxu0
      %v1071 = vadd.f32 %v779, %v1070
      %v1072 = vpop.f32.mrf.mxu0
      %v1073 = vpop.f32.mrf.mxu0
      %v1074 = vadd.f32 %v782, %v1073
      %v1075 = vpop.f32.mrf.mxu0
      %1076 = vmatprep.mubr.bf16.mxu0 0
      %1077 = vmatmul.mubr.bf16.gmra.mxu0 %v989
      %v1078 = vpop.f32.mrf.mxu0
      %v1079 = vadd.f32 %v787, %v1078
      %v1080 = vpop.f32.mrf.mxu0
      %v1081 = vpop.f32.mrf.mxu0
      %v1082 = vadd.f32 %v790, %v1081
      %v1083 = vpop.f32.mrf.mxu0
      %1084 = vmatprep.mubr.bf16.mxu0 0
      %1085 = vmatmul.mubr.bf16.gmra.mxu0 %v992
      %v1086 = vpop.f32.mrf.mxu0
      %v1087 = vadd.f32 %v795, %v1086
      %v1088 = vpop.f32.mrf.mxu0
      %v1089 = vpop.f32.mrf.mxu0
      %v1090 = vadd.f32 %v798, %v1089
      %v1091 = vpop.f32.mrf.mxu0
      %1092 = vmatprep.mubr.bf16.mxu0 0
      %1093 = vmatmul.mubr.bf16.gmra.mxu0 %v995
      %v1094 = vpop.f32.mrf.mxu0
      %v1095 = vadd.f32 %v803, %v1094
      %v1096 = vpop.f32.mrf.mxu0
      %v1097 = vpop.f32.mrf.mxu0
      %v1098 = vadd.f32 %v806, %v1097
      %v1099 = vpop.f32.mrf.mxu0
      %1100 = vmatprep.mubr.bf16.mxu0 0
      %1101 = vmatmul.mubr.bf16.gmra.mxu0 %v998
      %v1102 = vpop.f32.mrf.mxu0
      %v1103 = vadd.f32 %v811, %v1102
      %v1104 = vpop.f32.mrf.mxu0
      %v1105 = vpop.f32.mrf.mxu0
      %v1106 = vadd.f32 %v814, %v1105
      %v1107 = vpop.f32.mrf.mxu0
      %1108 = vmatprep.mubr.bf16.mxu0 0
      %1109 = vmatmul.mubr.bf16.gmra.mxu0 %v1001
      %v1110 = vpop.f32.mrf.mxu0
      %v1111 = vadd.f32 %v819, %v1110
      %v1112 = vpop.f32.mrf.mxu0
      %v1113 = vpop.f32.mrf.mxu0
      %v1114 = vadd.f32 %v822, %v1113
      %v1115 = vpop.f32.mrf.mxu0
      %1116 = vmatprep.mubr.bf16.mxu0 0
      %1117 = vmatmul.mubr.bf16.gmra.mxu0 %v1004
      %v1118 = vpop.f32.mrf.mxu0
      %v1119 = vadd.f32 %v827, %v1118
      %v1120 = vpop.f32.mrf.mxu0
      %v1121 = vpop.f32.mrf.mxu0
      %v1122 = vadd.f32 %v830, %v1121
      %v1123 = vpop.f32.mrf.mxu0
      %1124 = vmatprep.mubr.bf16.mxu0 0
      %1125 = vmatmul.mubr.bf16.gmra.mxu0 %v1007
      %v1126 = vpop.f32.mrf.mxu0
      %v1127 = vadd.f32 %v835, %v1126
      %v1128 = vpop.f32.mrf.mxu0
      %v1129 = vpop.f32.mrf.mxu0
      %v1130 = vadd.f32 %v838, %v1129
      %v1131 = vpop.f32.mrf.mxu0
      %1132 = vmatprep.mubr.bf16.mxu0 0
      %1133 = vmatmul.mubr.bf16.gmra.mxu0 %v1010
      %v1134 = vpop.f32.mrf.mxu0
      %v1135 = vadd.f32 %v843, %v1134
      %v1136 = vpop.f32.mrf.mxu0
      %v1137 = vpop.f32.mrf.mxu0
      %v1138 = vadd.f32 %v846, %v1137
      %v1139 = vpop.f32.mrf.mxu0
      %1140 = vmatprep.mubr.bf16.mxu0 0
      %1141 = vmatmul.mubr.bf16.gmra.mxu0 %v1013
      %v1142 = vpop.f32.mrf.mxu0
      %v1143 = vadd.f32 %v851, %v1142
      %v1144 = vpop.f32.mrf.mxu0
      %v1145 = vpop.f32.mrf.mxu0
      %v1146 = vadd.f32 %v854, %v1145
      %v1147 = vpop.f32.mrf.mxu0
      %1148 = vmatprep.mubr.bf16.mxu0 0
      %1149 = vmatmul.mubr.bf16.gmra.mxu0 %v1016
      %v1150 = vpop.f32.mrf.mxu0
      %v1151 = vadd.f32 %v859, %v1150
      %v1152 = vpop.f32.mrf.mxu0
      %v1153 = vpop.f32.mrf.mxu0
      %v1154 = vadd.f32 %v862, %v1153
      %v1155 = vpop.f32.mrf.mxu0
      %1156 = vmatprep.mubr.bf16.mxu0 0
      %1157 = vmatmul.mubr.bf16.gmra.mxu0 %v1019
      %v1158 = vpop.f32.mrf.mxu0
      %v1159 = vadd.f32 %v867, %v1158
      %v1160 = vpop.f32.mrf.mxu0
      %v1161 = vpop.f32.mrf.mxu0
      %v1162 = vadd.f32 %v870, %v1161
      %v1163 = vpop.f32.mrf.mxu0
      %1164 = vmatprep.mubr.bf16.mxu0 0
      %1165 = vmatmul.mubr.bf16.gmra.mxu0 %v1022
      %v1166 = vpop.f32.mrf.mxu0
      %v1167 = vadd.f32 %v875, %v1166
      %v1168 = vpop.f32.mrf.mxu0
      %v1169 = vpop.f32.mrf.mxu0
      %v1170 = vadd.f32 %v878, %v1169
      %v1171 = vpop.f32.mrf.mxu0
      %1172 = vmatprep.mubr.bf16.mxu0 0
      %1173 = vmatmul.mubr.bf16.gmra.mxu0 %v1025
      %v1174 = vpop.f32.mrf.mxu0
      %v1175 = vadd.f32 %v883, %v1174
      %v1176 = vpop.f32.mrf.mxu0
      %v1177 = vpop.f32.mrf.mxu0
      %v1178 = vadd.f32 %v886, %v1177
      %v1179 = vpop.f32.mrf.mxu0
      %1180 = vmatprep.mubr.bf16.mxu0 0
      %1181 = vmatmul.mubr.bf16.gmra.mxu0 %v1028
      %v1182 = vpop.f32.mrf.mxu0
      %v1183 = vadd.f32 %v891, %v1182
      %v1184 = vpop.f32.mrf.mxu0
      %v1185 = vpop.f32.mrf.mxu0
      %v1186 = vadd.f32 %v894, %v1185
      %v1187 = vpop.f32.mrf.mxu0
      %1188 = vmatprep.mubr.bf16.mxu0 0
      %1189 = vmatmul.mubr.bf16.gmra.mxu0 %v1031
      %v1190 = vpop.f32.mrf.mxu0
      %v1191 = vadd.f32 %v899, %v1190
      %v1192 = vpop.f32.mrf.mxu0
      %v1193 = vpop.f32.mrf.mxu0
      %v1194 = vadd.f32 %v902, %v1193
      %v1195 = vpop.f32.mrf.mxu0
      %1196 = vdwg.mxu0
      %vm1213 = vcmask 1042432
      %vm1214 = vcmask 1046532
      %vm1215 = vmor %vm1213, %vm1214
      %v1216 = vrot.slane %v199, 5
      %v1217 = vrot.slane %v1216, 4
      %v1218 = vrot.slane %v200, 5
      %v1219 = vsel %vm1215, %v1217, %v1218
      %v1220 = vrot.slane %v1218, 4
      %v1221 = vrot.slane %v201, 5
      %v1222 = vsel %vm1215, %v1220, %v1221
      %v1223 = vrot.slane %v202, 5
      %v1224 = vrot.slane %v1223, 4
      %v1225 = vrot.slane %v203, 5
      %v1226 = vsel %vm1215, %v1224, %v1225
      %v1227 = vrot.slane %v1225, 4
      %v1228 = vrot.slane %v204, 5
      %v1229 = vsel %vm1215, %v1227, %v1228
      %v1230 = vrot.slane %v205, 5
      %v1231 = vrot.slane %v1230, 4
      %v1232 = vrot.slane %v206, 5
      %v1233 = vsel %vm1215, %v1231, %v1232
      %v1234 = vrot.slane %v1232, 4
      %v1235 = vrot.slane %v207, 5
      %v1236 = vsel %vm1215, %v1234, %v1235
      %v1237 = vrot.slane %v208, 5
      %v1238 = vrot.slane %v1237, 4
      %v1239 = vrot.slane %v209, 5
      %v1240 = vsel %vm1215, %v1238, %v1239
      %v1241 = vrot.slane %v1239, 4
      %v1242 = vrot.slane %v210, 5
      %v1243 = vsel %vm1215, %v1241, %v1242
      %v1244 = vrot.slane %v211, 5
      %v1245 = vrot.slane %v1244, 4
      %v1246 = vrot.slane %v212, 5
      %v1247 = vsel %vm1215, %v1245, %v1246
      %v1248 = vrot.slane %v1246, 4
      %v1249 = vrot.slane %v213, 5
      %v1250 = vsel %vm1215, %v1248, %v1249
      %v1251 = vrot.slane %v214, 5
      %v1252 = vrot.slane %v1251, 4
      %v1253 = vrot.slane %v215, 5
      %v1254 = vsel %vm1215, %v1252, %v1253
      %v1255 = vrot.slane %v1253, 4
      %v1256 = vrot.slane %v216, 5
      %v1257 = vsel %vm1215, %v1255, %v1256
      %v1258 = vrot.slane %v217, 5
      %v1259 = vrot.slane %v1258, 4
      %v1260 = vrot.slane %v218, 5
      %v1261 = vsel %vm1215, %v1259, %v1260
      %v1262 = vrot.slane %v1260, 4
      %v1263 = vrot.slane %v219, 5
      %v1264 = vsel %vm1215, %v1262, %v1263
      %v1265 = vrot.slane %v220, 5
      %v1266 = vrot.slane %v1265, 4
      %v1267 = vrot.slane %v221, 5
      %v1268 = vsel %vm1215, %v1266, %v1267
      %v1269 = vrot.slane %v1267, 4
      %v1270 = vrot.slane %v222, 5
      %v1271 = vsel %vm1215, %v1269, %v1270
      %v1272 = vrot.slane %v223, 5
      %v1273 = vrot.slane %v1272, 4
      %v1274 = vrot.slane %v224, 5
      %v1275 = vsel %vm1215, %v1273, %v1274
      %v1276 = vrot.slane %v1274, 4
      %v1277 = vrot.slane %v225, 5
      %v1278 = vsel %vm1215, %v1276, %v1277
      %v1279 = vrot.slane %v226, 5
      %v1280 = vrot.slane %v1279, 4
      %v1281 = vrot.slane %v227, 5
      %v1282 = vsel %vm1215, %v1280, %v1281
      %v1283 = vrot.slane %v1281, 4
      %v1284 = vrot.slane %v228, 5
      %v1285 = vsel %vm1215, %v1283, %v1284
      %v1286 = vrot.slane %v229, 5
      %v1287 = vrot.slane %v1286, 4
      %v1288 = vrot.slane %v230, 5
      %v1289 = vsel %vm1215, %v1287, %v1288
      %v1290 = vrot.slane %v1288, 4
      %v1291 = vrot.slane %v231, 5
      %v1292 = vsel %vm1215, %v1290, %v1291
      %v1293 = vrot.slane %v232, 5
      %v1294 = vrot.slane %v1293, 4
      %v1295 = vrot.slane %v233, 5
      %v1296 = vsel %vm1215, %v1294, %v1295
      %v1297 = vrot.slane %v1295, 4
      %v1298 = vrot.slane %v234, 5
      %v1299 = vsel %vm1215, %v1297, %v1298
      %v1300 = vrot.slane %v235, 5
      %v1301 = vrot.slane %v1300, 4
      %v1302 = vrot.slane %v236, 5
      %v1303 = vsel %vm1215, %v1301, %v1302
      %v1304 = vrot.slane %v1302, 4
      %v1305 = vrot.slane %v237, 5
      %v1306 = vsel %vm1215, %v1304, %v1305
      %v1307 = vrot.slane %v238, 5
      %v1308 = vrot.slane %v1307, 4
      %v1309 = vrot.slane %v239, 5
      %v1310 = vsel %vm1215, %v1308, %v1309
      %v1311 = vrot.slane %v1309, 4
      %v1312 = vrot.slane %v240, 5
      %v1313 = vsel %vm1215, %v1311, %v1312
      %v1314 = vrot.slane %v241, 5
      %v1315 = vrot.slane %v1314, 4
      %v1316 = vrot.slane %v242, 5
      %v1317 = vsel %vm1215, %v1315, %v1316
      %v1318 = vrot.slane %v1316, 4
      %v1319 = vrot.slane %v243, 5
      %v1320 = vsel %vm1215, %v1318, %v1319
      %v1321 = vrot.slane %v244, 5
      %v1322 = vrot.slane %v1321, 4
      %v1323 = vrot.slane %v245, 5
      %v1324 = vsel %vm1215, %v1322, %v1323
      %v1325 = vrot.slane %v1323, 4
      %v1326 = vrot.slane %v246, 5
      %v1327 = vsel %vm1215, %v1325, %v1326
      %s1328 = scalar_lea.vmem %s1, 4
      %v1329 = vld [vmem:[%s1328] sm:$0x3]
      %v1330 = vunpack.c.l.b16 %v1219
      %v1331 = vunpack.c.l.b16 %v1222
      %v1332 = vunpack.c.l.b16 %v1226
      %v1333 = vunpack.c.l.b16 %v1229
      %v1334 = vunpack.c.l.b16 %v1233
      %v1335 = vunpack.c.l.b16 %v1236
      %v1336 = vunpack.c.l.b16 %v1240
      %v1337 = vunpack.c.l.b16 %v1243
      %v1338 = vunpack.c.l.b16 %v1247
      %v1339 = vunpack.c.l.b16 %v1250
      %v1340 = vunpack.c.l.b16 %v1254
      %v1341 = vunpack.c.l.b16 %v1257
      %v1342 = vunpack.c.l.b16 %v1261
      %v1343 = vunpack.c.l.b16 %v1264
      %v1344 = vunpack.c.l.b16 %v1268
      %v1345 = vunpack.c.l.b16 %v1271
      %v1346 = vunpack.c.l.b16 %v1275
      %v1347 = vunpack.c.l.b16 %v1278
      %v1348 = vunpack.c.l.b16 %v1282
      %v1349 = vunpack.c.l.b16 %v1285
      %v1350 = vunpack.c.l.b16 %v1289
      %v1351 = vunpack.c.l.b16 %v1292
      %v1352 = vunpack.c.l.b16 %v1296
      %v1353 = vunpack.c.l.b16 %v1299
      %v1354 = vunpack.c.l.b16 %v1303
      %v1355 = vunpack.c.l.b16 %v1306
      %v1356 = vunpack.c.l.b16 %v1310
      %v1357 = vunpack.c.l.b16 %v1313
      %v1358 = vunpack.c.l.b16 %v1317
      %v1359 = vunpack.c.l.b16 %v1320
      %v1360 = vunpack.c.l.b16 %v1324
      %v1361 = vunpack.c.l.b16 %v1327
      %v1362 = vpack.c.b16 %v1331, %v1330
      %v1363 = vpack.c.b16 %v1333, %v1332
      %v1364 = vpack.c.b16 %v1335, %v1334
      %v1365 = vpack.c.b16 %v1337, %v1336
      %v1366 = vpack.c.b16 %v1339, %v1338
      %v1367 = vpack.c.b16 %v1341, %v1340
      %v1368 = vpack.c.b16 %v1343, %v1342
      %v1369 = vpack.c.b16 %v1345, %v1344
      %v1370 = vpack.c.b16 %v1347, %v1346
      %v1371 = vpack.c.b16 %v1349, %v1348
      %v1372 = vpack.c.b16 %v1351, %v1350
      %v1373 = vpack.c.b16 %v1353, %v1352
      %v1374 = vpack.c.b16 %v1355, %v1354
      %v1375 = vpack.c.b16 %v1357, %v1356
      %v1376 = vpack.c.b16 %v1359, %v1358
      %v1377 = vpack.c.b16 %v1361, %v1360
      %v1379 = vsel %vm691, %v1362, 0
      %v1382 = vsel %vm691, %v1363, 0
      %v1385 = vsel %vm691, %v1364, 0
      %v1388 = vsel %vm691, %v1365, 0
      %v1391 = vsel %vm691, %v1366, 0
      %v1394 = vsel %vm691, %v1367, 0
      %v1397 = vsel %vm691, %v1368, 0
      %v1400 = vsel %vm691, %v1369, 0
      %v1403 = vsel %vm691, %v1370, 0
      %v1406 = vsel %vm691, %v1371, 0
      %v1409 = vsel %vm691, %v1372, 0
      %v1412 = vsel %vm691, %v1373, 0
      %v1415 = vsel %vm691, %v1374, 0
      %v1418 = vsel %vm691, %v1375, 0
      %v1421 = vsel %vm691, %v1376, 0
      %v1424 = vsel %vm691, %v1377, 0
      %v1427 = vsel %vm740, %v1329, 0
      %1429 = vmatprep.subr.bf16.mxu0 0
      %1430 = vmatpush1.bf16.msra.mxu0 0
      %1431 = vmatprep.subr.bf16.mxu0 0
      %1432 = vmatpush1.bf16.msra.mxu0 0
      %1433 = vmatprep.subr.bf16.mxu0 0
      %1434 = vmatpush1.bf16.msra.mxu0 0
      %1435 = vmatprep.subr.bf16.mxu0 0
      %1436 = vmatpush1.bf16.msra.mxu0 0
      %1437 = vmatprep.subr.bf16.mxu0 0
      %1438 = vmatpush1.bf16.msra.mxu0 0
      %1439 = vmatprep.subr.bf16.mxu0 0
      %1440 = vmatpush1.bf16.msra.mxu0 0
      %1441 = vmatprep.subr.bf16.mxu0 0
      %1442 = vmatpush1.bf16.msra.mxu0 0
      %1443 = vmatprep.subr.bf16.mxu0 0
      %1444 = vmatpush1.bf16.msra.mxu0 %v1427
      %1445 = vmatprep.subr.bf16.mxu0 0
      %1446 = vmatpush2.bf16.msra.mxu0 0
      %1447 = vmatprep.subr.bf16.mxu0 0
      %1448 = vmatpush2.bf16.msra.mxu0 0
      %1449 = vmatprep.subr.bf16.mxu0 0
      %1450 = vmatpush2.bf16.msra.mxu0 0
      %1451 = vmatprep.subr.bf16.mxu0 0
      %1452 = vmatpush2.bf16.msra.mxu0 0
      %1453 = vmatprep.subr.bf16.mxu0 0
      %1454 = vmatpush2.bf16.msra.mxu0 0
      %1455 = vmatprep.subr.bf16.mxu0 0
      %1456 = vmatpush2.bf16.msra.mxu0 0
      %1457 = vmatprep.subr.bf16.mxu0 0
      %1458 = vmatpush2.bf16.msra.mxu0 0
      %1459 = vmatprep.subr.bf16.mxu0 0
      %1460 = vmatpush2.bf16.msra.mxu0 0
      %1461 = vmatprep.mubr.bf16.mxu0 0
      %1462 = vmatmul.mubr.bf16.gmra.mxu0 %v1379
      %v1463 = vpop.f32.mrf.mxu0
      %v1464 = vadd.f32 0.0, %v1463
      %v1465 = vpop.f32.mrf.mxu0
      %v1466 = vpop.f32.mrf.mxu0
      %v1467 = vadd.f32 0.0, %v1466
      %v1468 = vpop.f32.mrf.mxu0
      %1469 = vmatprep.mubr.bf16.mxu0 0
      %1470 = vmatmul.mubr.bf16.gmra.mxu0 %v1382
      %v1471 = vpop.f32.mrf.mxu0
      %v1472 = vadd.f32 0.0, %v1471
      %v1473 = vpop.f32.mrf.mxu0
      %v1474 = vpop.f32.mrf.mxu0
      %v1475 = vadd.f32 0.0, %v1474
      %v1476 = vpop.f32.mrf.mxu0
      %1477 = vmatprep.mubr.bf16.mxu0 0
      %1478 = vmatmul.mubr.bf16.gmra.mxu0 %v1385
      %v1479 = vpop.f32.mrf.mxu0
      %v1480 = vadd.f32 0.0, %v1479
      %v1481 = vpop.f32.mrf.mxu0
      %v1482 = vpop.f32.mrf.mxu0
      %v1483 = vadd.f32 0.0, %v1482
      %v1484 = vpop.f32.mrf.mxu0
      %1485 = vmatprep.mubr.bf16.mxu0 0
      %1486 = vmatmul.mubr.bf16.gmra.mxu0 %v1388
      %v1487 = vpop.f32.mrf.mxu0
      %v1488 = vadd.f32 0.0, %v1487
      %v1489 = vpop.f32.mrf.mxu0
      %v1490 = vpop.f32.mrf.mxu0
      %v1491 = vadd.f32 0.0, %v1490
      %v1492 = vpop.f32.mrf.mxu0
      %1493 = vmatprep.mubr.bf16.mxu0 0
      %1494 = vmatmul.mubr.bf16.gmra.mxu0 %v1391
      %v1495 = vpop.f32.mrf.mxu0
      %v1496 = vadd.f32 0.0, %v1495
      %v1497 = vpop.f32.mrf.mxu0
      %v1498 = vpop.f32.mrf.mxu0
      %v1499 = vadd.f32 0.0, %v1498
      %v1500 = vpop.f32.mrf.mxu0
      %1501 = vmatprep.mubr.bf16.mxu0 0
      %1502 = vmatmul.mubr.bf16.gmra.mxu0 %v1394
      %v1503 = vpop.f32.mrf.mxu0
      %v1504 = vadd.f32 0.0, %v1503
      %v1505 = vpop.f32.mrf.mxu0
      %v1506 = vpop.f32.mrf.mxu0
      %v1507 = vadd.f32 0.0, %v1506
      %v1508 = vpop.f32.mrf.mxu0
      %1509 = vmatprep.mubr.bf16.mxu0 0
      %1510 = vmatmul.mubr.bf16.gmra.mxu0 %v1397
      %v1511 = vpop.f32.mrf.mxu0
      %v1512 = vadd.f32 0.0, %v1511
      %v1513 = vpop.f32.mrf.mxu0
      %v1514 = vpop.f32.mrf.mxu0
      %v1515 = vadd.f32 0.0, %v1514
      %v1516 = vpop.f32.mrf.mxu0
      %1517 = vmatprep.mubr.bf16.mxu0 0
      %1518 = vmatmul.mubr.bf16.gmra.mxu0 %v1400
      %v1519 = vpop.f32.mrf.mxu0
      %v1520 = vadd.f32 0.0, %v1519
      %v1521 = vpop.f32.mrf.mxu0
      %v1522 = vpop.f32.mrf.mxu0
      %v1523 = vadd.f32 0.0, %v1522
      %v1524 = vpop.f32.mrf.mxu0
      %1525 = vmatprep.mubr.bf16.mxu0 0
      %1526 = vmatmul.mubr.bf16.gmra.mxu0 %v1403
      %v1527 = vpop.f32.mrf.mxu0
      %v1528 = vadd.f32 0.0, %v1527
      %v1529 = vpop.f32.mrf.mxu0
      %v1530 = vpop.f32.mrf.mxu0
      %v1531 = vadd.f32 0.0, %v1530
      %v1532 = vpop.f32.mrf.mxu0
      %1533 = vmatprep.mubr.bf16.mxu0 0
      %1534 = vmatmul.mubr.bf16.gmra.mxu0 %v1406
      %v1535 = vpop.f32.mrf.mxu0
      %v1536 = vadd.f32 0.0, %v1535
      %v1537 = vpop.f32.mrf.mxu0
      %v1538 = vpop.f32.mrf.mxu0
      %v1539 = vadd.f32 0.0, %v1538
      %v1540 = vpop.f32.mrf.mxu0
      %1541 = vmatprep.mubr.bf16.mxu0 0
      %1542 = vmatmul.mubr.bf16.gmra.mxu0 %v1409
      %v1543 = vpop.f32.mrf.mxu0
      %v1544 = vadd.f32 0.0, %v1543
      %v1545 = vpop.f32.mrf.mxu0
      %v1546 = vpop.f32.mrf.mxu0
      %v1547 = vadd.f32 0.0, %v1546
      %v1548 = vpop.f32.mrf.mxu0
      %1549 = vmatprep.mubr.bf16.mxu0 0
      %1550 = vmatmul.mubr.bf16.gmra.mxu0 %v1412
      %v1551 = vpop.f32.mrf.mxu0
      %v1552 = vadd.f32 0.0, %v1551
      %v1553 = vpop.f32.mrf.mxu0
      %v1554 = vpop.f32.mrf.mxu0
      %v1555 = vadd.f32 0.0, %v1554
      %v1556 = vpop.f32.mrf.mxu0
      %1557 = vmatprep.mubr.bf16.mxu0 0
      %1558 = vmatmul.mubr.bf16.gmra.mxu0 %v1415
      %v1559 = vpop.f32.mrf.mxu0
      %v1560 = vadd.f32 0.0, %v1559
      %v1561 = vpop.f32.mrf.mxu0
      %v1562 = vpop.f32.mrf.mxu0
      %v1563 = vadd.f32 0.0, %v1562
      %v1564 = vpop.f32.mrf.mxu0
      %1565 = vmatprep.mubr.bf16.mxu0 0
      %1566 = vmatmul.mubr.bf16.gmra.mxu0 %v1418
      %v1567 = vpop.f32.mrf.mxu0
      %v1568 = vadd.f32 0.0, %v1567
      %v1569 = vpop.f32.mrf.mxu0
      %v1570 = vpop.f32.mrf.mxu0
      %v1571 = vadd.f32 0.0, %v1570
      %v1572 = vpop.f32.mrf.mxu0
      %1573 = vmatprep.mubr.bf16.mxu0 0
      %1574 = vmatmul.mubr.bf16.gmra.mxu0 %v1421
      %v1575 = vpop.f32.mrf.mxu0
      %v1576 = vadd.f32 0.0, %v1575
      %v1577 = vpop.f32.mrf.mxu0
      %v1578 = vpop.f32.mrf.mxu0
      %v1579 = vadd.f32 0.0, %v1578
      %v1580 = vpop.f32.mrf.mxu0
      %1581 = vmatprep.mubr.bf16.mxu0 0
      %1582 = vmatmul.mubr.bf16.gmra.mxu0 %v1424
      %v1583 = vpop.f32.mrf.mxu0
      %v1584 = vadd.f32 0.0, %v1583
      %v1585 = vpop.f32.mrf.mxu0
      %v1586 = vpop.f32.mrf.mxu0
      %v1587 = vadd.f32 0.0, %v1586
      %v1588 = vpop.f32.mrf.mxu0
      %1589 = vdwg.mxu0
      %v1590 = vadd.f32 %v1071, %v1464
      %v1591 = vadd.f32 %v1074, %v1467
      %v1592 = vadd.f32 %v1079, %v1472
      %v1593 = vadd.f32 %v1082, %v1475
      %v1594 = vadd.f32 %v1087, %v1480
      %v1595 = vadd.f32 %v1090, %v1483
      %v1596 = vadd.f32 %v1095, %v1488
      %v1597 = vadd.f32 %v1098, %v1491
      %v1598 = vadd.f32 %v1103, %v1496
      %v1599 = vadd.f32 %v1106, %v1499
      %v1600 = vadd.f32 %v1111, %v1504
      %v1601 = vadd.f32 %v1114, %v1507
      %v1602 = vadd.f32 %v1119, %v1512
      %v1603 = vadd.f32 %v1122, %v1515
      %v1604 = vadd.f32 %v1127, %v1520
      %v1605 = vadd.f32 %v1130, %v1523
      %v1606 = vadd.f32 %v1135, %v1528
      %v1607 = vadd.f32 %v1138, %v1531
      %v1608 = vadd.f32 %v1143, %v1536
      %v1609 = vadd.f32 %v1146, %v1539
      %v1610 = vadd.f32 %v1151, %v1544
      %v1611 = vadd.f32 %v1154, %v1547
      %v1612 = vadd.f32 %v1159, %v1552
      %v1613 = vadd.f32 %v1162, %v1555
      %v1614 = vadd.f32 %v1167, %v1560
      %v1615 = vadd.f32 %v1170, %v1563
      %v1616 = vadd.f32 %v1175, %v1568
      %v1617 = vadd.f32 %v1178, %v1571
      %v1618 = vadd.f32 %v1183, %v1576
      %v1619 = vadd.f32 %v1186, %v1579
      %v1620 = vadd.f32 %v1191, %v1584
      %v1621 = vadd.f32 %v1194, %v1587
      %s1622 = scalar_lea.vmem %s1, 6
      %v1623 = vld [vmem:[%s1622] sm:$0x3]
      %v1626 = vunpack.c.l.b16 %v247
      %v1627 = vunpack.c.l.b16 %v248
      %v1628 = vpack.c.b16 %v1627, %v1626
      %v1630 = vsel %vm691, %v1628, 0
      %v1633 = vsel %vm740, %v1623, 0
      %1635 = vmatprep.subr.bf16.mxu0 0
      %1636 = vmatpush1.bf16.msra.mxu0 0
      %1637 = vmatprep.subr.bf16.mxu0 0
      %1638 = vmatpush1.bf16.msra.mxu0 0
      %1639 = vmatprep.subr.bf16.mxu0 0
      %1640 = vmatpush1.bf16.msra.mxu0 0
      %1641 = vmatprep.subr.bf16.mxu0 0
      %1642 = vmatpush1.bf16.msra.mxu0 0
      %1643 = vmatprep.subr.bf16.mxu0 0
      %1644 = vmatpush1.bf16.msra.mxu0 0
      %1645 = vmatprep.subr.bf16.mxu0 0
      %1646 = vmatpush1.bf16.msra.mxu0 0
      %1647 = vmatprep.subr.bf16.mxu0 0
      %1648 = vmatpush1.bf16.msra.mxu0 0
      %1649 = vmatprep.subr.bf16.mxu0 0
      %1650 = vmatpush1.bf16.msra.mxu0 %v1633
      %1651 = vmatprep.subr.bf16.mxu0 0
      %1652 = vmatpush2.bf16.msra.mxu0 0
      %1653 = vmatprep.subr.bf16.mxu0 0
      %1654 = vmatpush2.bf16.msra.mxu0 0
      %1655 = vmatprep.subr.bf16.mxu0 0
      %1656 = vmatpush2.bf16.msra.mxu0 0
      %1657 = vmatprep.subr.bf16.mxu0 0
      %1658 = vmatpush2.bf16.msra.mxu0 0
      %1659 = vmatprep.subr.bf16.mxu0 0
      %1660 = vmatpush2.bf16.msra.mxu0 0
      %1661 = vmatprep.subr.bf16.mxu0 0
      %1662 = vmatpush2.bf16.msra.mxu0 0
      %1663 = vmatprep.subr.bf16.mxu0 0
      %1664 = vmatpush2.bf16.msra.mxu0 0
      %1665 = vmatprep.subr.bf16.mxu0 0
      %1666 = vmatpush2.bf16.msra.mxu0 0
      %1667 = vmatprep.mubr.bf16.mxu0 0
      %1668 = vmatmul.mubr.bf16.gmra.mxu0 %v989
      %v1669 = vpop.f32.mrf.mxu0
      %v1670 = vadd.f32 0.0, %v1669
      %v1671 = vpop.f32.mrf.mxu0
      %v1672 = vpop.f32.mrf.mxu0
      %v1673 = vadd.f32 0.0, %v1672
      %v1674 = vpop.f32.mrf.mxu0
      %1675 = vmatprep.mubr.bf16.mxu0 0
      %1676 = vmatmul.mubr.bf16.gmra.mxu0 %v992
      %v1677 = vpop.f32.mrf.mxu0
      %v1678 = vadd.f32 0.0, %v1677
      %v1679 = vpop.f32.mrf.mxu0
      %v1680 = vpop.f32.mrf.mxu0
      %v1681 = vadd.f32 0.0, %v1680
      %v1682 = vpop.f32.mrf.mxu0
      %1683 = vmatprep.mubr.bf16.mxu0 0
      %1684 = vmatmul.mubr.bf16.gmra.mxu0 %v995
      %v1685 = vpop.f32.mrf.mxu0
      %v1686 = vadd.f32 0.0, %v1685
      %v1687 = vpop.f32.mrf.mxu0
      %v1688 = vpop.f32.mrf.mxu0
      %v1689 = vadd.f32 0.0, %v1688
      %v1690 = vpop.f32.mrf.mxu0
      %1691 = vmatprep.mubr.bf16.mxu0 0
      %1692 = vmatmul.mubr.bf16.gmra.mxu0 %v998
      %v1693 = vpop.f32.mrf.mxu0
      %v1694 = vadd.f32 0.0, %v1693
      %v1695 = vpop.f32.mrf.mxu0
      %v1696 = vpop.f32.mrf.mxu0
      %v1697 = vadd.f32 0.0, %v1696
      %v1698 = vpop.f32.mrf.mxu0
      %1699 = vmatprep.mubr.bf16.mxu0 0
      %1700 = vmatmul.mubr.bf16.gmra.mxu0 %v1001
      %v1701 = vpop.f32.mrf.mxu0
      %v1702 = vadd.f32 0.0, %v1701
      %v1703 = vpop.f32.mrf.mxu0
      %v1704 = vpop.f32.mrf.mxu0
      %v1705 = vadd.f32 0.0, %v1704
      %v1706 = vpop.f32.mrf.mxu0
      %1707 = vmatprep.mubr.bf16.mxu0 0
      %1708 = vmatmul.mubr.bf16.gmra.mxu0 %v1004
      %v1709 = vpop.f32.mrf.mxu0
      %v1710 = vadd.f32 0.0, %v1709
      %v1711 = vpop.f32.mrf.mxu0
      %v1712 = vpop.f32.mrf.mxu0
      %v1713 = vadd.f32 0.0, %v1712
      %v1714 = vpop.f32.mrf.mxu0
      %1715 = vmatprep.mubr.bf16.mxu0 0
      %1716 = vmatmul.mubr.bf16.gmra.mxu0 %v1007
      %v1717 = vpop.f32.mrf.mxu0
      %v1718 = vadd.f32 0.0, %v1717
      %v1719 = vpop.f32.mrf.mxu0
      %v1720 = vpop.f32.mrf.mxu0
      %v1721 = vadd.f32 0.0, %v1720
      %v1722 = vpop.f32.mrf.mxu0
      %1723 = vmatprep.mubr.bf16.mxu0 0
      %1724 = vmatmul.mubr.bf16.gmra.mxu0 %v1010
      %v1725 = vpop.f32.mrf.mxu0
      %v1726 = vadd.f32 0.0, %v1725
      %v1727 = vpop.f32.mrf.mxu0
      %v1728 = vpop.f32.mrf.mxu0
      %v1729 = vadd.f32 0.0, %v1728
      %v1730 = vpop.f32.mrf.mxu0
      %1731 = vmatprep.mubr.bf16.mxu0 0
      %1732 = vmatmul.mubr.bf16.gmra.mxu0 %v1013
      %v1733 = vpop.f32.mrf.mxu0
      %v1734 = vadd.f32 0.0, %v1733
      %v1735 = vpop.f32.mrf.mxu0
      %v1736 = vpop.f32.mrf.mxu0
      %v1737 = vadd.f32 0.0, %v1736
      %v1738 = vpop.f32.mrf.mxu0
      %1739 = vmatprep.mubr.bf16.mxu0 0
      %1740 = vmatmul.mubr.bf16.gmra.mxu0 %v1016
      %v1741 = vpop.f32.mrf.mxu0
      %v1742 = vadd.f32 0.0, %v1741
      %v1743 = vpop.f32.mrf.mxu0
      %v1744 = vpop.f32.mrf.mxu0
      %v1745 = vadd.f32 0.0, %v1744
      %v1746 = vpop.f32.mrf.mxu0
      %1747 = vmatprep.mubr.bf16.mxu0 0
      %1748 = vmatmul.mubr.bf16.gmra.mxu0 %v1019
      %v1749 = vpop.f32.mrf.mxu0
      %v1750 = vadd.f32 0.0, %v1749
      %v1751 = vpop.f32.mrf.mxu0
      %v1752 = vpop.f32.mrf.mxu0
      %v1753 = vadd.f32 0.0, %v1752
      %v1754 = vpop.f32.mrf.mxu0
      %1755 = vmatprep.mubr.bf16.mxu0 0
      %1756 = vmatmul.mubr.bf16.gmra.mxu0 %v1022
      %v1757 = vpop.f32.mrf.mxu0
      %v1758 = vadd.f32 0.0, %v1757
      %v1759 = vpop.f32.mrf.mxu0
      %v1760 = vpop.f32.mrf.mxu0
      %v1761 = vadd.f32 0.0, %v1760
      %v1762 = vpop.f32.mrf.mxu0
      %1763 = vmatprep.mubr.bf16.mxu0 0
      %1764 = vmatmul.mubr.bf16.gmra.mxu0 %v1025
      %v1765 = vpop.f32.mrf.mxu0
      %v1766 = vadd.f32 0.0, %v1765
      %v1767 = vpop.f32.mrf.mxu0
      %v1768 = vpop.f32.mrf.mxu0
      %v1769 = vadd.f32 0.0, %v1768
      %v1770 = vpop.f32.mrf.mxu0
      %1771 = vmatprep.mubr.bf16.mxu0 0
      %1772 = vmatmul.mubr.bf16.gmra.mxu0 %v1028
      %v1773 = vpop.f32.mrf.mxu0
      %v1774 = vadd.f32 0.0, %v1773
      %v1775 = vpop.f32.mrf.mxu0
      %v1776 = vpop.f32.mrf.mxu0
      %v1777 = vadd.f32 0.0, %v1776
      %v1778 = vpop.f32.mrf.mxu0
      %1779 = vmatprep.mubr.bf16.mxu0 0
      %1780 = vmatmul.mubr.bf16.gmra.mxu0 %v1031
      %v1781 = vpop.f32.mrf.mxu0
      %v1782 = vadd.f32 0.0, %v1781
      %v1783 = vpop.f32.mrf.mxu0
      %v1784 = vpop.f32.mrf.mxu0
      %v1785 = vadd.f32 0.0, %v1784
      %v1786 = vpop.f32.mrf.mxu0
      %1787 = vmatprep.mubr.bf16.mxu0 0
      %1788 = vmatmul.mubr.bf16.gmra.mxu0 %v1630
      %v1789 = vpop.f32.mrf.mxu0
      %v1790 = vadd.f32 0.0, %v1789
      %v1791 = vpop.f32.mrf.mxu0
      %v1792 = vpop.f32.mrf.mxu0
      %v1793 = vadd.f32 0.0, %v1792
      %v1794 = vpop.f32.mrf.mxu0
      %1795 = vdwg.mxu0
      %v1796 = vadd.f32 %v1590, %v1670
      %v1797 = vadd.f32 %v1591, %v1673
      %v1798 = vadd.f32 %v1592, %v1678
      %v1799 = vadd.f32 %v1593, %v1681
      %v1800 = vadd.f32 %v1594, %v1686
      %v1801 = vadd.f32 %v1595, %v1689
      %v1802 = vadd.f32 %v1596, %v1694
      %v1803 = vadd.f32 %v1597, %v1697
      %v1804 = vadd.f32 %v1598, %v1702
      %v1805 = vadd.f32 %v1599, %v1705
      %v1806 = vadd.f32 %v1600, %v1710
      %v1807 = vadd.f32 %v1601, %v1713
      %v1808 = vadd.f32 %v1602, %v1718
      %v1809 = vadd.f32 %v1603, %v1721
      %v1810 = vadd.f32 %v1604, %v1726
      %v1811 = vadd.f32 %v1605, %v1729
      %v1812 = vadd.f32 %v1606, %v1734
      %v1813 = vadd.f32 %v1607, %v1737
      %v1814 = vadd.f32 %v1608, %v1742
      %v1815 = vadd.f32 %v1609, %v1745
      %v1816 = vadd.f32 %v1610, %v1750
      %v1817 = vadd.f32 %v1611, %v1753
      %v1818 = vadd.f32 %v1612, %v1758
      %v1819 = vadd.f32 %v1613, %v1761
      %v1820 = vadd.f32 %v1614, %v1766
      %v1821 = vadd.f32 %v1615, %v1769
      %v1822 = vadd.f32 %v1616, %v1774
      %v1823 = vadd.f32 %v1617, %v1777
      %v1824 = vadd.f32 %v1618, %v1782
      %v1825 = vadd.f32 %v1619, %v1785
      %v1826 = vadd.f32 %v1620, %v1790
      %v1827 = vadd.f32 %v1621, %v1793
      %v1829 = vshrl.u32 %v247, 16
      %v1831 = vrot.slane %v1829, 4
      %v1832 = vshll.u32 %v247, 16
      %v1834 = vrot.slane %v1832, 5
      %v1835 = vor.u32 %v1831, %v1834
      %v1836 = vrot.slane %v1835, 4
      %v1838 = vshll.u32 %v248, 16
      %v1840 = vrot.slane %v1838, 5
      %v1841 = vsel %vm256, %v1836, %v1840
      %v1842 = vshrl.u32 %v248, 16
      %v1844 = vrot.slane %v1842, 4
      %v1845 = vor.u32 %v1844, %v1840
      %v1846 = vrot.slane %v1845, 4
      %v1848 = vshll.u32 %v249, 16
      %v1850 = vrot.slane %v1848, 5
      %v1851 = vsel %vm256, %v1846, %v1850
      %s1852 = scalar_lea.vmem %s1, 8
      %v1853 = vld [vmem:[%s1852] sm:$0x3]
      %v1854 = vunpack.c.l.b16 %v1841
      %v1855 = vunpack.c.l.b16 %v1851
      %v1856 = vpack.c.b16 %v1855, %v1854
      %v1858 = vsel %vm691, %v1856, 0
      %v1861 = vsel %vm740, %v1853, 0
      %1863 = vmatprep.subr.bf16.mxu0 0
      %1864 = vmatpush1.bf16.msra.mxu0 0
      %1865 = vmatprep.subr.bf16.mxu0 0
      %1866 = vmatpush1.bf16.msra.mxu0 0
      %1867 = vmatprep.subr.bf16.mxu0 0
      %1868 = vmatpush1.bf16.msra.mxu0 0
      %1869 = vmatprep.subr.bf16.mxu0 0
      %1870 = vmatpush1.bf16.msra.mxu0 0
      %1871 = vmatprep.subr.bf16.mxu0 0
      %1872 = vmatpush1.bf16.msra.mxu0 0
      %1873 = vmatprep.subr.bf16.mxu0 0
      %1874 = vmatpush1.bf16.msra.mxu0 0
      %1875 = vmatprep.subr.bf16.mxu0 0
      %1876 = vmatpush1.bf16.msra.mxu0 0
      %1877 = vmatprep.subr.bf16.mxu0 0
      %1878 = vmatpush1.bf16.msra.mxu0 %v1861
      %1879 = vmatprep.subr.bf16.mxu0 0
      %1880 = vmatpush2.bf16.msra.mxu0 0
      %1881 = vmatprep.subr.bf16.mxu0 0
      %1882 = vmatpush2.bf16.msra.mxu0 0
      %1883 = vmatprep.subr.bf16.mxu0 0
      %1884 = vmatpush2.bf16.msra.mxu0 0
      %1885 = vmatprep.subr.bf16.mxu0 0
      %1886 = vmatpush2.bf16.msra.mxu0 0
      %1887 = vmatprep.subr.bf16.mxu0 0
      %1888 = vmatpush2.bf16.msra.mxu0 0
      %1889 = vmatprep.subr.bf16.mxu0 0
      %1890 = vmatpush2.bf16.msra.mxu0 0
      %1891 = vmatprep.subr.bf16.mxu0 0
      %1892 = vmatpush2.bf16.msra.mxu0 0
      %1893 = vmatprep.subr.bf16.mxu0 0
      %1894 = vmatpush2.bf16.msra.mxu0 0
      %1895 = vmatprep.mubr.bf16.mxu0 0
      %1896 = vmatmul.mubr.bf16.gmra.mxu0 %v696
      %v1897 = vpop.f32.mrf.mxu0
      %v1898 = vadd.f32 0.0, %v1897
      %v1899 = vpop.f32.mrf.mxu0
      %v1900 = vpop.f32.mrf.mxu0
      %v1901 = vadd.f32 0.0, %v1900
      %v1902 = vpop.f32.mrf.mxu0
      %1903 = vmatprep.mubr.bf16.mxu0 0
      %1904 = vmatmul.mubr.bf16.gmra.mxu0 %v699
      %v1905 = vpop.f32.mrf.mxu0
      %v1906 = vadd.f32 0.0, %v1905
      %v1907 = vpop.f32.mrf.mxu0
      %v1908 = vpop.f32.mrf.mxu0
      %v1909 = vadd.f32 0.0, %v1908
      %v1910 = vpop.f32.mrf.mxu0
      %1911 = vmatprep.mubr.bf16.mxu0 0
      %1912 = vmatmul.mubr.bf16.gmra.mxu0 %v702
      %v1913 = vpop.f32.mrf.mxu0
      %v1914 = vadd.f32 0.0, %v1913
      %v1915 = vpop.f32.mrf.mxu0
      %v1916 = vpop.f32.mrf.mxu0
      %v1917 = vadd.f32 0.0, %v1916
      %v1918 = vpop.f32.mrf.mxu0
      %1919 = vmatprep.mubr.bf16.mxu0 0
      %1920 = vmatmul.mubr.bf16.gmra.mxu0 %v705
      %v1921 = vpop.f32.mrf.mxu0
      %v1922 = vadd.f32 0.0, %v1921
      %v1923 = vpop.f32.mrf.mxu0
      %v1924 = vpop.f32.mrf.mxu0
      %v1925 = vadd.f32 0.0, %v1924
      %v1926 = vpop.f32.mrf.mxu0
      %1927 = vmatprep.mubr.bf16.mxu0 0
      %1928 = vmatmul.mubr.bf16.gmra.mxu0 %v708
      %v1929 = vpop.f32.mrf.mxu0
      %v1930 = vadd.f32 0.0, %v1929
      %v1931 = vpop.f32.mrf.mxu0
      %v1932 = vpop.f32.mrf.mxu0
      %v1933 = vadd.f32 0.0, %v1932
      %v1934 = vpop.f32.mrf.mxu0
      %1935 = vmatprep.mubr.bf16.mxu0 0
      %1936 = vmatmul.mubr.bf16.gmra.mxu0 %v711
      %v1937 = vpop.f32.mrf.mxu0
      %v1938 = vadd.f32 0.0, %v1937
      %v1939 = vpop.f32.mrf.mxu0
      %v1940 = vpop.f32.mrf.mxu0
      %v1941 = vadd.f32 0.0, %v1940
      %v1942 = vpop.f32.mrf.mxu0
      %1943 = vmatprep.mubr.bf16.mxu0 0
      %1944 = vmatmul.mubr.bf16.gmra.mxu0 %v714
      %v1945 = vpop.f32.mrf.mxu0
      %v1946 = vadd.f32 0.0, %v1945
      %v1947 = vpop.f32.mrf.mxu0
      %v1948 = vpop.f32.mrf.mxu0
      %v1949 = vadd.f32 0.0, %v1948
      %v1950 = vpop.f32.mrf.mxu0
      %1951 = vmatprep.mubr.bf16.mxu0 0
      %1952 = vmatmul.mubr.bf16.gmra.mxu0 %v717
      %v1953 = vpop.f32.mrf.mxu0
      %v1954 = vadd.f32 0.0, %v1953
      %v1955 = vpop.f32.mrf.mxu0
      %v1956 = vpop.f32.mrf.mxu0
      %v1957 = vadd.f32 0.0, %v1956
      %v1958 = vpop.f32.mrf.mxu0
      %1959 = vmatprep.mubr.bf16.mxu0 0
      %1960 = vmatmul.mubr.bf16.gmra.mxu0 %v720
      %v1961 = vpop.f32.mrf.mxu0
      %v1962 = vadd.f32 0.0, %v1961
      %v1963 = vpop.f32.mrf.mxu0
      %v1964 = vpop.f32.mrf.mxu0
      %v1965 = vadd.f32 0.0, %v1964
      %v1966 = vpop.f32.mrf.mxu0
      %1967 = vmatprep.mubr.bf16.mxu0 0
      %1968 = vmatmul.mubr.bf16.gmra.mxu0 %v723
      %v1969 = vpop.f32.mrf.mxu0
      %v1970 = vadd.f32 0.0, %v1969
      %v1971 = vpop.f32.mrf.mxu0
      %v1972 = vpop.f32.mrf.mxu0
      %v1973 = vadd.f32 0.0, %v1972
      %v1974 = vpop.f32.mrf.mxu0
      %1975 = vmatprep.mubr.bf16.mxu0 0
      %1976 = vmatmul.mubr.bf16.gmra.mxu0 %v726
      %v1977 = vpop.f32.mrf.mxu0
      %v1978 = vadd.f32 0.0, %v1977
      %v1979 = vpop.f32.mrf.mxu0
      %v1980 = vpop.f32.mrf.mxu0
      %v1981 = vadd.f32 0.0, %v1980
      %v1982 = vpop.f32.mrf.mxu0
      %1983 = vmatprep.mubr.bf16.mxu0 0
      %1984 = vmatmul.mubr.bf16.gmra.mxu0 %v729
      %v1985 = vpop.f32.mrf.mxu0
      %v1986 = vadd.f32 0.0, %v1985
      %v1987 = vpop.f32.mrf.mxu0
      %v1988 = vpop.f32.mrf.mxu0
      %v1989 = vadd.f32 0.0, %v1988
      %v1990 = vpop.f32.mrf.mxu0
      %1991 = vmatprep.mubr.bf16.mxu0 0
      %1992 = vmatmul.mubr.bf16.gmra.mxu0 %v732
      %v1993 = vpop.f32.mrf.mxu0
      %v1994 = vadd.f32 0.0, %v1993
      %v1995 = vpop.f32.mrf.mxu0
      %v1996 = vpop.f32.mrf.mxu0
      %v1997 = vadd.f32 0.0, %v1996
      %v1998 = vpop.f32.mrf.mxu0
      %1999 = vmatprep.mubr.bf16.mxu0 0
      %2000 = vmatmul.mubr.bf16.gmra.mxu0 %v735
      %v2001 = vpop.f32.mrf.mxu0
      %v2002 = vadd.f32 0.0, %v2001
      %v2003 = vpop.f32.mrf.mxu0
      %v2004 = vpop.f32.mrf.mxu0
      %v2005 = vadd.f32 0.0, %v2004
      %v2006 = vpop.f32.mrf.mxu0
      %2007 = vmatprep.mubr.bf16.mxu0 0
      %2008 = vmatmul.mubr.bf16.gmra.mxu0 %v738
      %v2009 = vpop.f32.mrf.mxu0
      %v2010 = vadd.f32 0.0, %v2009
      %v2011 = vpop.f32.mrf.mxu0
      %v2012 = vpop.f32.mrf.mxu0
      %v2013 = vadd.f32 0.0, %v2012
      %v2014 = vpop.f32.mrf.mxu0
      %2015 = vmatprep.mubr.bf16.mxu0 0
      %2016 = vmatmul.mubr.bf16.gmra.mxu0 %v1858
      %v2017 = vpop.f32.mrf.mxu0
      %v2018 = vadd.f32 0.0, %v2017
      %v2019 = vpop.f32.mrf.mxu0
      %v2020 = vpop.f32.mrf.mxu0
      %v2021 = vadd.f32 0.0, %v2020
      %v2022 = vpop.f32.mrf.mxu0
      %2023 = vdwg.mxu0
      %v2024 = vadd.f32 %v1796, %v1898
      %v2025 = vadd.f32 %v1797, %v1901
      %v2026 = vadd.f32 %v1798, %v1906
      %v2027 = vadd.f32 %v1799, %v1909
      %v2028 = vadd.f32 %v1800, %v1914
      %v2029 = vadd.f32 %v1801, %v1917
      %v2030 = vadd.f32 %v1802, %v1922
      %v2031 = vadd.f32 %v1803, %v1925
      %v2032 = vadd.f32 %v1804, %v1930
      %v2033 = vadd.f32 %v1805, %v1933
      %v2034 = vadd.f32 %v1806, %v1938
      %v2035 = vadd.f32 %v1807, %v1941
      %v2036 = vadd.f32 %v1808, %v1946
      %v2037 = vadd.f32 %v1809, %v1949
      %v2038 = vadd.f32 %v1810, %v1954
      %v2039 = vadd.f32 %v1811, %v1957
      %v2040 = vadd.f32 %v1812, %v1962
      %v2041 = vadd.f32 %v1813, %v1965
      %v2042 = vadd.f32 %v1814, %v1970
      %v2043 = vadd.f32 %v1815, %v1973
      %v2044 = vadd.f32 %v1816, %v1978
      %v2045 = vadd.f32 %v1817, %v1981
      %v2046 = vadd.f32 %v1818, %v1986
      %v2047 = vadd.f32 %v1819, %v1989
      %v2048 = vadd.f32 %v1820, %v1994
      %v2049 = vadd.f32 %v1821, %v1997
      %v2050 = vadd.f32 %v1822, %v2002
      %v2051 = vadd.f32 %v1823, %v2005
      %v2052 = vadd.f32 %v1824, %v2010
      %v2053 = vadd.f32 %v1825, %v2013
      %v2054 = vadd.f32 %v1826, %v2018
      %v2055 = vadd.f32 %v1827, %v2021
      %v2057 = vrot.slane %v247, 5
      %v2058 = vrot.slane %v2057, 4
      %v2059 = vrot.slane %v248, 5
      %v2060 = vsel %vm1215, %v2058, %v2059
      %v2061 = vrot.slane %v2059, 4
      %v2062 = vrot.slane %v249, 5
      %v2063 = vsel %vm1215, %v2061, %v2062
      %s2064 = scalar_lea.vmem %s1, 10
      %v2065 = vld [vmem:[%s2064] sm:$0x3]
      %v2066 = vunpack.c.l.b16 %v2060
      %v2067 = vunpack.c.l.b16 %v2063
      %v2068 = vpack.c.b16 %v2067, %v2066
      %v2070 = vsel %vm691, %v2068, 0
      %v2073 = vsel %vm740, %v2065, 0
      %2075 = vmatprep.subr.bf16.mxu0 0
      %2076 = vmatpush1.bf16.msra.mxu0 0
      %2077 = vmatprep.subr.bf16.mxu0 0
      %2078 = vmatpush1.bf16.msra.mxu0 0
      %2079 = vmatprep.subr.bf16.mxu0 0
      %2080 = vmatpush1.bf16.msra.mxu0 0
      %2081 = vmatprep.subr.bf16.mxu0 0
      %2082 = vmatpush1.bf16.msra.mxu0 0
      %2083 = vmatprep.subr.bf16.mxu0 0
      %2084 = vmatpush1.bf16.msra.mxu0 0
      %2085 = vmatprep.subr.bf16.mxu0 0
      %2086 = vmatpush1.bf16.msra.mxu0 0
      %2087 = vmatprep.subr.bf16.mxu0 0
      %2088 = vmatpush1.bf16.msra.mxu0 0
      %2089 = vmatprep.subr.bf16.mxu0 0
      %2090 = vmatpush1.bf16.msra.mxu0 %v2073
      %2091 = vmatprep.subr.bf16.mxu0 0
      %2092 = vmatpush2.bf16.msra.mxu0 0
      %2093 = vmatprep.subr.bf16.mxu0 0
      %2094 = vmatpush2.bf16.msra.mxu0 0
      %2095 = vmatprep.subr.bf16.mxu0 0
      %2096 = vmatpush2.bf16.msra.mxu0 0
      %2097 = vmatprep.subr.bf16.mxu0 0
      %2098 = vmatpush2.bf16.msra.mxu0 0
      %2099 = vmatprep.subr.bf16.mxu0 0
      %2100 = vmatpush2.bf16.msra.mxu0 0
      %2101 = vmatprep.subr.bf16.mxu0 0
      %2102 = vmatpush2.bf16.msra.mxu0 0
      %2103 = vmatprep.subr.bf16.mxu0 0
      %2104 = vmatpush2.bf16.msra.mxu0 0
      %2105 = vmatprep.subr.bf16.mxu0 0
      %2106 = vmatpush2.bf16.msra.mxu0 0
      %2107 = vmatprep.mubr.bf16.mxu0 0
      %2108 = vmatmul.mubr.bf16.gmra.mxu0 %v1382
      %v2109 = vpop.f32.mrf.mxu0
      %v2110 = vadd.f32 0.0, %v2109
      %v2111 = vpop.f32.mrf.mxu0
      %v2112 = vpop.f32.mrf.mxu0
      %v2113 = vadd.f32 0.0, %v2112
      %v2114 = vpop.f32.mrf.mxu0
      %2115 = vmatprep.mubr.bf16.mxu0 0
      %2116 = vmatmul.mubr.bf16.gmra.mxu0 %v1385
      %v2117 = vpop.f32.mrf.mxu0
      %v2118 = vadd.f32 0.0, %v2117
      %v2119 = vpop.f32.mrf.mxu0
      %v2120 = vpop.f32.mrf.mxu0
      %v2121 = vadd.f32 0.0, %v2120
      %v2122 = vpop.f32.mrf.mxu0
      %2123 = vmatprep.mubr.bf16.mxu0 0
      %2124 = vmatmul.mubr.bf16.gmra.mxu0 %v1388
      %v2125 = vpop.f32.mrf.mxu0
      %v2126 = vadd.f32 0.0, %v2125
      %v2127 = vpop.f32.mrf.mxu0
      %v2128 = vpop.f32.mrf.mxu0
      %v2129 = vadd.f32 0.0, %v2128
      %v2130 = vpop.f32.mrf.mxu0
      %2131 = vmatprep.mubr.bf16.mxu0 0
      %2132 = vmatmul.mubr.bf16.gmra.mxu0 %v1391
      %v2133 = vpop.f32.mrf.mxu0
      %v2134 = vadd.f32 0.0, %v2133
      %v2135 = vpop.f32.mrf.mxu0
      %v2136 = vpop.f32.mrf.mxu0
      %v2137 = vadd.f32 0.0, %v2136
      %v2138 = vpop.f32.mrf.mxu0
      %2139 = vmatprep.mubr.bf16.mxu0 0
      %2140 = vmatmul.mubr.bf16.gmra.mxu0 %v1394
      %v2141 = vpop.f32.mrf.mxu0
      %v2142 = vadd.f32 0.0, %v2141
      %v2143 = vpop.f32.mrf.mxu0
      %v2144 = vpop.f32.mrf.mxu0
      %v2145 = vadd.f32 0.0, %v2144
      %v2146 = vpop.f32.mrf.mxu0
      %2147 = vmatprep.mubr.bf16.mxu0 0
      %2148 = vmatmul.mubr.bf16.gmra.mxu0 %v1397
      %v2149 = vpop.f32.mrf.mxu0
      %v2150 = vadd.f32 0.0, %v2149
      %v2151 = vpop.f32.mrf.mxu0
      %v2152 = vpop.f32.mrf.mxu0
      %v2153 = vadd.f32 0.0, %v2152
      %v2154 = vpop.f32.mrf.mxu0
      %2155 = vmatprep.mubr.bf16.mxu0 0
      %2156 = vmatmul.mubr.bf16.gmra.mxu0 %v1400
      %v2157 = vpop.f32.mrf.mxu0
      %v2158 = vadd.f32 0.0, %v2157
      %v2159 = vpop.f32.mrf.mxu0
      %v2160 = vpop.f32.mrf.mxu0
      %v2161 = vadd.f32 0.0, %v2160
      %v2162 = vpop.f32.mrf.mxu0
      %2163 = vmatprep.mubr.bf16.mxu0 0
      %2164 = vmatmul.mubr.bf16.gmra.mxu0 %v1403
      %v2165 = vpop.f32.mrf.mxu0
      %v2166 = vadd.f32 0.0, %v2165
      %v2167 = vpop.f32.mrf.mxu0
      %v2168 = vpop.f32.mrf.mxu0
      %v2169 = vadd.f32 0.0, %v2168
      %v2170 = vpop.f32.mrf.mxu0
      %2171 = vmatprep.mubr.bf16.mxu0 0
      %2172 = vmatmul.mubr.bf16.gmra.mxu0 %v1406
      %v2173 = vpop.f32.mrf.mxu0
      %v2174 = vadd.f32 0.0, %v2173
      %v2175 = vpop.f32.mrf.mxu0
      %v2176 = vpop.f32.mrf.mxu0
      %v2177 = vadd.f32 0.0, %v2176
      %v2178 = vpop.f32.mrf.mxu0
      %2179 = vmatprep.mubr.bf16.mxu0 0
      %2180 = vmatmul.mubr.bf16.gmra.mxu0 %v1409
      %v2181 = vpop.f32.mrf.mxu0
      %v2182 = vadd.f32 0.0, %v2181
      %v2183 = vpop.f32.mrf.mxu0
      %v2184 = vpop.f32.mrf.mxu0
      %v2185 = vadd.f32 0.0, %v2184
      %v2186 = vpop.f32.mrf.mxu0
      %2187 = vmatprep.mubr.bf16.mxu0 0
      %2188 = vmatmul.mubr.bf16.gmra.mxu0 %v1412
      %v2189 = vpop.f32.mrf.mxu0
      %v2190 = vadd.f32 0.0, %v2189
      %v2191 = vpop.f32.mrf.mxu0
      %v2192 = vpop.f32.mrf.mxu0
      %v2193 = vadd.f32 0.0, %v2192
      %v2194 = vpop.f32.mrf.mxu0
      %2195 = vmatprep.mubr.bf16.mxu0 0
      %2196 = vmatmul.mubr.bf16.gmra.mxu0 %v1415
      %v2197 = vpop.f32.mrf.mxu0
      %v2198 = vadd.f32 0.0, %v2197
      %v2199 = vpop.f32.mrf.mxu0
      %v2200 = vpop.f32.mrf.mxu0
      %v2201 = vadd.f32 0.0, %v2200
      %v2202 = vpop.f32.mrf.mxu0
      %2203 = vmatprep.mubr.bf16.mxu0 0
      %2204 = vmatmul.mubr.bf16.gmra.mxu0 %v1418
      %v2205 = vpop.f32.mrf.mxu0
      %v2206 = vadd.f32 0.0, %v2205
      %v2207 = vpop.f32.mrf.mxu0
      %v2208 = vpop.f32.mrf.mxu0
      %v2209 = vadd.f32 0.0, %v2208
      %v2210 = vpop.f32.mrf.mxu0
      %2211 = vmatprep.mubr.bf16.mxu0 0
      %2212 = vmatmul.mubr.bf16.gmra.mxu0 %v1421
      %v2213 = vpop.f32.mrf.mxu0
      %v2214 = vadd.f32 0.0, %v2213
      %v2215 = vpop.f32.mrf.mxu0
      %v2216 = vpop.f32.mrf.mxu0
      %v2217 = vadd.f32 0.0, %v2216
      %v2218 = vpop.f32.mrf.mxu0
      %2219 = vmatprep.mubr.bf16.mxu0 0
      %2220 = vmatmul.mubr.bf16.gmra.mxu0 %v1424
      %v2221 = vpop.f32.mrf.mxu0
      %v2222 = vadd.f32 0.0, %v2221
      %v2223 = vpop.f32.mrf.mxu0
      %v2224 = vpop.f32.mrf.mxu0
      %v2225 = vadd.f32 0.0, %v2224
      %v2226 = vpop.f32.mrf.mxu0
      %2227 = vmatprep.mubr.bf16.mxu0 0
      %2228 = vmatmul.mubr.bf16.gmra.mxu0 %v2070
      %v2229 = vpop.f32.mrf.mxu0
      %v2230 = vadd.f32 0.0, %v2229
      %v2231 = vpop.f32.mrf.mxu0
      %v2232 = vpop.f32.mrf.mxu0
      %v2233 = vadd.f32 0.0, %v2232
      %v2234 = vpop.f32.mrf.mxu0
      %2235 = vdwg.mxu0
      %v2236 = vadd.f32 %v2024, %v2110
      %v2237 = vadd.f32 %v2025, %v2113
      %v2238 = vadd.f32 %v2026, %v2118
      %v2239 = vadd.f32 %v2027, %v2121
      %v2240 = vadd.f32 %v2028, %v2126
      %v2241 = vadd.f32 %v2029, %v2129
      %v2242 = vadd.f32 %v2030, %v2134
      %v2243 = vadd.f32 %v2031, %v2137
      %v2244 = vadd.f32 %v2032, %v2142
      %v2245 = vadd.f32 %v2033, %v2145
      %v2246 = vadd.f32 %v2034, %v2150
      %v2247 = vadd.f32 %v2035, %v2153
      %v2248 = vadd.f32 %v2036, %v2158
      %v2249 = vadd.f32 %v2037, %v2161
      %v2250 = vadd.f32 %v2038, %v2166
      %v2251 = vadd.f32 %v2039, %v2169
      %v2252 = vadd.f32 %v2040, %v2174
      %v2253 = vadd.f32 %v2041, %v2177
      %v2254 = vadd.f32 %v2042, %v2182
      %v2255 = vadd.f32 %v2043, %v2185
      %v2256 = vadd.f32 %v2044, %v2190
      %v2257 = vadd.f32 %v2045, %v2193
      %v2258 = vadd.f32 %v2046, %v2198
      %v2259 = vadd.f32 %v2047, %v2201
      %v2260 = vadd.f32 %v2048, %v2206
      %v2261 = vadd.f32 %v2049, %v2209
      %v2262 = vadd.f32 %v2050, %v2214
      %v2263 = vadd.f32 %v2051, %v2217
      %v2264 = vadd.f32 %v2052, %v2222
      %v2265 = vadd.f32 %v2053, %v2225
      %v2266 = vadd.f32 %v2054, %v2230
      %v2267 = vadd.f32 %v2055, %v2233
      %s2268 = scalar_lea.vmem %s1, 12
      %v2269 = vld [vmem:[%s2268] sm:$0x3]
      %v2272 = vunpack.c.l.b16 %v250
      %v2273 = vunpack.c.l.b16 %v251
      %v2274 = vpack.c.b16 %v2273, %v2272
      %v2276 = vsel %vm691, %v2274, 0
      %v2279 = vsel %vm740, %v2269, 0
      %2281 = vmatprep.subr.bf16.mxu0 0
      %2282 = vmatpush1.bf16.msra.mxu0 0
      %2283 = vmatprep.subr.bf16.mxu0 0
      %2284 = vmatpush1.bf16.msra.mxu0 0
      %2285 = vmatprep.subr.bf16.mxu0 0
      %2286 = vmatpush1.bf16.msra.mxu0 0
      %2287 = vmatprep.subr.bf16.mxu0 0
      %2288 = vmatpush1.bf16.msra.mxu0 0
      %2289 = vmatprep.subr.bf16.mxu0 0
      %2290 = vmatpush1.bf16.msra.mxu0 0
      %2291 = vmatprep.subr.bf16.mxu0 0
      %2292 = vmatpush1.bf16.msra.mxu0 0
      %2293 = vmatprep.subr.bf16.mxu0 0
      %2294 = vmatpush1.bf16.msra.mxu0 0
      %2295 = vmatprep.subr.bf16.mxu0 0
      %2296 = vmatpush1.bf16.msra.mxu0 %v2279
      %2297 = vmatprep.subr.bf16.mxu0 0
      %2298 = vmatpush2.bf16.msra.mxu0 0
      %2299 = vmatprep.subr.bf16.mxu0 0
      %2300 = vmatpush2.bf16.msra.mxu0 0
      %2301 = vmatprep.subr.bf16.mxu0 0
      %2302 = vmatpush2.bf16.msra.mxu0 0
      %2303 = vmatprep.subr.bf16.mxu0 0
      %2304 = vmatpush2.bf16.msra.mxu0 0
      %2305 = vmatprep.subr.bf16.mxu0 0
      %2306 = vmatpush2.bf16.msra.mxu0 0
      %2307 = vmatprep.subr.bf16.mxu0 0
      %2308 = vmatpush2.bf16.msra.mxu0 0
      %2309 = vmatprep.subr.bf16.mxu0 0
      %2310 = vmatpush2.bf16.msra.mxu0 0
      %2311 = vmatprep.subr.bf16.mxu0 0
      %2312 = vmatpush2.bf16.msra.mxu0 0
      %2313 = vmatprep.mubr.bf16.mxu0 0
      %2314 = vmatmul.mubr.bf16.gmra.mxu0 %v992
      %v2315 = vpop.f32.mrf.mxu0
      %v2316 = vadd.f32 0.0, %v2315
      %v2317 = vpop.f32.mrf.mxu0
      %v2318 = vpop.f32.mrf.mxu0
      %v2319 = vadd.f32 0.0, %v2318
      %v2320 = vpop.f32.mrf.mxu0
      %2321 = vmatprep.mubr.bf16.mxu0 0
      %2322 = vmatmul.mubr.bf16.gmra.mxu0 %v995
      %v2323 = vpop.f32.mrf.mxu0
      %v2324 = vadd.f32 0.0, %v2323
      %v2325 = vpop.f32.mrf.mxu0
      %v2326 = vpop.f32.mrf.mxu0
      %v2327 = vadd.f32 0.0, %v2326
      %v2328 = vpop.f32.mrf.mxu0
      %2329 = vmatprep.mubr.bf16.mxu0 0
      %2330 = vmatmul.mubr.bf16.gmra.mxu0 %v998
      %v2331 = vpop.f32.mrf.mxu0
      %v2332 = vadd.f32 0.0, %v2331
      %v2333 = vpop.f32.mrf.mxu0
      %v2334 = vpop.f32.mrf.mxu0
      %v2335 = vadd.f32 0.0, %v2334
      %v2336 = vpop.f32.mrf.mxu0
      %2337 = vmatprep.mubr.bf16.mxu0 0
      %2338 = vmatmul.mubr.bf16.gmra.mxu0 %v1001
      %v2339 = vpop.f32.mrf.mxu0
      %v2340 = vadd.f32 0.0, %v2339
      %v2341 = vpop.f32.mrf.mxu0
      %v2342 = vpop.f32.mrf.mxu0
      %v2343 = vadd.f32 0.0, %v2342
      %v2344 = vpop.f32.mrf.mxu0
      %2345 = vmatprep.mubr.bf16.mxu0 0
      %2346 = vmatmul.mubr.bf16.gmra.mxu0 %v1004
      %v2347 = vpop.f32.mrf.mxu0
      %v2348 = vadd.f32 0.0, %v2347
      %v2349 = vpop.f32.mrf.mxu0
      %v2350 = vpop.f32.mrf.mxu0
      %v2351 = vadd.f32 0.0, %v2350
      %v2352 = vpop.f32.mrf.mxu0
      %2353 = vmatprep.mubr.bf16.mxu0 0
      %2354 = vmatmul.mubr.bf16.gmra.mxu0 %v1007
      %v2355 = vpop.f32.mrf.mxu0
      %v2356 = vadd.f32 0.0, %v2355
      %v2357 = vpop.f32.mrf.mxu0
      %v2358 = vpop.f32.mrf.mxu0
      %v2359 = vadd.f32 0.0, %v2358
      %v2360 = vpop.f32.mrf.mxu0
      %2361 = vmatprep.mubr.bf16.mxu0 0
      %2362 = vmatmul.mubr.bf16.gmra.mxu0 %v1010
      %v2363 = vpop.f32.mrf.mxu0
      %v2364 = vadd.f32 0.0, %v2363
      %v2365 = vpop.f32.mrf.mxu0
      %v2366 = vpop.f32.mrf.mxu0
      %v2367 = vadd.f32 0.0, %v2366
      %v2368 = vpop.f32.mrf.mxu0
      %2369 = vmatprep.mubr.bf16.mxu0 0
      %2370 = vmatmul.mubr.bf16.gmra.mxu0 %v1013
      %v2371 = vpop.f32.mrf.mxu0
      %v2372 = vadd.f32 0.0, %v2371
      %v2373 = vpop.f32.mrf.mxu0
      %v2374 = vpop.f32.mrf.mxu0
      %v2375 = vadd.f32 0.0, %v2374
      %v2376 = vpop.f32.mrf.mxu0
      %2377 = vmatprep.mubr.bf16.mxu0 0
      %2378 = vmatmul.mubr.bf16.gmra.mxu0 %v1016
      %v2379 = vpop.f32.mrf.mxu0
      %v2380 = vadd.f32 0.0, %v2379
      %v2381 = vpop.f32.mrf.mxu0
      %v2382 = vpop.f32.mrf.mxu0
      %v2383 = vadd.f32 0.0, %v2382
      %v2384 = vpop.f32.mrf.mxu0
      %2385 = vmatprep.mubr.bf16.mxu0 0
      %2386 = vmatmul.mubr.bf16.gmra.mxu0 %v1019
      %v2387 = vpop.f32.mrf.mxu0
      %v2388 = vadd.f32 0.0, %v2387
      %v2389 = vpop.f32.mrf.mxu0
      %v2390 = vpop.f32.mrf.mxu0
      %v2391 = vadd.f32 0.0, %v2390
      %v2392 = vpop.f32.mrf.mxu0
      %2393 = vmatprep.mubr.bf16.mxu0 0
      %2394 = vmatmul.mubr.bf16.gmra.mxu0 %v1022
      %v2395 = vpop.f32.mrf.mxu0
      %v2396 = vadd.f32 0.0, %v2395
      %v2397 = vpop.f32.mrf.mxu0
      %v2398 = vpop.f32.mrf.mxu0
      %v2399 = vadd.f32 0.0, %v2398
      %v2400 = vpop.f32.mrf.mxu0
      %2401 = vmatprep.mubr.bf16.mxu0 0
      %2402 = vmatmul.mubr.bf16.gmra.mxu0 %v1025
      %v2403 = vpop.f32.mrf.mxu0
      %v2404 = vadd.f32 0.0, %v2403
      %v2405 = vpop.f32.mrf.mxu0
      %v2406 = vpop.f32.mrf.mxu0
      %v2407 = vadd.f32 0.0, %v2406
      %v2408 = vpop.f32.mrf.mxu0
      %2409 = vmatprep.mubr.bf16.mxu0 0
      %2410 = vmatmul.mubr.bf16.gmra.mxu0 %v1028
      %v2411 = vpop.f32.mrf.mxu0
      %v2412 = vadd.f32 0.0, %v2411
      %v2413 = vpop.f32.mrf.mxu0
      %v2414 = vpop.f32.mrf.mxu0
      %v2415 = vadd.f32 0.0, %v2414
      %v2416 = vpop.f32.mrf.mxu0
      %2417 = vmatprep.mubr.bf16.mxu0 0
      %2418 = vmatmul.mubr.bf16.gmra.mxu0 %v1031
      %v2419 = vpop.f32.mrf.mxu0
      %v2420 = vadd.f32 0.0, %v2419
      %v2421 = vpop.f32.mrf.mxu0
      %v2422 = vpop.f32.mrf.mxu0
      %v2423 = vadd.f32 0.0, %v2422
      %v2424 = vpop.f32.mrf.mxu0
      %2425 = vmatprep.mubr.bf16.mxu0 0
      %2426 = vmatmul.mubr.bf16.gmra.mxu0 %v1630
      %v2427 = vpop.f32.mrf.mxu0
      %v2428 = vadd.f32 0.0, %v2427
      %v2429 = vpop.f32.mrf.mxu0
      %v2430 = vpop.f32.mrf.mxu0
      %v2431 = vadd.f32 0.0, %v2430
      %v2432 = vpop.f32.mrf.mxu0
      %2433 = vmatprep.mubr.bf16.mxu0 0
      %2434 = vmatmul.mubr.bf16.gmra.mxu0 %v2276
      %v2435 = vpop.f32.mrf.mxu0
      %v2436 = vadd.f32 0.0, %v2435
      %v2437 = vpop.f32.mrf.mxu0
      %v2438 = vpop.f32.mrf.mxu0
      %v2439 = vadd.f32 0.0, %v2438
      %v2440 = vpop.f32.mrf.mxu0
      %2441 = vdwg.mxu0
      %v2442 = vadd.f32 %v2236, %v2316
      %v2443 = vadd.f32 %v2237, %v2319
      %v2444 = vadd.f32 %v2238, %v2324
      %v2445 = vadd.f32 %v2239, %v2327
      %v2446 = vadd.f32 %v2240, %v2332
      %v2447 = vadd.f32 %v2241, %v2335
      %v2448 = vadd.f32 %v2242, %v2340
      %v2449 = vadd.f32 %v2243, %v2343
      %v2450 = vadd.f32 %v2244, %v2348
      %v2451 = vadd.f32 %v2245, %v2351
      %v2452 = vadd.f32 %v2246, %v2356
      %v2453 = vadd.f32 %v2247, %v2359
      %v2454 = vadd.f32 %v2248, %v2364
      %v2455 = vadd.f32 %v2249, %v2367
      %v2456 = vadd.f32 %v2250, %v2372
      %v2457 = vadd.f32 %v2251, %v2375
      %v2458 = vadd.f32 %v2252, %v2380
      %v2459 = vadd.f32 %v2253, %v2383
      %v2460 = vadd.f32 %v2254, %v2388
      %v2461 = vadd.f32 %v2255, %v2391
      %v2462 = vadd.f32 %v2256, %v2396
      %v2463 = vadd.f32 %v2257, %v2399
      %v2464 = vadd.f32 %v2258, %v2404
      %v2465 = vadd.f32 %v2259, %v2407
      %v2466 = vadd.f32 %v2260, %v2412
      %v2467 = vadd.f32 %v2261, %v2415
      %v2468 = vadd.f32 %v2262, %v2420
      %v2469 = vadd.f32 %v2263, %v2423
      %v2470 = vadd.f32 %v2264, %v2428
      %v2471 = vadd.f32 %v2265, %v2431
      %v2472 = vadd.f32 %v2266, %v2436
      %v2473 = vadd.f32 %v2267, %v2439
      %v2475 = vshrl.u32 %v250, 16
      %v2477 = vrot.slane %v2475, 4
      %v2478 = vshll.u32 %v250, 16
      %v2480 = vrot.slane %v2478, 5
      %v2481 = vor.u32 %v2477, %v2480
      %v2482 = vrot.slane %v2481, 4
      %v2484 = vshll.u32 %v251, 16
      %v2486 = vrot.slane %v2484, 5
      %v2487 = vsel %vm256, %v2482, %v2486
      %v2488 = vshrl.u32 %v251, 16
      %v2490 = vrot.slane %v2488, 4
      %v2491 = vor.u32 %v2490, %v2486
      %v2492 = vrot.slane %v2491, 4
      %v2494 = vshll.u32 %v252, 16
      %v2496 = vrot.slane %v2494, 5
      %v2497 = vsel %vm256, %v2492, %v2496
      %s2498 = scalar_lea.vmem %s1, 14
      %v2499 = vld [vmem:[%s2498] sm:$0x3]
      %v2500 = vunpack.c.l.b16 %v2487
      %v2501 = vunpack.c.l.b16 %v2497
      %v2502 = vpack.c.b16 %v2501, %v2500
      %v2504 = vsel %vm691, %v2502, 0
      %v2507 = vsel %vm740, %v2499, 0
      %2509 = vmatprep.subr.bf16.mxu0 0
      %2510 = vmatpush1.bf16.msra.mxu0 0
      %2511 = vmatprep.subr.bf16.mxu0 0
      %2512 = vmatpush1.bf16.msra.mxu0 0
      %2513 = vmatprep.subr.bf16.mxu0 0
      %2514 = vmatpush1.bf16.msra.mxu0 0
      %2515 = vmatprep.subr.bf16.mxu0 0
      %2516 = vmatpush1.bf16.msra.mxu0 0
      %2517 = vmatprep.subr.bf16.mxu0 0
      %2518 = vmatpush1.bf16.msra.mxu0 0
      %2519 = vmatprep.subr.bf16.mxu0 0
      %2520 = vmatpush1.bf16.msra.mxu0 0
      %2521 = vmatprep.subr.bf16.mxu0 0
      %2522 = vmatpush1.bf16.msra.mxu0 0
      %2523 = vmatprep.subr.bf16.mxu0 0
      %2524 = vmatpush1.bf16.msra.mxu0 %v2507
      %2525 = vmatprep.subr.bf16.mxu0 0
      %2526 = vmatpush2.bf16.msra.mxu0 0
      %2527 = vmatprep.subr.bf16.mxu0 0
      %2528 = vmatpush2.bf16.msra.mxu0 0
      %2529 = vmatprep.subr.bf16.mxu0 0
      %2530 = vmatpush2.bf16.msra.mxu0 0
      %2531 = vmatprep.subr.bf16.mxu0 0
      %2532 = vmatpush2.bf16.msra.mxu0 0
      %2533 = vmatprep.subr.bf16.mxu0 0
      %2534 = vmatpush2.bf16.msra.mxu0 0
      %2535 = vmatprep.subr.bf16.mxu0 0
      %2536 = vmatpush2.bf16.msra.mxu0 0
      %2537 = vmatprep.subr.bf16.mxu0 0
      %2538 = vmatpush2.bf16.msra.mxu0 0
      %2539 = vmatprep.subr.bf16.mxu0 0
      %2540 = vmatpush2.bf16.msra.mxu0 0
      %2541 = vmatprep.mubr.bf16.mxu0 0
      %2542 = vmatmul.mubr.bf16.gmra.mxu0 %v699
      %v2543 = vpop.f32.mrf.mxu0
      %v2544 = vadd.f32 0.0, %v2543
      %v2545 = vpop.f32.mrf.mxu0
      %v2546 = vpop.f32.mrf.mxu0
      %v2547 = vadd.f32 0.0, %v2546
      %v2548 = vpop.f32.mrf.mxu0
      %2549 = vmatprep.mubr.bf16.mxu0 0
      %2550 = vmatmul.mubr.bf16.gmra.mxu0 %v702
      %v2551 = vpop.f32.mrf.mxu0
      %v2552 = vadd.f32 0.0, %v2551
      %v2553 = vpop.f32.mrf.mxu0
      %v2554 = vpop.f32.mrf.mxu0
      %v2555 = vadd.f32 0.0, %v2554
      %v2556 = vpop.f32.mrf.mxu0
      %2557 = vmatprep.mubr.bf16.mxu0 0
      %2558 = vmatmul.mubr.bf16.gmra.mxu0 %v705
      %v2559 = vpop.f32.mrf.mxu0
      %v2560 = vadd.f32 0.0, %v2559
      %v2561 = vpop.f32.mrf.mxu0
      %v2562 = vpop.f32.mrf.mxu0
      %v2563 = vadd.f32 0.0, %v2562
      %v2564 = vpop.f32.mrf.mxu0
      %2565 = vmatprep.mubr.bf16.mxu0 0
      %2566 = vmatmul.mubr.bf16.gmra.mxu0 %v708
      %v2567 = vpop.f32.mrf.mxu0
      %v2568 = vadd.f32 0.0, %v2567
      %v2569 = vpop.f32.mrf.mxu0
      %v2570 = vpop.f32.mrf.mxu0
      %v2571 = vadd.f32 0.0, %v2570
      %v2572 = vpop.f32.mrf.mxu0
      %2573 = vmatprep.mubr.bf16.mxu0 0
      %2574 = vmatmul.mubr.bf16.gmra.mxu0 %v711
      %v2575 = vpop.f32.mrf.mxu0
      %v2576 = vadd.f32 0.0, %v2575
      %v2577 = vpop.f32.mrf.mxu0
      %v2578 = vpop.f32.mrf.mxu0
      %v2579 = vadd.f32 0.0, %v2578
      %v2580 = vpop.f32.mrf.mxu0
      %2581 = vmatprep.mubr.bf16.mxu0 0
      %2582 = vmatmul.mubr.bf16.gmra.mxu0 %v714
      %v2583 = vpop.f32.mrf.mxu0
      %v2584 = vadd.f32 0.0, %v2583
      %v2585 = vpop.f32.mrf.mxu0
      %v2586 = vpop.f32.mrf.mxu0
      %v2587 = vadd.f32 0.0, %v2586
      %v2588 = vpop.f32.mrf.mxu0
      %2589 = vmatprep.mubr.bf16.mxu0 0
      %2590 = vmatmul.mubr.bf16.gmra.mxu0 %v717
      %v2591 = vpop.f32.mrf.mxu0
      %v2592 = vadd.f32 0.0, %v2591
      %v2593 = vpop.f32.mrf.mxu0
      %v2594 = vpop.f32.mrf.mxu0
      %v2595 = vadd.f32 0.0, %v2594
      %v2596 = vpop.f32.mrf.mxu0
      %2597 = vmatprep.mubr.bf16.mxu0 0
      %2598 = vmatmul.mubr.bf16.gmra.mxu0 %v720
      %v2599 = vpop.f32.mrf.mxu0
      %v2600 = vadd.f32 0.0, %v2599
      %v2601 = vpop.f32.mrf.mxu0
      %v2602 = vpop.f32.mrf.mxu0
      %v2603 = vadd.f32 0.0, %v2602
      %v2604 = vpop.f32.mrf.mxu0
      %2605 = vmatprep.mubr.bf16.mxu0 0
      %2606 = vmatmul.mubr.bf16.gmra.mxu0 %v723
      %v2607 = vpop.f32.mrf.mxu0
      %v2608 = vadd.f32 0.0, %v2607
      %v2609 = vpop.f32.mrf.mxu0
      %v2610 = vpop.f32.mrf.mxu0
      %v2611 = vadd.f32 0.0, %v2610
      %v2612 = vpop.f32.mrf.mxu0
      %2613 = vmatprep.mubr.bf16.mxu0 0
      %2614 = vmatmul.mubr.bf16.gmra.mxu0 %v726
      %v2615 = vpop.f32.mrf.mxu0
      %v2616 = vadd.f32 0.0, %v2615
      %v2617 = vpop.f32.mrf.mxu0
      %v2618 = vpop.f32.mrf.mxu0
      %v2619 = vadd.f32 0.0, %v2618
      %v2620 = vpop.f32.mrf.mxu0
      %2621 = vmatprep.mubr.bf16.mxu0 0
      %2622 = vmatmul.mubr.bf16.gmra.mxu0 %v729
      %v2623 = vpop.f32.mrf.mxu0
      %v2624 = vadd.f32 0.0, %v2623
      %v2625 = vpop.f32.mrf.mxu0
      %v2626 = vpop.f32.mrf.mxu0
      %v2627 = vadd.f32 0.0, %v2626
      %v2628 = vpop.f32.mrf.mxu0
      %2629 = vmatprep.mubr.bf16.mxu0 0
      %2630 = vmatmul.mubr.bf16.gmra.mxu0 %v732
      %v2631 = vpop.f32.mrf.mxu0
      %v2632 = vadd.f32 0.0, %v2631
      %v2633 = vpop.f32.mrf.mxu0
      %v2634 = vpop.f32.mrf.mxu0
      %v2635 = vadd.f32 0.0, %v2634
      %v2636 = vpop.f32.mrf.mxu0
      %2637 = vmatprep.mubr.bf16.mxu0 0
      %2638 = vmatmul.mubr.bf16.gmra.mxu0 %v735
      %v2639 = vpop.f32.mrf.mxu0
      %v2640 = vadd.f32 0.0, %v2639
      %v2641 = vpop.f32.mrf.mxu0
      %v2642 = vpop.f32.mrf.mxu0
      %v2643 = vadd.f32 0.0, %v2642
      %v2644 = vpop.f32.mrf.mxu0
      %2645 = vmatprep.mubr.bf16.mxu0 0
      %2646 = vmatmul.mubr.bf16.gmra.mxu0 %v738
      %v2647 = vpop.f32.mrf.mxu0
      %v2648 = vadd.f32 0.0, %v2647
      %v2649 = vpop.f32.mrf.mxu0
      %v2650 = vpop.f32.mrf.mxu0
      %v2651 = vadd.f32 0.0, %v2650
      %v2652 = vpop.f32.mrf.mxu0
      %2653 = vmatprep.mubr.bf16.mxu0 0
      %2654 = vmatmul.mubr.bf16.gmra.mxu0 %v1858
      %v2655 = vpop.f32.mrf.mxu0
      %v2656 = vadd.f32 0.0, %v2655
      %v2657 = vpop.f32.mrf.mxu0
      %v2658 = vpop.f32.mrf.mxu0
      %v2659 = vadd.f32 0.0, %v2658
      %v2660 = vpop.f32.mrf.mxu0
      %2661 = vmatprep.mubr.bf16.mxu0 0
      %2662 = vmatmul.mubr.bf16.gmra.mxu0 %v2504
      %v2663 = vpop.f32.mrf.mxu0
      %v2664 = vadd.f32 0.0, %v2663
      %v2665 = vpop.f32.mrf.mxu0
      %v2666 = vpop.f32.mrf.mxu0
      %v2667 = vadd.f32 0.0, %v2666
      %v2668 = vpop.f32.mrf.mxu0
      %2669 = vdwg.mxu0
      %v2670 = vadd.f32 %v2442, %v2544
      %v2671 = vadd.f32 %v2443, %v2547
      %v2672 = vadd.f32 %v2444, %v2552
      %v2673 = vadd.f32 %v2445, %v2555
      %v2674 = vadd.f32 %v2446, %v2560
      %v2675 = vadd.f32 %v2447, %v2563
      %v2676 = vadd.f32 %v2448, %v2568
      %v2677 = vadd.f32 %v2449, %v2571
      %v2678 = vadd.f32 %v2450, %v2576
      %v2679 = vadd.f32 %v2451, %v2579
      %v2680 = vadd.f32 %v2452, %v2584
      %v2681 = vadd.f32 %v2453, %v2587
      %v2682 = vadd.f32 %v2454, %v2592
      %v2683 = vadd.f32 %v2455, %v2595
      %v2684 = vadd.f32 %v2456, %v2600
      %v2685 = vadd.f32 %v2457, %v2603
      %v2686 = vadd.f32 %v2458, %v2608
      %v2687 = vadd.f32 %v2459, %v2611
      %v2688 = vadd.f32 %v2460, %v2616
      %v2689 = vadd.f32 %v2461, %v2619
      %v2690 = vadd.f32 %v2462, %v2624
      %v2691 = vadd.f32 %v2463, %v2627
      %v2692 = vadd.f32 %v2464, %v2632
      %v2693 = vadd.f32 %v2465, %v2635
      %v2694 = vadd.f32 %v2466, %v2640
      %v2695 = vadd.f32 %v2467, %v2643
      %v2696 = vadd.f32 %v2468, %v2648
      %v2697 = vadd.f32 %v2469, %v2651
      %v2698 = vadd.f32 %v2470, %v2656
      %v2699 = vadd.f32 %v2471, %v2659
      %v2700 = vadd.f32 %v2472, %v2664
      %v2701 = vadd.f32 %v2473, %v2667
      %v2703 = vrot.slane %v250, 5
      %v2704 = vrot.slane %v2703, 4
      %v2705 = vrot.slane %v251, 5
      %v2706 = vsel %vm1215, %v2704, %v2705
      %v2707 = vrot.slane %v2705, 4
      %v2708 = vrot.slane %v252, 5
      %v2709 = vsel %vm1215, %v2707, %v2708
      %s2710 = scalar_lea.vmem %s1, 16
      %v2711 = vld [vmem:[%s2710] sm:$0x3]
      %v2712 = vunpack.c.l.b16 %v2706
      %v2713 = vunpack.c.l.b16 %v2709
      %v2714 = vpack.c.b16 %v2713, %v2712
      %v2716 = vsel %vm691, %v2714, 0
      %v2719 = vsel %vm740, %v2711, 0
      %2721 = vmatprep.subr.bf16.mxu0 0
      %2722 = vmatpush1.bf16.msra.mxu0 0
      %2723 = vmatprep.subr.bf16.mxu0 0
      %2724 = vmatpush1.bf16.msra.mxu0 0
      %2725 = vmatprep.subr.bf16.mxu0 0
      %2726 = vmatpush1.bf16.msra.mxu0 0
      %2727 = vmatprep.subr.bf16.mxu0 0
      %2728 = vmatpush1.bf16.msra.mxu0 0
      %2729 = vmatprep.subr.bf16.mxu0 0
      %2730 = vmatpush1.bf16.msra.mxu0 0
      %2731 = vmatprep.subr.bf16.mxu0 0
      %2732 = vmatpush1.bf16.msra.mxu0 0
      %2733 = vmatprep.subr.bf16.mxu0 0
      %2734 = vmatpush1.bf16.msra.mxu0 0
      %2735 = vmatprep.subr.bf16.mxu0 0
      %2736 = vmatpush1.bf16.msra.mxu0 %v2719
      %2737 = vmatprep.subr.bf16.mxu0 0
      %2738 = vmatpush2.bf16.msra.mxu0 0
      %2739 = vmatprep.subr.bf16.mxu0 0
      %2740 = vmatpush2.bf16.msra.mxu0 0
      %2741 = vmatprep.subr.bf16.mxu0 0
      %2742 = vmatpush2.bf16.msra.mxu0 0
      %2743 = vmatprep.subr.bf16.mxu0 0
      %2744 = vmatpush2.bf16.msra.mxu0 0
      %2745 = vmatprep.subr.bf16.mxu0 0
      %2746 = vmatpush2.bf16.msra.mxu0 0
      %2747 = vmatprep.subr.bf16.mxu0 0
      %2748 = vmatpush2.bf16.msra.mxu0 0
      %2749 = vmatprep.subr.bf16.mxu0 0
      %2750 = vmatpush2.bf16.msra.mxu0 0
      %2751 = vmatprep.subr.bf16.mxu0 0
      %2752 = vmatpush2.bf16.msra.mxu0 0
      %2753 = vmatprep.mubr.bf16.mxu0 0
      %2754 = vmatmul.mubr.bf16.gmra.mxu0 %v1385
      %v2755 = vpop.f32.mrf.mxu0
      %v2756 = vadd.f32 0.0, %v2755
      %v2757 = vpop.f32.mrf.mxu0
      %v2758 = vpop.f32.mrf.mxu0
      %v2759 = vadd.f32 0.0, %v2758
      %v2760 = vpop.f32.mrf.mxu0
      %2761 = vmatprep.mubr.bf16.mxu0 0
      %2762 = vmatmul.mubr.bf16.gmra.mxu0 %v1388
      %v2763 = vpop.f32.mrf.mxu0
      %v2764 = vadd.f32 0.0, %v2763
      %v2765 = vpop.f32.mrf.mxu0
      %v2766 = vpop.f32.mrf.mxu0
      %v2767 = vadd.f32 0.0, %v2766
      %v2768 = vpop.f32.mrf.mxu0
      %2769 = vmatprep.mubr.bf16.mxu0 0
      %2770 = vmatmul.mubr.bf16.gmra.mxu0 %v1391
      %v2771 = vpop.f32.mrf.mxu0
      %v2772 = vadd.f32 0.0, %v2771
      %v2773 = vpop.f32.mrf.mxu0
      %v2774 = vpop.f32.mrf.mxu0
      %v2775 = vadd.f32 0.0, %v2774
      %v2776 = vpop.f32.mrf.mxu0
      %2777 = vmatprep.mubr.bf16.mxu0 0
      %2778 = vmatmul.mubr.bf16.gmra.mxu0 %v1394
      %v2779 = vpop.f32.mrf.mxu0
      %v2780 = vadd.f32 0.0, %v2779
      %v2781 = vpop.f32.mrf.mxu0
      %v2782 = vpop.f32.mrf.mxu0
      %v2783 = vadd.f32 0.0, %v2782
      %v2784 = vpop.f32.mrf.mxu0
      %2785 = vmatprep.mubr.bf16.mxu0 0
      %2786 = vmatmul.mubr.bf16.gmra.mxu0 %v1397
      %v2787 = vpop.f32.mrf.mxu0
      %v2788 = vadd.f32 0.0, %v2787
      %v2789 = vpop.f32.mrf.mxu0
      %v2790 = vpop.f32.mrf.mxu0
      %v2791 = vadd.f32 0.0, %v2790
      %v2792 = vpop.f32.mrf.mxu0
      %2793 = vmatprep.mubr.bf16.mxu0 0
      %2794 = vmatmul.mubr.bf16.gmra.mxu0 %v1400
      %v2795 = vpop.f32.mrf.mxu0
      %v2796 = vadd.f32 0.0, %v2795
      %v2797 = vpop.f32.mrf.mxu0
      %v2798 = vpop.f32.mrf.mxu0
      %v2799 = vadd.f32 0.0, %v2798
      %v2800 = vpop.f32.mrf.mxu0
      %2801 = vmatprep.mubr.bf16.mxu0 0
      %2802 = vmatmul.mubr.bf16.gmra.mxu0 %v1403
      %v2803 = vpop.f32.mrf.mxu0
      %v2804 = vadd.f32 0.0, %v2803
      %v2805 = vpop.f32.mrf.mxu0
      %v2806 = vpop.f32.mrf.mxu0
      %v2807 = vadd.f32 0.0, %v2806
      %v2808 = vpop.f32.mrf.mxu0
      %2809 = vmatprep.mubr.bf16.mxu0 0
      %2810 = vmatmul.mubr.bf16.gmra.mxu0 %v1406
      %v2811 = vpop.f32.mrf.mxu0
      %v2812 = vadd.f32 0.0, %v2811
      %v2813 = vpop.f32.mrf.mxu0
      %v2814 = vpop.f32.mrf.mxu0
      %v2815 = vadd.f32 0.0, %v2814
      %v2816 = vpop.f32.mrf.mxu0
      %2817 = vmatprep.mubr.bf16.mxu0 0
      %2818 = vmatmul.mubr.bf16.gmra.mxu0 %v1409
      %v2819 = vpop.f32.mrf.mxu0
      %v2820 = vadd.f32 0.0, %v2819
      %v2821 = vpop.f32.mrf.mxu0
      %v2822 = vpop.f32.mrf.mxu0
      %v2823 = vadd.f32 0.0, %v2822
      %v2824 = vpop.f32.mrf.mxu0
      %2825 = vmatprep.mubr.bf16.mxu0 0
      %2826 = vmatmul.mubr.bf16.gmra.mxu0 %v1412
      %v2827 = vpop.f32.mrf.mxu0
      %v2828 = vadd.f32 0.0, %v2827
      %v2829 = vpop.f32.mrf.mxu0
      %v2830 = vpop.f32.mrf.mxu0
      %v2831 = vadd.f32 0.0, %v2830
      %v2832 = vpop.f32.mrf.mxu0
      %2833 = vmatprep.mubr.bf16.mxu0 0
      %2834 = vmatmul.mubr.bf16.gmra.mxu0 %v1415
      %v2835 = vpop.f32.mrf.mxu0
      %v2836 = vadd.f32 0.0, %v2835
      %v2837 = vpop.f32.mrf.mxu0
      %v2838 = vpop.f32.mrf.mxu0
      %v2839 = vadd.f32 0.0, %v2838
      %v2840 = vpop.f32.mrf.mxu0
      %2841 = vmatprep.mubr.bf16.mxu0 0
      %2842 = vmatmul.mubr.bf16.gmra.mxu0 %v1418
      %v2843 = vpop.f32.mrf.mxu0
      %v2844 = vadd.f32 0.0, %v2843
      %v2845 = vpop.f32.mrf.mxu0
      %v2846 = vpop.f32.mrf.mxu0
      %v2847 = vadd.f32 0.0, %v2846
      %v2848 = vpop.f32.mrf.mxu0
      %2849 = vmatprep.mubr.bf16.mxu0 0
      %2850 = vmatmul.mubr.bf16.gmra.mxu0 %v1421
      %v2851 = vpop.f32.mrf.mxu0
      %v2852 = vadd.f32 0.0, %v2851
      %v2853 = vpop.f32.mrf.mxu0
      %v2854 = vpop.f32.mrf.mxu0
      %v2855 = vadd.f32 0.0, %v2854
      %v2856 = vpop.f32.mrf.mxu0
      %2857 = vmatprep.mubr.bf16.mxu0 0
      %2858 = vmatmul.mubr.bf16.gmra.mxu0 %v1424
      %v2859 = vpop.f32.mrf.mxu0
      %v2860 = vadd.f32 0.0, %v2859
      %v2861 = vpop.f32.mrf.mxu0
      %v2862 = vpop.f32.mrf.mxu0
      %v2863 = vadd.f32 0.0, %v2862
      %v2864 = vpop.f32.mrf.mxu0
      %2865 = vmatprep.mubr.bf16.mxu0 0
      %2866 = vmatmul.mubr.bf16.gmra.mxu0 %v2070
      %v2867 = vpop.f32.mrf.mxu0
      %v2868 = vadd.f32 0.0, %v2867
      %v2869 = vpop.f32.mrf.mxu0
      %v2870 = vpop.f32.mrf.mxu0
      %v2871 = vadd.f32 0.0, %v2870
      %v2872 = vpop.f32.mrf.mxu0
      %2873 = vmatprep.mubr.bf16.mxu0 0
      %2874 = vmatmul.mubr.bf16.gmra.mxu0 %v2716
      %v2875 = vpop.f32.mrf.mxu0
      %v2876 = vadd.f32 0.0, %v2875
      %v2877 = vpop.f32.mrf.mxu0
      %v2878 = vpop.f32.mrf.mxu0
      %v2879 = vadd.f32 0.0, %v2878
      %v2880 = vpop.f32.mrf.mxu0
      %2881 = vdwg.mxu0
      %v2882 = vadd.f32 %v2670, %v2756
      %v2883 = vadd.f32 %v2671, %v2759
      %v2884 = vadd.f32 %v2672, %v2764
      %v2885 = vadd.f32 %v2673, %v2767
      %v2886 = vadd.f32 %v2674, %v2772
      %v2887 = vadd.f32 %v2675, %v2775
      %v2888 = vadd.f32 %v2676, %v2780
      %v2889 = vadd.f32 %v2677, %v2783
      %v2890 = vadd.f32 %v2678, %v2788
      %v2891 = vadd.f32 %v2679, %v2791
      %v2892 = vadd.f32 %v2680, %v2796
      %v2893 = vadd.f32 %v2681, %v2799
      %v2894 = vadd.f32 %v2682, %v2804
      %v2895 = vadd.f32 %v2683, %v2807
      %v2896 = vadd.f32 %v2684, %v2812
      %v2897 = vadd.f32 %v2685, %v2815
      %v2898 = vadd.f32 %v2686, %v2820
      %v2899 = vadd.f32 %v2687, %v2823
      %v2900 = vadd.f32 %v2688, %v2828
      %v2901 = vadd.f32 %v2689, %v2831
      %v2902 = vadd.f32 %v2690, %v2836
      %v2903 = vadd.f32 %v2691, %v2839
      %v2904 = vadd.f32 %v2692, %v2844
      %v2905 = vadd.f32 %v2693, %v2847
      %v2906 = vadd.f32 %v2694, %v2852
      %v2907 = vadd.f32 %v2695, %v2855
      %v2908 = vadd.f32 %v2696, %v2860
      %v2909 = vadd.f32 %v2697, %v2863
      %v2910 = vadd.f32 %v2698, %v2868
      %v2911 = vadd.f32 %v2699, %v2871
      %v2912 = vadd.f32 %v2700, %v2876
      %v2913 = vadd.f32 %v2701, %v2879
      %v2914 = vld [vmem:[%s2] sm:$0x1]
      %v2916 = vlaneseq
      %v2917 = vshrl.u32 %v2916, 7
      %v2918 = vsub.s32 0, %v2917
      %v2919 = vrot.slane %v2914, %v2918
      %v2921 = vmul.f32 %v2882, %v2919
      %v2922 = vmul.f32 %v2883, %v2919
      %v2923 = vmul.f32 %v2884, %v2919
      %v2924 = vmul.f32 %v2885, %v2919
      %v2925 = vmul.f32 %v2886, %v2919
      %v2926 = vmul.f32 %v2887, %v2919
      %v2927 = vmul.f32 %v2888, %v2919
      %v2928 = vmul.f32 %v2889, %v2919
      %v2929 = vmul.f32 %v2890, %v2919
      %v2930 = vmul.f32 %v2891, %v2919
      %v2931 = vmul.f32 %v2892, %v2919
      %v2932 = vmul.f32 %v2893, %v2919
      %v2933 = vmul.f32 %v2894, %v2919
      %v2934 = vmul.f32 %v2895, %v2919
      %v2935 = vmul.f32 %v2896, %v2919
      %v2936 = vmul.f32 %v2897, %v2919
      %v2937 = vmul.f32 %v2898, %v2919
      %v2938 = vmul.f32 %v2899, %v2919
      %v2939 = vmul.f32 %v2900, %v2919
      %v2940 = vmul.f32 %v2901, %v2919
      %v2941 = vmul.f32 %v2902, %v2919
      %v2942 = vmul.f32 %v2903, %v2919
      %v2943 = vmul.f32 %v2904, %v2919
      %v2944 = vmul.f32 %v2905, %v2919
      %v2945 = vmul.f32 %v2906, %v2919
      %v2946 = vmul.f32 %v2907, %v2919
      %v2947 = vmul.f32 %v2908, %v2919
      %v2948 = vmul.f32 %v2909, %v2919
      %v2949 = vmul.f32 %v2910, %v2919
      %v2950 = vmul.f32 %v2911, %v2919
      %v2951 = vmul.f32 %v2912, %v2919
      %v2952 = vmul.f32 %v2913, %v2919
      %v2953 = vld [vmem:[%s3] sm:$0x1]
      %v2955 = vlaneseq
      %v2956 = vshrl.u32 %v2955, 7
      %v2957 = vsub.s32 0, %v2956
      %v2958 = vrot.slane %v2953, %v2957
      %v2960 = vadd.f32 %v2921, %v2958
      %v2961 = vadd.f32 %v2922, %v2958
      %v2962 = vadd.f32 %v2923, %v2958
      %v2963 = vadd.f32 %v2924, %v2958
      %v2964 = vadd.f32 %v2925, %v2958
      %v2965 = vadd.f32 %v2926, %v2958
      %v2966 = vadd.f32 %v2927, %v2958
      %v2967 = vadd.f32 %v2928, %v2958
      %v2968 = vadd.f32 %v2929, %v2958
      %v2969 = vadd.f32 %v2930, %v2958
      %v2970 = vadd.f32 %v2931, %v2958
      %v2971 = vadd.f32 %v2932, %v2958
      %v2972 = vadd.f32 %v2933, %v2958
      %v2973 = vadd.f32 %v2934, %v2958
      %v2974 = vadd.f32 %v2935, %v2958
      %v2975 = vadd.f32 %v2936, %v2958
      %v2976 = vadd.f32 %v2937, %v2958
      %v2977 = vadd.f32 %v2938, %v2958
      %v2978 = vadd.f32 %v2939, %v2958
      %v2979 = vadd.f32 %v2940, %v2958
      %v2980 = vadd.f32 %v2941, %v2958
      %v2981 = vadd.f32 %v2942, %v2958
      %v2982 = vadd.f32 %v2943, %v2958
      %v2983 = vadd.f32 %v2944, %v2958
      %v2984 = vadd.f32 %v2945, %v2958
      %v2985 = vadd.f32 %v2946, %v2958
      %v2986 = vadd.f32 %v2947, %v2958
      %v2987 = vadd.f32 %v2948, %v2958
      %v2988 = vadd.f32 %v2949, %v2958
      %v2989 = vadd.f32 %v2950, %v2958
      %v2990 = vadd.f32 %v2951, %v2958
      %v2991 = vadd.f32 %v2952, %v2958
      %2992 = vxpose.xlu0.b32.start [1/16] %v2960, 128
      %2993 = vxpose.xlu0.b32.cont [2/16] %v2961, 128
      %2994 = vxpose.xlu0.b32.cont [3/16] %v2962, 128
      %2995 = vxpose.xlu0.b32.cont [4/16] %v2963, 128
      %2996 = vxpose.xlu0.b32.cont [5/16] %v2964, 128
      %2997 = vxpose.xlu0.b32.cont [6/16] %v2965, 128
      %2998 = vxpose.xlu0.b32.cont [7/16] %v2966, 128
      %2999 = vxpose.xlu0.b32.cont [8/16] %v2967, 128
      %3000 = vxpose.xlu0.b32.cont [9/16] %v2968, 128
      %3001 = vxpose.xlu0.b32.cont [10/16] %v2969, 128
      %3002 = vxpose.xlu0.b32.cont [11/16] %v2970, 128
      %3003 = vxpose.xlu0.b32.cont [12/16] %v2971, 128
      %3004 = vxpose.xlu0.b32.cont [13/16] %v2972, 128
      %3005 = vxpose.xlu0.b32.cont [14/16] %v2973, 128
      %3006 = vxpose.xlu0.b32.cont [15/16] %v2974, 128
      %3007 = vxpose.xlu0.b32.end [16/16] %v2975, 128
      %v3008 = vpop.trf.xlu0
      %v3009 = vpop.trf.xlu0
      %v3010 = vpop.trf.xlu0
      %v3011 = vpop.trf.xlu0
      %v3012 = vpop.trf.xlu0
      %v3013 = vpop.trf.xlu0
      %v3014 = vpop.trf.xlu0
      %v3015 = vpop.trf.xlu0
      %v3016 = vpop.trf.xlu0
      %v3017 = vpop.trf.xlu0
      %v3018 = vpop.trf.xlu0
      %v3019 = vpop.trf.xlu0
      %v3020 = vpop.trf.xlu0
      %v3021 = vpop.trf.xlu0
      %v3022 = vpop.trf.xlu0
      %v3023 = vpop.trf.xlu0
      %3024 = vxpose.xlu0.b32.start [1/16] %v2976, 128
      %3025 = vxpose.xlu0.b32.cont [2/16] %v2977, 128
      %3026 = vxpose.xlu0.b32.cont [3/16] %v2978, 128
      %3027 = vxpose.xlu0.b32.cont [4/16] %v2979, 128
      %3028 = vxpose.xlu0.b32.cont [5/16] %v2980, 128
      %3029 = vxpose.xlu0.b32.cont [6/16] %v2981, 128
      %3030 = vxpose.xlu0.b32.cont [7/16] %v2982, 128
      %3031 = vxpose.xlu0.b32.cont [8/16] %v2983, 128
      %3032 = vxpose.xlu0.b32.cont [9/16] %v2984, 128
      %3033 = vxpose.xlu0.b32.cont [10/16] %v2985, 128
      %3034 = vxpose.xlu0.b32.cont [11/16] %v2986, 128
      %3035 = vxpose.xlu0.b32.cont [12/16] %v2987, 128
      %3036 = vxpose.xlu0.b32.cont [13/16] %v2988, 128
      %3037 = vxpose.xlu0.b32.cont [14/16] %v2989, 128
      %3038 = vxpose.xlu0.b32.cont [15/16] %v2990, 128
      %3039 = vxpose.xlu0.b32.end [16/16] %v2991, 128
      %v3040 = vpop.trf.xlu0
      %v3041 = vpop.trf.xlu0
      %v3042 = vpop.trf.xlu0
      %v3043 = vpop.trf.xlu0
      %v3044 = vpop.trf.xlu0
      %v3045 = vpop.trf.xlu0
      %v3046 = vpop.trf.xlu0
      %v3047 = vpop.trf.xlu0
      %v3048 = vpop.trf.xlu0
      %v3049 = vpop.trf.xlu0
      %v3050 = vpop.trf.xlu0
      %v3051 = vpop.trf.xlu0
      %v3052 = vpop.trf.xlu0
      %v3053 = vpop.trf.xlu0
      %v3054 = vpop.trf.xlu0
      %v3055 = vpop.trf.xlu0
      %3056 = vst [vmem:[%s197] sm:$0xff] %v3008
      %3057 = vst [vmem:[%s197 + $0x8] sm:$0xff] %v3040
      %p3058 = scmp.lt.s32.totalorder %s15, 1
      %s3059 = scalar_select %p3058, %s15, 1
      %s3060 = smul.addr %s3059, 2
      %s3061 = smul.addr %s3060, 8
      %s3062 = scalar_lea.vmem %s4, %s3061
      // Predicated region
      $region37: #{conv_batch_norm_block.3} parent=35 // pred_check
        %p3063 = pneg %p122
      $region38: #{conv_batch_norm_block.3} parent=35 // pred_check_branch
        %3065 = sbr.rel (%p3063) target = $region40
      $region39: #{conv_batch_norm_block.3} parent=35 // pred_region
        _
      $region40: #{conv_batch_norm_block.3} parent=35 // pred_fallthru
        _
    $region36: #{conv_batch_norm_block.3} parent=5 // pred_fallthru
      _
    %p3066 = scmp.le.s32.totalorder 2, %s10
    // Predicated region
    $region41: #{conv_batch_norm_block.3} parent=5 // pred_check
      %p3067 = pneg %p3066
    $region42: #{conv_batch_norm_block.3} parent=5 // pred_check_branch
      %3069 = sbr.rel (%p3067) target = $region44
    $region43: #{conv_batch_norm_block.3} parent=5 // pred_region
      %s3070 = ssub.s32 %s10, 2
      // Predicated region
      $region45: #{conv_batch_norm_block.3} parent=43 // pred_check
        %p3071 = pneg %p128
      $region46: #{conv_batch_norm_block.3} parent=43 // pred_check_branch
        %3073 = sbr.rel (%p3071) target = $region48
      $region47: #{conv_batch_norm_block.3} parent=43 // pred_region
        %p3074 = scmp.lt.s32.totalorder %s16, 1
        %s3075 = scalar_select %p3074, %s16, 1
        %s3076 = smul.addr %s3075, 2
        %s3077 = smul.addr %s3076, 8
        %s3078 = scalar_lea.vmem %s4, %s3077
      $region48: #{conv_batch_norm_block.3} parent=43 // pred_fallthru
        _
    $region44: #{conv_batch_norm_block.3} parent=5 // pred_fallthru
      _
  $region6: #{conv_batch_norm_block.3} parent=0 // loop_footer
    %s14 = sadd.s32 1, %s10
  $region7: #{conv_batch_norm_block.3} parent=0 // loop_footer_branch
    %9 = sbr.rel target = $region3
  $region8: #{conv_batch_norm_block.3} parent=0 // loop_exit
    _

// kernel: conv_batch_norm_block.2
$region0: #{conv_batch_norm_block.2}
  #allocation0 [shape = 'u32[]', space=smem, size = 0x4, offset = 0x4, fixed_abs, tag = 'smem constant byte address 0x4 - core index']
  #allocation1 [shape = 'u32[144,128]{1,0:T(1,128)}', space=vmem, size = 0x12000, scoped, tag = 'internal scratch']
  %s0 = inlined_call_operand.vmem [shape: bf16[2,18,18,4], index: 0, kind: input, shape index: {}]
  %s1 = inlined_call_operand.vmem [shape: bf16[9,4,128], index: 1, kind: input, shape index: {}]
  %s2 = inlined_call_operand.vmem [shape: f32[2,8,128], index: 2, kind: output, shape index: {0}]
  %s3 = inlined_call_operand.vmem [shape: f32[2,8,128], index: 3, kind: output, shape index: {1}]
  %4 = xla_tuple %s2, %s3
  %s5 = sld [smem:[#allocation0]]
  $region53: #{conv_batch_norm_block.2} parent=0
    _
  %s7 = ssub.s32 1, %s5
  %s8 = scalar_select 0, %s7, %s5
  loop: start=0, step=1, limit=4
  $region2: #{conv_batch_norm_block.2} parent=0 // loop_pre_header
    _
  $region3: #{conv_batch_norm_block.2} parent=0 // loop_header
    %s10 = sphi 0, %s14
    %p11 = scmp.ge.s32.totalorder %s10, 4
    %s17 = sphi 0, %s29
    %s18 = sphi 0, %s25
    %s19 = sphi 0, %s17
    %s20 = sphi 0, %s18
    %s21 = sphi 0, %s19
    %s22 = sphi 0, %s20
    %s34 = sphi 0, %s36
    %s37 = sphi 0, %s34
    %s38 = sphi 0, %s37
    %s54 = sphi 0, %s38
    %s58 = sphi 0, %s58
    %s60 = sphi 0, %s58
    %s61 = sphi 0, %s60
    %s75 = sphi 0, %s61
    %s81 = sphi 0, %s83
    %s84 = sphi 0, %s81
    %s85 = sphi 0, %s84
    %s101 = sphi 0, %s85
    %s107 = sphi 0, %s109
    %s110 = sphi 0, %s107
    %s111 = sphi 0, %s110
    %s127 = sphi 0, %s111
  $region4: #{conv_batch_norm_block.2} parent=0 // loop_header_branch
    %13 = sbr.rel (%p11) target = $region8
  $region5: #{conv_batch_norm_block.2} parent=0 // loop_body
    %s15 = ssub.s32 %s10, 1
    %s16 = ssub.s32 %s10, 2
    %s23 = sadd.s32 1, %s18
    %p24 = scmp.ge.s32.totalorder %s23, 1
    %s25 = scalar_select %p24, 0, %s23
    %s26 = sadd.s32 1, %s17
    %s27 = scalar_select %p24, %s26, %s17
    %p28 = scmp.ge.s32.totalorder %s27, 2
    %s29 = scalar_select %p28, 0, %s27
    %s30 = sadd.s32 %s17, %s18
    %s31 = sadd.s32 %s29, %s25
    %s32 = ssub.s32 %s30, %s31
    %p33 = scmp.eq.s32.totalorder %s32, 0
    %s35 = sadd.s32 %s34, 1
    %s36 = scalar_select %p33, %s34, %s35
    %p39 = pneg %p33
    %p40 = scmp.eq.s32.totalorder %s10, 1
    %p41 = por %p39, %p40
    %p42 = scmp.ne.s32.totalorder %s34, %s37
    %p43 = scmp.eq.s32.totalorder %s10, 0
    %p44 = por %p42, %p43
    %p45 = scmp.ne.s32.totalorder %s34, %s37
    %p46 = scmp.eq.s32.totalorder %s15, 1
    %p47 = por %p45, %p46
    %p48 = scmp.ne.s32.totalorder %s37, %s38
    %p49 = scmp.eq.s32.totalorder %s15, 0
    %p50 = por %p48, %p49
    %p51 = scmp.ne.s32.totalorder %s37, %s38
    %p52 = scmp.eq.s32.totalorder %s16, 1
    %p53 = por %p51, %p52
    %p55 = scmp.ne.s32.totalorder %s38, %s54
    %p56 = scmp.eq.s32.totalorder %s16, 0
    %p57 = por %p55, %p56
    %s59 = sadd.s32 %s58, 1
    %p62 = scmp.eq.s32.totalorder %s10, 1
    %p63 = scmp.ne.s32.totalorder %s58, %s60
    %p64 = scmp.eq.s32.totalorder %s10, 0
    %p65 = por %p63, %p64
    %p66 = scmp.ne.s32.totalorder %s58, %s60
    %p67 = scmp.eq.s32.totalorder %s15, 1
    %p68 = por %p66, %p67
    %p69 = scmp.ne.s32.totalorder %s60, %s61
    %p70 = scmp.eq.s32.totalorder %s15, 0
    %p71 = por %p69, %p70
    %p72 = scmp.ne.s32.totalorder %s60, %s61
    %p73 = scmp.eq.s32.totalorder %s16, 1
    %p74 = por %p72, %p73
    %p76 = scmp.ne.s32.totalorder %s61, %s75
    %p77 = scmp.eq.s32.totalorder %s16, 0
    %p78 = por %p76, %p77
    %s79 = ssub.s32 %s17, %s29
    %p80 = scmp.eq.s32.totalorder %s79, 0
    %s82 = sadd.s32 %s81, 1
    %s83 = scalar_select %p80, %s81, %s82
    %p86 = pneg %p80
    %p87 = scmp.eq.s32.totalorder %s10, 1
    %p88 = por %p86, %p87
    %p89 = scmp.ne.s32.totalorder %s81, %s84
    %p90 = scmp.eq.s32.totalorder %s10, 0
    %p91 = por %p89, %p90
    %p92 = scmp.ne.s32.totalorder %s81, %s84
    %p93 = scmp.eq.s32.totalorder %s15, 1
    %p94 = por %p92, %p93
    %p95 = scmp.ne.s32.totalorder %s84, %s85
    %p96 = scmp.eq.s32.totalorder %s15, 0
    %p97 = por %p95, %p96
    %p98 = scmp.ne.s32.totalorder %s84, %s85
    %p99 = scmp.eq.s32.totalorder %s16, 1
    %p100 = por %p98, %p99
    %p102 = scmp.ne.s32.totalorder %s85, %s101
    %p103 = scmp.eq.s32.totalorder %s16, 0
    %p104 = por %p102, %p103
    %s105 = ssub.s32 %s17, %s29
    %p106 = scmp.eq.s32.totalorder %s105, 0
    %s108 = sadd.s32 %s107, 1
    %s109 = scalar_select %p106, %s107, %s108
    %p112 = pneg %p106
    %p113 = scmp.eq.s32.totalorder %s10, 1
    %p114 = por %p112, %p113
    %p115 = scmp.ne.s32.totalorder %s107, %s110
    %p116 = scmp.eq.s32.totalorder %s10, 0
    %p117 = por %p115, %p116
    %p118 = scmp.ne.s32.totalorder %s107, %s110
    %p119 = scmp.eq.s32.totalorder %s15, 1
    %p120 = por %p118, %p119
    %p121 = scmp.ne.s32.totalorder %s110, %s111
    %p122 = scmp.eq.s32.totalorder %s15, 0
    %p123 = por %p121, %p122
    %p124 = scmp.ne.s32.totalorder %s110, %s111
    %p125 = scmp.eq.s32.totalorder %s16, 1
    %p126 = por %p124, %p125
    %p128 = scmp.ne.s32.totalorder %s111, %s127
    %p129 = scmp.eq.s32.totalorder %s16, 0
    %p130 = por %p128, %p129
    %p131 = scmp.le.s32.totalorder 1, %s10
    %p132 = scmp.lt.s32.totalorder %s10, 3
    %p133 = pnand %p131, %p132
    %p134 = pneg %p133
    // Predicated region
    $region9: #{conv_batch_norm_block.2} parent=5 // pred_check
      _
    $region10: #{conv_batch_norm_block.2} parent=5 // pred_check_branch
      %136 = sbr.rel (%p133) target = $region12
    $region11: #{conv_batch_norm_block.2} parent=5 // pred_region
      %s137 = ssub.s32 %s10, 1
      // Predicated region
      $region13: #{conv_batch_norm_block.2} parent=11 // pred_check
        %p138 = pneg %p71
      $region14: #{conv_batch_norm_block.2} parent=11 // pred_check_branch
        %140 = sbr.rel (%p138) target = $region16
      $region15: #{conv_batch_norm_block.2} parent=11 // pred_region
        _
      $region16: #{conv_batch_norm_block.2} parent=11 // pred_fallthru
        _
    $region12: #{conv_batch_norm_block.2} parent=5 // pred_fallthru
      _
    %p141 = scmp.lt.s32.totalorder %s10, 2
    // Predicated region
    $region17: #{conv_batch_norm_block.2} parent=5 // pred_check
      %p142 = pneg %p141
    $region18: #{conv_batch_norm_block.2} parent=5 // pred_check_branch
      %144 = sbr.rel (%p142) target = $region20
    $region19: #{conv_batch_norm_block.2} parent=5 // pred_region
      // Predicated region
      $region21: #{conv_batch_norm_block.2} parent=19 // pred_check
        %p145 = pneg %p44
      $region22: #{conv_batch_norm_block.2} parent=19 // pred_check_branch
        %147 = sbr.rel (%p145) target = $region24
      $region23: #{conv_batch_norm_block.2} parent=19 // pred_region
        %s148 = sadd.s32 %s17, %s18
        %p149 = scmp.lt.s32.totalorder %s148, 1
        %s150 = scalar_select %p149, %s148, 1
        %s151 = smul.addr %s150, 54
        %s152 = smul.addr %s151, 4
        %s153 = scalar_lea.vmem %s0, %s152
        %s154 = sadd.s32 %s17, %s18
      $region24: #{conv_batch_norm_block.2} parent=19 // pred_fallthru
        _
    $region20: #{conv_batch_norm_block.2} parent=5 // pred_fallthru
      _
    %p155 = scmp.le.s32.totalorder 1, %s10
    %p156 = scmp.lt.s32.totalorder %s10, 3
    %p157 = pnand %p155, %p156
    %p158 = pneg %p157
    // Predicated region
    $region25: #{conv_batch_norm_block.2} parent=5 // pred_check
      _
    $region26: #{conv_batch_norm_block.2} parent=5 // pred_check_branch
      %160 = sbr.rel (%p157) target = $region28
    $region27: #{conv_batch_norm_block.2} parent=5 // pred_region
      %s161 = ssub.s32 %s10, 1
      %s162 = sadd.s32 %s19, %s20
      %p163 = scmp.lt.s32.totalorder %s162, 1
      %s164 = scalar_select %p163, %s162, 1
      %s165 = smul.addr %s164, 54
      %s166 = smul.addr %s165, 4
      %s167 = scalar_lea.vmem %s0, %s166
      %p168 = pneg %p50
      %p169 = pneg %p47
      %p170 = pneg %p71
      %p171 = pneg %p68
      %p172 = pneg %p97
      %p173 = pneg %p94
      %p174 = scmp.lt.s32.totalorder %s19, 1
      %s175 = scalar_select %p174, %s19, 1
      %s176 = smul.addr %s175, 8
      %s177 = scalar_lea.vmem %s2, %s176
      %p178 = pneg %p123
      %p179 = pneg %p120
      %p180 = scmp.lt.s32.totalorder %s19, 1
      %s181 = scalar_select %p180, %s19, 1
      %s182 = smul.addr %s181, 8
      %s183 = scalar_lea.vmem %s3, %s182
      %s184 = sadd.s32 %s19, %s20
      %p185 = scmp.lt.s32.totalorder %s184, 1
      %s186 = scalar_select %p185, %s184, 1
      %s187 = smul.addr %s186, 54
      %s188 = smul.addr %s187, 4
      %s189 = scalar_lea.vmem %s0, %s188
      %s190 = sadd.s32 %s19, %s20
      %p191 = scmp.lt.s32.totalorder %s19, 1
      %s192 = scalar_select %p191, %s19, 1
      %s193 = smul.addr %s192, 8
      %s194 = scalar_lea.vmem %s2, %s193
      %p195 = scmp.lt.s32.totalorder %s19, 1
      %s196 = scalar_select %p195, %s19, 1
      %s197 = smul.addr %s196, 8
      %s198 = scalar_lea.vmem %s3, %s197
      %v200 = vld [vmem:[%s189] sm:$0xf]
      %v201 = vld [vmem:[%s189 + $0x4] sm:$0xf]
      %v202 = vld [vmem:[%s189 + $0x8] sm:$0x1]
      %v203 = vld [vmem:[%s189 + $0xc] sm:$0xf]
      %v204 = vld [vmem:[%s189 + $0x10] sm:$0xf]
      %v205 = vld [vmem:[%s189 + $0x14] sm:$0x1]
      %v206 = vld [vmem:[%s189 + $0x18] sm:$0xf]
      %v207 = vld [vmem:[%s189 + $0x1c] sm:$0xf]
      %v208 = vld [vmem:[%s189 + $0x20] sm:$0x1]
      %v209 = vld [vmem:[%s189 + $0x24] sm:$0xf]
      %v210 = vld [vmem:[%s189 + $0x28] sm:$0xf]
      %v211 = vld [vmem:[%s189 + $0x2c] sm:$0x1]
      %v212 = vld [vmem:[%s189 + $0x30] sm:$0xf]
      %v213 = vld [vmem:[%s189 + $0x34] sm:$0xf]
      %v214 = vld [vmem:[%s189 + $0x38] sm:$0x1]
      %v215 = vld [vmem:[%s189 + $0x3c] sm:$0xf]
      %v216 = vld [vmem:[%s189 + $0x40] sm:$0xf]
      %v217 = vld [vmem:[%s189 + $0x44] sm:$0x1]
      %v218 = vld [vmem:[%s189 + $0x48] sm:$0xf]
      %v219 = vld [vmem:[%s189 + $0x4c] sm:$0xf]
      %v220 = vld [vmem:[%s189 + $0x50] sm:$0x1]
      %v221 = vld [vmem:[%s189 + $0x54] sm:$0xf]
      %v222 = vld [vmem:[%s189 + $0x58] sm:$0xf]
      %v223 = vld [vmem:[%s189 + $0x5c] sm:$0x1]
      %v224 = vld [vmem:[%s189 + $0x60] sm:$0xf]
      %v225 = vld [vmem:[%s189 + $0x64] sm:$0xf]
      %v226 = vld [vmem:[%s189 + $0x68] sm:$0x1]
      %v227 = vld [vmem:[%s189 + $0x6c] sm:$0xf]
      %v228 = vld [vmem:[%s189 + $0x70] sm:$0xf]
      %v229 = vld [vmem:[%s189 + $0x74] sm:$0x1]
      %v230 = vld [vmem:[%s189 + $0x78] sm:$0xf]
      %v231 = vld [vmem:[%s189 + $0x7c] sm:$0xf]
      %v232 = vld [vmem:[%s189 + $0x80] sm:$0x1]
      %v233 = vld [vmem:[%s189 + $0x84] sm:$0xf]
      %v234 = vld [vmem:[%s189 + $0x88] sm:$0xf]
      %v235 = vld [vmem:[%s189 + $0x8c] sm:$0x1]
      %v236 = vld [vmem:[%s189 + $0x90] sm:$0xf]
      %v237 = vld [vmem:[%s189 + $0x94] sm:$0xf]
      %v238 = vld [vmem:[%s189 + $0x98] sm:$0x1]
      %v239 = vld [vmem:[%s189 + $0x9c] sm:$0xf]
      %v240 = vld [vmem:[%s189 + $0xa0] sm:$0xf]
      %v241 = vld [vmem:[%s189 + $0xa4] sm:$0x1]
      %v242 = vld [vmem:[%s189 + $0xa8] sm:$0xf]
      %v243 = vld [vmem:[%s189 + $0xac] sm:$0xf]
      %v244 = vld [vmem:[%s189 + $0xb0] sm:$0x1]
      %v245 = vld [vmem:[%s189 + $0xb4] sm:$0xf]
      %v246 = vld [vmem:[%s189 + $0xb8] sm:$0xf]
      %v247 = vld [vmem:[%s189 + $0xbc] sm:$0x1]
      %v248 = vld [vmem:[%s189 + $0xc0] sm:$0xf]
      %v249 = vld [vmem:[%s189 + $0xc4] sm:$0xf]
      %v250 = vld [vmem:[%s189 + $0xc8] sm:$0x1]
      %v251 = vld [vmem:[%s189 + $0xcc] sm:$0xf]
      %v252 = vld [vmem:[%s189 + $0xd0] sm:$0xf]
      %v253 = vld [vmem:[%s189 + $0xd4] sm:$0x1]
      %v254 = vld [vmem:[%s1] sm:$0x3]
      %vm255 = vsmask.f32 3328
      %vm256 = vsmask.f32 7440
      %vm257 = vmor %vm255, %vm256
      %v259 = vshrl.u32 %v200, 16
      %v261 = vrot.slane %v259, 4
      %v262 = vshll.u32 %v200, 16
      %v264 = vrot.slane %v262, 5
      %v265 = vor.u32 %v261, %v264
      %v266 = vrot.slane %v265, 4
      %v268 = vshll.u32 %v201, 16
      %v270 = vrot.slane %v268, 5
      %v271 = vsel %vm257, %v266, %v270
      %v272 = vshrl.u32 %v201, 16
      %v274 = vrot.slane %v272, 4
      %v275 = vor.u32 %v274, %v270
      %v276 = vrot.slane %v275, 4
      %v278 = vshll.u32 %v202, 16
      %v280 = vrot.slane %v278, 5
      %v281 = vsel %vm257, %v276, %v280
      %v283 = vshrl.u32 %v203, 16
      %v285 = vrot.slane %v283, 4
      %v286 = vshll.u32 %v203, 16
      %v288 = vrot.slane %v286, 5
      %v289 = vor.u32 %v285, %v288
      %v290 = vrot.slane %v289, 4
      %v292 = vshll.u32 %v204, 16
      %v294 = vrot.slane %v292, 5
      %v295 = vsel %vm257, %v290, %v294
      %v296 = vshrl.u32 %v204, 16
      %v298 = vrot.slane %v296, 4
      %v299 = vor.u32 %v298, %v294
      %v300 = vrot.slane %v299, 4
      %v302 = vshll.u32 %v205, 16
      %v304 = vrot.slane %v302, 5
      %v305 = vsel %vm257, %v300, %v304
      %v307 = vshrl.u32 %v206, 16
      %v309 = vrot.slane %v307, 4
      %v310 = vshll.u32 %v206, 16
      %v312 = vrot.slane %v310, 5
      %v313 = vor.u32 %v309, %v312
      %v314 = vrot.slane %v313, 4
      %v316 = vshll.u32 %v207, 16
      %v318 = vrot.slane %v316, 5
      %v319 = vsel %vm257, %v314, %v318
      %v320 = vshrl.u32 %v207, 16
      %v322 = vrot.slane %v320, 4
      %v323 = vor.u32 %v322, %v318
      %v324 = vrot.slane %v323, 4
      %v326 = vshll.u32 %v208, 16
      %v328 = vrot.slane %v326, 5
      %v329 = vsel %vm257, %v324, %v328
      %v331 = vshrl.u32 %v209, 16
      %v333 = vrot.slane %v331, 4
      %v334 = vshll.u32 %v209, 16
      %v336 = vrot.slane %v334, 5
      %v337 = vor.u32 %v333, %v336
      %v338 = vrot.slane %v337, 4
      %v340 = vshll.u32 %v210, 16
      %v342 = vrot.slane %v340, 5
      %v343 = vsel %vm257, %v338, %v342
      %v344 = vshrl.u32 %v210, 16
      %v346 = vrot.slane %v344, 4
      %v347 = vor.u32 %v346, %v342
      %v348 = vrot.slane %v347, 4
      %v350 = vshll.u32 %v211, 16
      %v352 = vrot.slane %v350, 5
      %v353 = vsel %vm257, %v348, %v352
      %v355 = vshrl.u32 %v212, 16
      %v357 = vrot.slane %v355, 4
      %v358 = vshll.u32 %v212, 16
      %v360 = vrot.slane %v358, 5
      %v361 = vor.u32 %v357, %v360
      %v362 = vrot.slane %v361, 4
      %v364 = vshll.u32 %v213, 16
      %v366 = vrot.slane %v364, 5
      %v367 = vsel %vm257, %v362, %v366
      %v368 = vshrl.u32 %v213, 16
      %v370 = vrot.slane %v368, 4
      %v371 = vor.u32 %v370, %v366
      %v372 = vrot.slane %v371, 4
      %v374 = vshll.u32 %v214, 16
      %v376 = vrot.slane %v374, 5
      %v377 = vsel %vm257, %v372, %v376
      %v379 = vshrl.u32 %v215, 16
      %v381 = vrot.slane %v379, 4
      %v382 = vshll.u32 %v215, 16
      %v384 = vrot.slane %v382, 5
      %v385 = vor.u32 %v381, %v384
      %v386 = vrot.slane %v385, 4
      %v388 = vshll.u32 %v216, 16
      %v390 = vrot.slane %v388, 5
      %v391 = vsel %vm257, %v386, %v390
      %v392 = vshrl.u32 %v216, 16
      %v394 = vrot.slane %v392, 4
      %v395 = vor.u32 %v394, %v390
      %v396 = vrot.slane %v395, 4
      %v398 = vshll.u32 %v217, 16
      %v400 = vrot.slane %v398, 5
      %v401 = vsel %vm257, %v396, %v400
      %v403 = vshrl.u32 %v218, 16
      %v405 = vrot.slane %v403, 4
      %v406 = vshll.u32 %v218, 16
      %v408 = vrot.slane %v406, 5
      %v409 = vor.u32 %v405, %v408
      %v410 = vrot.slane %v409, 4
      %v412 = vshll.u32 %v219, 16
      %v414 = vrot.slane %v412, 5
      %v415 = vsel %vm257, %v410, %v414
      %v416 = vshrl.u32 %v219, 16
      %v418 = vrot.slane %v416, 4
      %v419 = vor.u32 %v418, %v414
      %v420 = vrot.slane %v419, 4
      %v422 = vshll.u32 %v220, 16
      %v424 = vrot.slane %v422, 5
      %v425 = vsel %vm257, %v420, %v424
      %v427 = vshrl.u32 %v221, 16
      %v429 = vrot.slane %v427, 4
      %v430 = vshll.u32 %v221, 16
      %v432 = vrot.slane %v430, 5
      %v433 = vor.u32 %v429, %v432
      %v434 = vrot.slane %v433, 4
      %v436 = vshll.u32 %v222, 16
      %v438 = vrot.slane %v436, 5
      %v439 = vsel %vm257, %v434, %v438
      %v440 = vshrl.u32 %v222, 16
      %v442 = vrot.slane %v440, 4
      %v443 = vor.u32 %v442, %v438
      %v444 = vrot.slane %v443, 4
      %v446 = vshll.u32 %v223, 16
      %v448 = vrot.slane %v446, 5
      %v449 = vsel %vm257, %v444, %v448
      %v451 = vshrl.u32 %v224, 16
      %v453 = vrot.slane %v451, 4
      %v454 = vshll.u32 %v224, 16
      %v456 = vrot.slane %v454, 5
      %v457 = vor.u32 %v453, %v456
      %v458 = vrot.slane %v457, 4
      %v460 = vshll.u32 %v225, 16
      %v462 = vrot.slane %v460, 5
      %v463 = vsel %vm257, %v458, %v462
      %v464 = vshrl.u32 %v225, 16
      %v466 = vrot.slane %v464, 4
      %v467 = vor.u32 %v466, %v462
      %v468 = vrot.slane %v467, 4
      %v470 = vshll.u32 %v226, 16
      %v472 = vrot.slane %v470, 5
      %v473 = vsel %vm257, %v468, %v472
      %v475 = vshrl.u32 %v227, 16
      %v477 = vrot.slane %v475, 4
      %v478 = vshll.u32 %v227, 16
      %v480 = vrot.slane %v478, 5
      %v481 = vor.u32 %v477, %v480
      %v482 = vrot.slane %v481, 4
      %v484 = vshll.u32 %v228, 16
      %v486 = vrot.slane %v484, 5
      %v487 = vsel %vm257, %v482, %v486
      %v488 = vshrl.u32 %v228, 16
      %v490 = vrot.slane %v488, 4
      %v491 = vor.u32 %v490, %v486
      %v492 = vrot.slane %v491, 4
      %v494 = vshll.u32 %v229, 16
      %v496 = vrot.slane %v494, 5
      %v497 = vsel %vm257, %v492, %v496
      %v499 = vshrl.u32 %v230, 16
      %v501 = vrot.slane %v499, 4
      %v502 = vshll.u32 %v230, 16
      %v504 = vrot.slane %v502, 5
      %v505 = vor.u32 %v501, %v504
      %v506 = vrot.slane %v505, 4
      %v508 = vshll.u32 %v231, 16
      %v510 = vrot.slane %v508, 5
      %v511 = vsel %vm257, %v506, %v510
      %v512 = vshrl.u32 %v231, 16
      %v514 = vrot.slane %v512, 4
      %v515 = vor.u32 %v514, %v510
      %v516 = vrot.slane %v515, 4
      %v518 = vshll.u32 %v232, 16
      %v520 = vrot.slane %v518, 5
      %v521 = vsel %vm257, %v516, %v520
      %v523 = vshrl.u32 %v233, 16
      %v525 = vrot.slane %v523, 4
      %v526 = vshll.u32 %v233, 16
      %v528 = vrot.slane %v526, 5
      %v529 = vor.u32 %v525, %v528
      %v530 = vrot.slane %v529, 4
      %v532 = vshll.u32 %v234, 16
      %v534 = vrot.slane %v532, 5
      %v535 = vsel %vm257, %v530, %v534
      %v536 = vshrl.u32 %v234, 16
      %v538 = vrot.slane %v536, 4
      %v539 = vor.u32 %v538, %v534
      %v540 = vrot.slane %v539, 4
      %v542 = vshll.u32 %v235, 16
      %v544 = vrot.slane %v542, 5
      %v545 = vsel %vm257, %v540, %v544
      %v547 = vshrl.u32 %v236, 16
      %v549 = vrot.slane %v547, 4
      %v550 = vshll.u32 %v236, 16
      %v552 = vrot.slane %v550, 5
      %v553 = vor.u32 %v549, %v552
      %v554 = vrot.slane %v553, 4
      %v556 = vshll.u32 %v237, 16
      %v558 = vrot.slane %v556, 5
      %v559 = vsel %vm257, %v554, %v558
      %v560 = vshrl.u32 %v237, 16
      %v562 = vrot.slane %v560, 4
      %v563 = vor.u32 %v562, %v558
      %v564 = vrot.slane %v563, 4
      %v566 = vshll.u32 %v238, 16
      %v568 = vrot.slane %v566, 5
      %v569 = vsel %vm257, %v564, %v568
      %v571 = vshrl.u32 %v239, 16
      %v573 = vrot.slane %v571, 4
      %v574 = vshll.u32 %v239, 16
      %v576 = vrot.slane %v574, 5
      %v577 = vor.u32 %v573, %v576
      %v578 = vrot.slane %v577, 4
      %v580 = vshll.u32 %v240, 16
      %v582 = vrot.slane %v580, 5
      %v583 = vsel %vm257, %v578, %v582
      %v584 = vshrl.u32 %v240, 16
      %v586 = vrot.slane %v584, 4
      %v587 = vor.u32 %v586, %v582
      %v588 = vrot.slane %v587, 4
      %v590 = vshll.u32 %v241, 16
      %v592 = vrot.slane %v590, 5
      %v593 = vsel %vm257, %v588, %v592
      %v595 = vshrl.u32 %v242, 16
      %v597 = vrot.slane %v595, 4
      %v598 = vshll.u32 %v242, 16
      %v600 = vrot.slane %v598, 5
      %v601 = vor.u32 %v597, %v600
      %v602 = vrot.slane %v601, 4
      %v604 = vshll.u32 %v243, 16
      %v606 = vrot.slane %v604, 5
      %v607 = vsel %vm257, %v602, %v606
      %v608 = vshrl.u32 %v243, 16
      %v610 = vrot.slane %v608, 4
      %v611 = vor.u32 %v610, %v606
      %v612 = vrot.slane %v611, 4
      %v614 = vshll.u32 %v244, 16
      %v616 = vrot.slane %v614, 5
      %v617 = vsel %vm257, %v612, %v616
      %v619 = vshrl.u32 %v245, 16
      %v621 = vrot.slane %v619, 4
      %v622 = vshll.u32 %v245, 16
      %v624 = vrot.slane %v622, 5
      %v625 = vor.u32 %v621, %v624
      %v626 = vrot.slane %v625, 4
      %v628 = vshll.u32 %v246, 16
      %v630 = vrot.slane %v628, 5
      %v631 = vsel %vm257, %v626, %v630
      %v632 = vshrl.u32 %v246, 16
      %v634 = vrot.slane %v632, 4
      %v635 = vor.u32 %v634, %v630
      %v636 = vrot.slane %v635, 4
      %v638 = vshll.u32 %v247, 16
      %v640 = vrot.slane %v638, 5
      %v641 = vsel %vm257, %v636, %v640
      %s642 = scalar_lea.vmem %s1, 2
      %v643 = vld [vmem:[%s642] sm:$0x3]
      %v644 = vunpack.c.l.b16 %v271
      %v645 = vunpack.c.l.b16 %v281
      %v646 = vunpack.c.l.b16 %v295
      %v647 = vunpack.c.l.b16 %v305
      %v648 = vunpack.c.l.b16 %v319
      %v649 = vunpack.c.l.b16 %v329
      %v650 = vunpack.c.l.b16 %v343
      %v651 = vunpack.c.l.b16 %v353
      %v652 = vunpack.c.l.b16 %v367
      %v653 = vunpack.c.l.b16 %v377
      %v654 = vunpack.c.l.b16 %v391
      %v655 = vunpack.c.l.b16 %v401
      %v656 = vunpack.c.l.b16 %v415
      %v657 = vunpack.c.l.b16 %v425
      %v658 = vunpack.c.l.b16 %v439
      %v659 = vunpack.c.l.b16 %v449
      %v660 = vunpack.c.l.b16 %v463
      %v661 = vunpack.c.l.b16 %v473
      %v662 = vunpack.c.l.b16 %v487
      %v663 = vunpack.c.l.b16 %v497
      %v664 = vunpack.c.l.b16 %v511
      %v665 = vunpack.c.l.b16 %v521
      %v666 = vunpack.c.l.b16 %v535
      %v667 = vunpack.c.l.b16 %v545
      %v668 = vunpack.c.l.b16 %v559
      %v669 = vunpack.c.l.b16 %v569
      %v670 = vunpack.c.l.b16 %v583
      %v671 = vunpack.c.l.b16 %v593
      %v672 = vunpack.c.l.b16 %v607
      %v673 = vunpack.c.l.b16 %v617
      %v674 = vunpack.c.l.b16 %v631
      %v675 = vunpack.c.l.b16 %v641
      %v676 = vpack.c.b16 %v645, %v644
      %v677 = vpack.c.b16 %v647, %v646
      %v678 = vpack.c.b16 %v649, %v648
      %v679 = vpack.c.b16 %v651, %v650
      %v680 = vpack.c.b16 %v653, %v652
      %v681 = vpack.c.b16 %v655, %v654
      %v682 = vpack.c.b16 %v657, %v656
      %v683 = vpack.c.b16 %v659, %v658
      %v684 = vpack.c.b16 %v661, %v660
      %v685 = vpack.c.b16 %v663, %v662
      %v686 = vpack.c.b16 %v665, %v664
      %v687 = vpack.c.b16 %v667, %v666
      %v688 = vpack.c.b16 %v669, %v668
      %v689 = vpack.c.b16 %v671, %v670
      %v690 = vpack.c.b16 %v673, %v672
      %v691 = vpack.c.b16 %v675, %v674
      %vm692 = vcmask 31744
      %v694 = vsel %vm692, %v676, 0
      %v697 = vsel %vm692, %v677, 0
      %v700 = vsel %vm692, %v678, 0
      %v703 = vsel %vm692, %v679, 0
      %v706 = vsel %vm692, %v680, 0
      %v709 = vsel %vm692, %v681, 0
      %v712 = vsel %vm692, %v682, 0
      %v715 = vsel %vm692, %v683, 0
      %v718 = vsel %vm692, %v684, 0
      %v721 = vsel %vm692, %v685, 0
      %v724 = vsel %vm692, %v686, 0
      %v727 = vsel %vm692, %v687, 0
      %v730 = vsel %vm692, %v688, 0
      %v733 = vsel %vm692, %v689, 0
      %v736 = vsel %vm692, %v690, 0
      %v739 = vsel %vm692, %v691, 0
      %vm741 = vcmask 1041408
      %v743 = vsel %vm741, %v643, 0
      %745 = vmatprep.subr.bf16.mxu0 0
      %746 = vmatpush1.bf16.msra.mxu0 0
      %747 = vmatprep.subr.bf16.mxu0 0
      %748 = vmatpush1.bf16.msra.mxu0 0
      %749 = vmatprep.subr.bf16.mxu0 0
      %750 = vmatpush1.bf16.msra.mxu0 0
      %751 = vmatprep.subr.bf16.mxu0 0
      %752 = vmatpush1.bf16.msra.mxu0 0
      %753 = vmatprep.subr.bf16.mxu0 0
      %754 = vmatpush1.bf16.msra.mxu0 0
      %755 = vmatprep.subr.bf16.mxu0 0
      %756 = vmatpush1.bf16.msra.mxu0 0
      %757 = vmatprep.subr.bf16.mxu0 0
      %758 = vmatpush1.bf16.msra.mxu0 0
      %759 = vmatprep.subr.bf16.mxu0 0
      %760 = vmatpush1.bf16.msra.mxu0 %v743
      %761 = vmatprep.subr.bf16.mxu0 0
      %762 = vmatpush2.bf16.msra.mxu0 0
      %763 = vmatprep.subr.bf16.mxu0 0
      %764 = vmatpush2.bf16.msra.mxu0 0
      %765 = vmatprep.subr.bf16.mxu0 0
      %766 = vmatpush2.bf16.msra.mxu0 0
      %767 = vmatprep.subr.bf16.mxu0 0
      %768 = vmatpush2.bf16.msra.mxu0 0
      %769 = vmatprep.subr.bf16.mxu0 0
      %770 = vmatpush2.bf16.msra.mxu0 0
      %771 = vmatprep.subr.bf16.mxu0 0
      %772 = vmatpush2.bf16.msra.mxu0 0
      %773 = vmatprep.subr.bf16.mxu0 0
      %774 = vmatpush2.bf16.msra.mxu0 0
      %775 = vmatprep.subr.bf16.mxu0 0
      %776 = vmatpush2.bf16.msra.mxu0 0
      %777 = vmatprep.mubr.bf16.mxu0 0
      %778 = vmatmul.mubr.bf16.gmra.mxu0 %v694
      %v779 = vpop.f32.mrf.mxu0
      %v780 = vadd.f32 0.0, %v779
      %v781 = vpop.f32.mrf.mxu0
      %v782 = vpop.f32.mrf.mxu0
      %v783 = vadd.f32 0.0, %v782
      %v784 = vpop.f32.mrf.mxu0
      %785 = vmatprep.mubr.bf16.mxu0 0
      %786 = vmatmul.mubr.bf16.gmra.mxu0 %v697
      %v787 = vpop.f32.mrf.mxu0
      %v788 = vadd.f32 0.0, %v787
      %v789 = vpop.f32.mrf.mxu0
      %v790 = vpop.f32.mrf.mxu0
      %v791 = vadd.f32 0.0, %v790
      %v792 = vpop.f32.mrf.mxu0
      %793 = vmatprep.mubr.bf16.mxu0 0
      %794 = vmatmul.mubr.bf16.gmra.mxu0 %v700
      %v795 = vpop.f32.mrf.mxu0
      %v796 = vadd.f32 0.0, %v795
      %v797 = vpop.f32.mrf.mxu0
      %v798 = vpop.f32.mrf.mxu0
      %v799 = vadd.f32 0.0, %v798
      %v800 = vpop.f32.mrf.mxu0
      %801 = vmatprep.mubr.bf16.mxu0 0
      %802 = vmatmul.mubr.bf16.gmra.mxu0 %v703
      %v803 = vpop.f32.mrf.mxu0
      %v804 = vadd.f32 0.0, %v803
      %v805 = vpop.f32.mrf.mxu0
      %v806 = vpop.f32.mrf.mxu0
      %v807 = vadd.f32 0.0, %v806
      %v808 = vpop.f32.mrf.mxu0
      %809 = vmatprep.mubr.bf16.mxu0 0
      %810 = vmatmul.mubr.bf16.gmra.mxu0 %v706
      %v811 = vpop.f32.mrf.mxu0
      %v812 = vadd.f32 0.0, %v811
      %v813 = vpop.f32.mrf.mxu0
      %v814 = vpop.f32.mrf.mxu0
      %v815 = vadd.f32 0.0, %v814
      %v816 = vpop.f32.mrf.mxu0
      %817 = vmatprep.mubr.bf16.mxu0 0
      %818 = vmatmul.mubr.bf16.gmra.mxu0 %v709
      %v819 = vpop.f32.mrf.mxu0
      %v820 = vadd.f32 0.0, %v819
      %v821 = vpop.f32.mrf.mxu0
      %v822 = vpop.f32.mrf.mxu0
      %v823 = vadd.f32 0.0, %v822
      %v824 = vpop.f32.mrf.mxu0
      %825 = vmatprep.mubr.bf16.mxu0 0
      %826 = vmatmul.mubr.bf16.gmra.mxu0 %v712
      %v827 = vpop.f32.mrf.mxu0
      %v828 = vadd.f32 0.0, %v827
      %v829 = vpop.f32.mrf.mxu0
      %v830 = vpop.f32.mrf.mxu0
      %v831 = vadd.f32 0.0, %v830
      %v832 = vpop.f32.mrf.mxu0
      %833 = vmatprep.mubr.bf16.mxu0 0
      %834 = vmatmul.mubr.bf16.gmra.mxu0 %v715
      %v835 = vpop.f32.mrf.mxu0
      %v836 = vadd.f32 0.0, %v835
      %v837 = vpop.f32.mrf.mxu0
      %v838 = vpop.f32.mrf.mxu0
      %v839 = vadd.f32 0.0, %v838
      %v840 = vpop.f32.mrf.mxu0
      %841 = vmatprep.mubr.bf16.mxu0 0
      %842 = vmatmul.mubr.bf16.gmra.mxu0 %v718
      %v843 = vpop.f32.mrf.mxu0
      %v844 = vadd.f32 0.0, %v843
      %v845 = vpop.f32.mrf.mxu0
      %v846 = vpop.f32.mrf.mxu0
      %v847 = vadd.f32 0.0, %v846
      %v848 = vpop.f32.mrf.mxu0
      %849 = vmatprep.mubr.bf16.mxu0 0
      %850 = vmatmul.mubr.bf16.gmra.mxu0 %v721
      %v851 = vpop.f32.mrf.mxu0
      %v852 = vadd.f32 0.0, %v851
      %v853 = vpop.f32.mrf.mxu0
      %v854 = vpop.f32.mrf.mxu0
      %v855 = vadd.f32 0.0, %v854
      %v856 = vpop.f32.mrf.mxu0
      %857 = vmatprep.mubr.bf16.mxu0 0
      %858 = vmatmul.mubr.bf16.gmra.mxu0 %v724
      %v859 = vpop.f32.mrf.mxu0
      %v860 = vadd.f32 0.0, %v859
      %v861 = vpop.f32.mrf.mxu0
      %v862 = vpop.f32.mrf.mxu0
      %v863 = vadd.f32 0.0, %v862
      %v864 = vpop.f32.mrf.mxu0
      %865 = vmatprep.mubr.bf16.mxu0 0
      %866 = vmatmul.mubr.bf16.gmra.mxu0 %v727
      %v867 = vpop.f32.mrf.mxu0
      %v868 = vadd.f32 0.0, %v867
      %v869 = vpop.f32.mrf.mxu0
      %v870 = vpop.f32.mrf.mxu0
      %v871 = vadd.f32 0.0, %v870
      %v872 = vpop.f32.mrf.mxu0
      %873 = vmatprep.mubr.bf16.mxu0 0
      %874 = vmatmul.mubr.bf16.gmra.mxu0 %v730
      %v875 = vpop.f32.mrf.mxu0
      %v876 = vadd.f32 0.0, %v875
      %v877 = vpop.f32.mrf.mxu0
      %v878 = vpop.f32.mrf.mxu0
      %v879 = vadd.f32 0.0, %v878
      %v880 = vpop.f32.mrf.mxu0
      %881 = vmatprep.mubr.bf16.mxu0 0
      %882 = vmatmul.mubr.bf16.gmra.mxu0 %v733
      %v883 = vpop.f32.mrf.mxu0
      %v884 = vadd.f32 0.0, %v883
      %v885 = vpop.f32.mrf.mxu0
      %v886 = vpop.f32.mrf.mxu0
      %v887 = vadd.f32 0.0, %v886
      %v888 = vpop.f32.mrf.mxu0
      %889 = vmatprep.mubr.bf16.mxu0 0
      %890 = vmatmul.mubr.bf16.gmra.mxu0 %v736
      %v891 = vpop.f32.mrf.mxu0
      %v892 = vadd.f32 0.0, %v891
      %v893 = vpop.f32.mrf.mxu0
      %v894 = vpop.f32.mrf.mxu0
      %v895 = vadd.f32 0.0, %v894
      %v896 = vpop.f32.mrf.mxu0
      %897 = vmatprep.mubr.bf16.mxu0 0
      %898 = vmatmul.mubr.bf16.gmra.mxu0 %v739
      %v899 = vpop.f32.mrf.mxu0
      %v900 = vadd.f32 0.0, %v899
      %v901 = vpop.f32.mrf.mxu0
      %v902 = vpop.f32.mrf.mxu0
      %v903 = vadd.f32 0.0, %v902
      %v904 = vpop.f32.mrf.mxu0
      %905 = vdwg.mxu0
      %v938 = vunpack.c.l.b16 %v200
      %v939 = vunpack.c.l.b16 %v201
      %v940 = vunpack.c.l.b16 %v203
      %v941 = vunpack.c.l.b16 %v204
      %v942 = vunpack.c.l.b16 %v206
      %v943 = vunpack.c.l.b16 %v207
      %v944 = vunpack.c.l.b16 %v209
      %v945 = vunpack.c.l.b16 %v210
      %v946 = vunpack.c.l.b16 %v212
      %v947 = vunpack.c.l.b16 %v213
      %v948 = vunpack.c.l.b16 %v215
      %v949 = vunpack.c.l.b16 %v216
      %v950 = vunpack.c.l.b16 %v218
      %v951 = vunpack.c.l.b16 %v219
      %v952 = vunpack.c.l.b16 %v221
      %v953 = vunpack.c.l.b16 %v222
      %v954 = vunpack.c.l.b16 %v224
      %v955 = vunpack.c.l.b16 %v225
      %v956 = vunpack.c.l.b16 %v227
      %v957 = vunpack.c.l.b16 %v228
      %v958 = vunpack.c.l.b16 %v230
      %v959 = vunpack.c.l.b16 %v231
      %v960 = vunpack.c.l.b16 %v233
      %v961 = vunpack.c.l.b16 %v234
      %v962 = vunpack.c.l.b16 %v236
      %v963 = vunpack.c.l.b16 %v237
      %v964 = vunpack.c.l.b16 %v239
      %v965 = vunpack.c.l.b16 %v240
      %v966 = vunpack.c.l.b16 %v242
      %v967 = vunpack.c.l.b16 %v243
      %v968 = vunpack.c.l.b16 %v245
      %v969 = vunpack.c.l.b16 %v246
      %v970 = vpack.c.b16 %v939, %v938
      %v971 = vpack.c.b16 %v941, %v940
      %v972 = vpack.c.b16 %v943, %v942
      %v973 = vpack.c.b16 %v945, %v944
      %v974 = vpack.c.b16 %v947, %v946
      %v975 = vpack.c.b16 %v949, %v948
      %v976 = vpack.c.b16 %v951, %v950
      %v977 = vpack.c.b16 %v953, %v952
      %v978 = vpack.c.b16 %v955, %v954
      %v979 = vpack.c.b16 %v957, %v956
      %v980 = vpack.c.b16 %v959, %v958
      %v981 = vpack.c.b16 %v961, %v960
      %v982 = vpack.c.b16 %v963, %v962
      %v983 = vpack.c.b16 %v965, %v964
      %v984 = vpack.c.b16 %v967, %v966
      %v985 = vpack.c.b16 %v969, %v968
      %v987 = vsel %vm692, %v970, 0
      %v990 = vsel %vm692, %v971, 0
      %v993 = vsel %vm692, %v972, 0
      %v996 = vsel %vm692, %v973, 0
      %v999 = vsel %vm692, %v974, 0
      %v1002 = vsel %vm692, %v975, 0
      %v1005 = vsel %vm692, %v976, 0
      %v1008 = vsel %vm692, %v977, 0
      %v1011 = vsel %vm692, %v978, 0
      %v1014 = vsel %vm692, %v979, 0
      %v1017 = vsel %vm692, %v980, 0
      %v1020 = vsel %vm692, %v981, 0
      %v1023 = vsel %vm692, %v982, 0
      %v1026 = vsel %vm692, %v983, 0
      %v1029 = vsel %vm692, %v984, 0
      %v1032 = vsel %vm692, %v985, 0
      %v1035 = vsel %vm741, %v254, 0
      %1037 = vmatprep.subr.bf16.mxu0 0
      %1038 = vmatpush1.bf16.msra.mxu0 0
      %1039 = vmatprep.subr.bf16.mxu0 0
      %1040 = vmatpush1.bf16.msra.mxu0 0
      %1041 = vmatprep.subr.bf16.mxu0 0
      %1042 = vmatpush1.bf16.msra.mxu0 0
      %1043 = vmatprep.subr.bf16.mxu0 0
      %1044 = vmatpush1.bf16.msra.mxu0 0
      %1045 = vmatprep.subr.bf16.mxu0 0
      %1046 = vmatpush1.bf16.msra.mxu0 0
      %1047 = vmatprep.subr.bf16.mxu0 0
      %1048 = vmatpush1.bf16.msra.mxu0 0
      %1049 = vmatprep.subr.bf16.mxu0 0
      %1050 = vmatpush1.bf16.msra.mxu0 0
      %1051 = vmatprep.subr.bf16.mxu0 0
      %1052 = vmatpush1.bf16.msra.mxu0 %v1035
      %1053 = vmatprep.subr.bf16.mxu0 0
      %1054 = vmatpush2.bf16.msra.mxu0 0
      %1055 = vmatprep.subr.bf16.mxu0 0
      %1056 = vmatpush2.bf16.msra.mxu0 0
      %1057 = vmatprep.subr.bf16.mxu0 0
      %1058 = vmatpush2.bf16.msra.mxu0 0
      %1059 = vmatprep.subr.bf16.mxu0 0
      %1060 = vmatpush2.bf16.msra.mxu0 0
      %1061 = vmatprep.subr.bf16.mxu0 0
      %1062 = vmatpush2.bf16.msra.mxu0 0
      %1063 = vmatprep.subr.bf16.mxu0 0
      %1064 = vmatpush2.bf16.msra.mxu0 0
      %1065 = vmatprep.subr.bf16.mxu0 0
      %1066 = vmatpush2.bf16.msra.mxu0 0
      %1067 = vmatprep.subr.bf16.mxu0 0
      %1068 = vmatpush2.bf16.msra.mxu0 0
      %1069 = vmatprep.mubr.bf16.mxu0 0
      %1070 = vmatmul.mubr.bf16.gmra.mxu0 %v987
      %v1071 = vpop.f32.mrf.mxu0
      %v1072 = vadd.f32 %v780, %v1071
      %v1073 = vpop.f32.mrf.mxu0
      %v1074 = vpop.f32.mrf.mxu0
      %v1075 = vadd.f32 %v783, %v1074
      %v1076 = vpop.f32.mrf.mxu0
      %1077 = vmatprep.mubr.bf16.mxu0 0
      %1078 = vmatmul.mubr.bf16.gmra.mxu0 %v990
      %v1079 = vpop.f32.mrf.mxu0
      %v1080 = vadd.f32 %v788, %v1079
      %v1081 = vpop.f32.mrf.mxu0
      %v1082 = vpop.f32.mrf.mxu0
      %v1083 = vadd.f32 %v791, %v1082
      %v1084 = vpop.f32.mrf.mxu0
      %1085 = vmatprep.mubr.bf16.mxu0 0
      %1086 = vmatmul.mubr.bf16.gmra.mxu0 %v993
      %v1087 = vpop.f32.mrf.mxu0
      %v1088 = vadd.f32 %v796, %v1087
      %v1089 = vpop.f32.mrf.mxu0
      %v1090 = vpop.f32.mrf.mxu0
      %v1091 = vadd.f32 %v799, %v1090
      %v1092 = vpop.f32.mrf.mxu0
      %1093 = vmatprep.mubr.bf16.mxu0 0
      %1094 = vmatmul.mubr.bf16.gmra.mxu0 %v996
      %v1095 = vpop.f32.mrf.mxu0
      %v1096 = vadd.f32 %v804, %v1095
      %v1097 = vpop.f32.mrf.mxu0
      %v1098 = vpop.f32.mrf.mxu0
      %v1099 = vadd.f32 %v807, %v1098
      %v1100 = vpop.f32.mrf.mxu0
      %1101 = vmatprep.mubr.bf16.mxu0 0
      %1102 = vmatmul.mubr.bf16.gmra.mxu0 %v999
      %v1103 = vpop.f32.mrf.mxu0
      %v1104 = vadd.f32 %v812, %v1103
      %v1105 = vpop.f32.mrf.mxu0
      %v1106 = vpop.f32.mrf.mxu0
      %v1107 = vadd.f32 %v815, %v1106
      %v1108 = vpop.f32.mrf.mxu0
      %1109 = vmatprep.mubr.bf16.mxu0 0
      %1110 = vmatmul.mubr.bf16.gmra.mxu0 %v1002
      %v1111 = vpop.f32.mrf.mxu0
      %v1112 = vadd.f32 %v820, %v1111
      %v1113 = vpop.f32.mrf.mxu0
      %v1114 = vpop.f32.mrf.mxu0
      %v1115 = vadd.f32 %v823, %v1114
      %v1116 = vpop.f32.mrf.mxu0
      %1117 = vmatprep.mubr.bf16.mxu0 0
      %1118 = vmatmul.mubr.bf16.gmra.mxu0 %v1005
      %v1119 = vpop.f32.mrf.mxu0
      %v1120 = vadd.f32 %v828, %v1119
      %v1121 = vpop.f32.mrf.mxu0
      %v1122 = vpop.f32.mrf.mxu0
      %v1123 = vadd.f32 %v831, %v1122
      %v1124 = vpop.f32.mrf.mxu0
      %1125 = vmatprep.mubr.bf16.mxu0 0
      %1126 = vmatmul.mubr.bf16.gmra.mxu0 %v1008
      %v1127 = vpop.f32.mrf.mxu0
      %v1128 = vadd.f32 %v836, %v1127
      %v1129 = vpop.f32.mrf.mxu0
      %v1130 = vpop.f32.mrf.mxu0
      %v1131 = vadd.f32 %v839, %v1130
      %v1132 = vpop.f32.mrf.mxu0
      %1133 = vmatprep.mubr.bf16.mxu0 0
      %1134 = vmatmul.mubr.bf16.gmra.mxu0 %v1011
      %v1135 = vpop.f32.mrf.mxu0
      %v1136 = vadd.f32 %v844, %v1135
      %v1137 = vpop.f32.mrf.mxu0
      %v1138 = vpop.f32.mrf.mxu0
      %v1139 = vadd.f32 %v847, %v1138
      %v1140 = vpop.f32.mrf.mxu0
      %1141 = vmatprep.mubr.bf16.mxu0 0
      %1142 = vmatmul.mubr.bf16.gmra.mxu0 %v1014
      %v1143 = vpop.f32.mrf.mxu0
      %v1144 = vadd.f32 %v852, %v1143
      %v1145 = vpop.f32.mrf.mxu0
      %v1146 = vpop.f32.mrf.mxu0
      %v1147 = vadd.f32 %v855, %v1146
      %v1148 = vpop.f32.mrf.mxu0
      %1149 = vmatprep.mubr.bf16.mxu0 0
      %1150 = vmatmul.mubr.bf16.gmra.mxu0 %v1017
      %v1151 = vpop.f32.mrf.mxu0
      %v1152 = vadd.f32 %v860, %v1151
      %v1153 = vpop.f32.mrf.mxu0
      %v1154 = vpop.f32.mrf.mxu0
      %v1155 = vadd.f32 %v863, %v1154
      %v1156 = vpop.f32.mrf.mxu0
      %1157 = vmatprep.mubr.bf16.mxu0 0
      %1158 = vmatmul.mubr.bf16.gmra.mxu0 %v1020
      %v1159 = vpop.f32.mrf.mxu0
      %v1160 = vadd.f32 %v868, %v1159
      %v1161 = vpop.f32.mrf.mxu0
      %v1162 = vpop.f32.mrf.mxu0
      %v1163 = vadd.f32 %v871, %v1162
      %v1164 = vpop.f32.mrf.mxu0
      %1165 = vmatprep.mubr.bf16.mxu0 0
      %1166 = vmatmul.mubr.bf16.gmra.mxu0 %v1023
      %v1167 = vpop.f32.mrf.mxu0
      %v1168 = vadd.f32 %v876, %v1167
      %v1169 = vpop.f32.mrf.mxu0
      %v1170 = vpop.f32.mrf.mxu0
      %v1171 = vadd.f32 %v879, %v1170
      %v1172 = vpop.f32.mrf.mxu0
      %1173 = vmatprep.mubr.bf16.mxu0 0
      %1174 = vmatmul.mubr.bf16.gmra.mxu0 %v1026
      %v1175 = vpop.f32.mrf.mxu0
      %v1176 = vadd.f32 %v884, %v1175
      %v1177 = vpop.f32.mrf.mxu0
      %v1178 = vpop.f32.mrf.mxu0
      %v1179 = vadd.f32 %v887, %v1178
      %v1180 = vpop.f32.mrf.mxu0
      %1181 = vmatprep.mubr.bf16.mxu0 0
      %1182 = vmatmul.mubr.bf16.gmra.mxu0 %v1029
      %v1183 = vpop.f32.mrf.mxu0
      %v1184 = vadd.f32 %v892, %v1183
      %v1185 = vpop.f32.mrf.mxu0
      %v1186 = vpop.f32.mrf.mxu0
      %v1187 = vadd.f32 %v895, %v1186
      %v1188 = vpop.f32.mrf.mxu0
      %1189 = vmatprep.mubr.bf16.mxu0 0
      %1190 = vmatmul.mubr.bf16.gmra.mxu0 %v1032
      %v1191 = vpop.f32.mrf.mxu0
      %v1192 = vadd.f32 %v900, %v1191
      %v1193 = vpop.f32.mrf.mxu0
      %v1194 = vpop.f32.mrf.mxu0
      %v1195 = vadd.f32 %v903, %v1194
      %v1196 = vpop.f32.mrf.mxu0
      %1197 = vdwg.mxu0
      %vm1214 = vcmask 1042432
      %vm1215 = vcmask 1046532
      %vm1216 = vmor %vm1214, %vm1215
      %v1217 = vrot.slane %v200, 5
      %v1218 = vrot.slane %v1217, 4
      %v1219 = vrot.slane %v201, 5
      %v1220 = vsel %vm1216, %v1218, %v1219
      %v1221 = vrot.slane %v1219, 4
      %v1222 = vrot.slane %v202, 5
      %v1223 = vsel %vm1216, %v1221, %v1222
      %v1224 = vrot.slane %v203, 5
      %v1225 = vrot.slane %v1224, 4
      %v1226 = vrot.slane %v204, 5
      %v1227 = vsel %vm1216, %v1225, %v1226
      %v1228 = vrot.slane %v1226, 4
      %v1229 = vrot.slane %v205, 5
      %v1230 = vsel %vm1216, %v1228, %v1229
      %v1231 = vrot.slane %v206, 5
      %v1232 = vrot.slane %v1231, 4
      %v1233 = vrot.slane %v207, 5
      %v1234 = vsel %vm1216, %v1232, %v1233
      %v1235 = vrot.slane %v1233, 4
      %v1236 = vrot.slane %v208, 5
      %v1237 = vsel %vm1216, %v1235, %v1236
      %v1238 = vrot.slane %v209, 5
      %v1239 = vrot.slane %v1238, 4
      %v1240 = vrot.slane %v210, 5
      %v1241 = vsel %vm1216, %v1239, %v1240
      %v1242 = vrot.slane %v1240, 4
      %v1243 = vrot.slane %v211, 5
      %v1244 = vsel %vm1216, %v1242, %v1243
      %v1245 = vrot.slane %v212, 5
      %v1246 = vrot.slane %v1245, 4
      %v1247 = vrot.slane %v213, 5
      %v1248 = vsel %vm1216, %v1246, %v1247
      %v1249 = vrot.slane %v1247, 4
      %v1250 = vrot.slane %v214, 5
      %v1251 = vsel %vm1216, %v1249, %v1250
      %v1252 = vrot.slane %v215, 5
      %v1253 = vrot.slane %v1252, 4
      %v1254 = vrot.slane %v216, 5
      %v1255 = vsel %vm1216, %v1253, %v1254
      %v1256 = vrot.slane %v1254, 4
      %v1257 = vrot.slane %v217, 5
      %v1258 = vsel %vm1216, %v1256, %v1257
      %v1259 = vrot.slane %v218, 5
      %v1260 = vrot.slane %v1259, 4
      %v1261 = vrot.slane %v219, 5
      %v1262 = vsel %vm1216, %v1260, %v1261
      %v1263 = vrot.slane %v1261, 4
      %v1264 = vrot.slane %v220, 5
      %v1265 = vsel %vm1216, %v1263, %v1264
      %v1266 = vrot.slane %v221, 5
      %v1267 = vrot.slane %v1266, 4
      %v1268 = vrot.slane %v222, 5
      %v1269 = vsel %vm1216, %v1267, %v1268
      %v1270 = vrot.slane %v1268, 4
      %v1271 = vrot.slane %v223, 5
      %v1272 = vsel %vm1216, %v1270, %v1271
      %v1273 = vrot.slane %v224, 5
      %v1274 = vrot.slane %v1273, 4
      %v1275 = vrot.slane %v225, 5
      %v1276 = vsel %vm1216, %v1274, %v1275
      %v1277 = vrot.slane %v1275, 4
      %v1278 = vrot.slane %v226, 5
      %v1279 = vsel %vm1216, %v1277, %v1278
      %v1280 = vrot.slane %v227, 5
      %v1281 = vrot.slane %v1280, 4
      %v1282 = vrot.slane %v228, 5
      %v1283 = vsel %vm1216, %v1281, %v1282
      %v1284 = vrot.slane %v1282, 4
      %v1285 = vrot.slane %v229, 5
      %v1286 = vsel %vm1216, %v1284, %v1285
      %v1287 = vrot.slane %v230, 5
      %v1288 = vrot.slane %v1287, 4
      %v1289 = vrot.slane %v231, 5
      %v1290 = vsel %vm1216, %v1288, %v1289
      %v1291 = vrot.slane %v1289, 4
      %v1292 = vrot.slane %v232, 5
      %v1293 = vsel %vm1216, %v1291, %v1292
      %v1294 = vrot.slane %v233, 5
      %v1295 = vrot.slane %v1294, 4
      %v1296 = vrot.slane %v234, 5
      %v1297 = vsel %vm1216, %v1295, %v1296
      %v1298 = vrot.slane %v1296, 4
      %v1299 = vrot.slane %v235, 5
      %v1300 = vsel %vm1216, %v1298, %v1299
      %v1301 = vrot.slane %v236, 5
      %v1302 = vrot.slane %v1301, 4
      %v1303 = vrot.slane %v237, 5
      %v1304 = vsel %vm1216, %v1302, %v1303
      %v1305 = vrot.slane %v1303, 4
      %v1306 = vrot.slane %v238, 5
      %v1307 = vsel %vm1216, %v1305, %v1306
      %v1308 = vrot.slane %v239, 5
      %v1309 = vrot.slane %v1308, 4
      %v1310 = vrot.slane %v240, 5
      %v1311 = vsel %vm1216, %v1309, %v1310
      %v1312 = vrot.slane %v1310, 4
      %v1313 = vrot.slane %v241, 5
      %v1314 = vsel %vm1216, %v1312, %v1313
      %v1315 = vrot.slane %v242, 5
      %v1316 = vrot.slane %v1315, 4
      %v1317 = vrot.slane %v243, 5
      %v1318 = vsel %vm1216, %v1316, %v1317
      %v1319 = vrot.slane %v1317, 4
      %v1320 = vrot.slane %v244, 5
      %v1321 = vsel %vm1216, %v1319, %v1320
      %v1322 = vrot.slane %v245, 5
      %v1323 = vrot.slane %v1322, 4
      %v1324 = vrot.slane %v246, 5
      %v1325 = vsel %vm1216, %v1323, %v1324
      %v1326 = vrot.slane %v1324, 4
      %v1327 = vrot.slane %v247, 5
      %v1328 = vsel %vm1216, %v1326, %v1327
      %s1329 = scalar_lea.vmem %s1, 4
      %v1330 = vld [vmem:[%s1329] sm:$0x3]
      %v1331 = vunpack.c.l.b16 %v1220
      %v1332 = vunpack.c.l.b16 %v1223
      %v1333 = vunpack.c.l.b16 %v1227
      %v1334 = vunpack.c.l.b16 %v1230
      %v1335 = vunpack.c.l.b16 %v1234
      %v1336 = vunpack.c.l.b16 %v1237
      %v1337 = vunpack.c.l.b16 %v1241
      %v1338 = vunpack.c.l.b16 %v1244
      %v1339 = vunpack.c.l.b16 %v1248
      %v1340 = vunpack.c.l.b16 %v1251
      %v1341 = vunpack.c.l.b16 %v1255
      %v1342 = vunpack.c.l.b16 %v1258
      %v1343 = vunpack.c.l.b16 %v1262
      %v1344 = vunpack.c.l.b16 %v1265
      %v1345 = vunpack.c.l.b16 %v1269
      %v1346 = vunpack.c.l.b16 %v1272
      %v1347 = vunpack.c.l.b16 %v1276
      %v1348 = vunpack.c.l.b16 %v1279
      %v1349 = vunpack.c.l.b16 %v1283
      %v1350 = vunpack.c.l.b16 %v1286
      %v1351 = vunpack.c.l.b16 %v1290
      %v1352 = vunpack.c.l.b16 %v1293
      %v1353 = vunpack.c.l.b16 %v1297
      %v1354 = vunpack.c.l.b16 %v1300
      %v1355 = vunpack.c.l.b16 %v1304
      %v1356 = vunpack.c.l.b16 %v1307
      %v1357 = vunpack.c.l.b16 %v1311
      %v1358 = vunpack.c.l.b16 %v1314
      %v1359 = vunpack.c.l.b16 %v1318
      %v1360 = vunpack.c.l.b16 %v1321
      %v1361 = vunpack.c.l.b16 %v1325
      %v1362 = vunpack.c.l.b16 %v1328
      %v1363 = vpack.c.b16 %v1332, %v1331
      %v1364 = vpack.c.b16 %v1334, %v1333
      %v1365 = vpack.c.b16 %v1336, %v1335
      %v1366 = vpack.c.b16 %v1338, %v1337
      %v1367 = vpack.c.b16 %v1340, %v1339
      %v1368 = vpack.c.b16 %v1342, %v1341
      %v1369 = vpack.c.b16 %v1344, %v1343
      %v1370 = vpack.c.b16 %v1346, %v1345
      %v1371 = vpack.c.b16 %v1348, %v1347
      %v1372 = vpack.c.b16 %v1350, %v1349
      %v1373 = vpack.c.b16 %v1352, %v1351
      %v1374 = vpack.c.b16 %v1354, %v1353
      %v1375 = vpack.c.b16 %v1356, %v1355
      %v1376 = vpack.c.b16 %v1358, %v1357
      %v1377 = vpack.c.b16 %v1360, %v1359
      %v1378 = vpack.c.b16 %v1362, %v1361
      %v1380 = vsel %vm692, %v1363, 0
      %v1383 = vsel %vm692, %v1364, 0
      %v1386 = vsel %vm692, %v1365, 0
      %v1389 = vsel %vm692, %v1366, 0
      %v1392 = vsel %vm692, %v1367, 0
      %v1395 = vsel %vm692, %v1368, 0
      %v1398 = vsel %vm692, %v1369, 0
      %v1401 = vsel %vm692, %v1370, 0
      %v1404 = vsel %vm692, %v1371, 0
      %v1407 = vsel %vm692, %v1372, 0
      %v1410 = vsel %vm692, %v1373, 0
      %v1413 = vsel %vm692, %v1374, 0
      %v1416 = vsel %vm692, %v1375, 0
      %v1419 = vsel %vm692, %v1376, 0
      %v1422 = vsel %vm692, %v1377, 0
      %v1425 = vsel %vm692, %v1378, 0
      %v1428 = vsel %vm741, %v1330, 0
      %1430 = vmatprep.subr.bf16.mxu0 0
      %1431 = vmatpush1.bf16.msra.mxu0 0
      %1432 = vmatprep.subr.bf16.mxu0 0
      %1433 = vmatpush1.bf16.msra.mxu0 0
      %1434 = vmatprep.subr.bf16.mxu0 0
      %1435 = vmatpush1.bf16.msra.mxu0 0
      %1436 = vmatprep.subr.bf16.mxu0 0
      %1437 = vmatpush1.bf16.msra.mxu0 0
      %1438 = vmatprep.subr.bf16.mxu0 0
      %1439 = vmatpush1.bf16.msra.mxu0 0
      %1440 = vmatprep.subr.bf16.mxu0 0
      %1441 = vmatpush1.bf16.msra.mxu0 0
      %1442 = vmatprep.subr.bf16.mxu0 0
      %1443 = vmatpush1.bf16.msra.mxu0 0
      %1444 = vmatprep.subr.bf16.mxu0 0
      %1445 = vmatpush1.bf16.msra.mxu0 %v1428
      %1446 = vmatprep.subr.bf16.mxu0 0
      %1447 = vmatpush2.bf16.msra.mxu0 0
      %1448 = vmatprep.subr.bf16.mxu0 0
      %1449 = vmatpush2.bf16.msra.mxu0 0
      %1450 = vmatprep.subr.bf16.mxu0 0
      %1451 = vmatpush2.bf16.msra.mxu0 0
      %1452 = vmatprep.subr.bf16.mxu0 0
      %1453 = vmatpush2.bf16.msra.mxu0 0
      %1454 = vmatprep.subr.bf16.mxu0 0
      %1455 = vmatpush2.bf16.msra.mxu0 0
      %1456 = vmatprep.subr.bf16.mxu0 0
      %1457 = vmatpush2.bf16.msra.mxu0 0
      %1458 = vmatprep.subr.bf16.mxu0 0
      %1459 = vmatpush2.bf16.msra.mxu0 0
      %1460 = vmatprep.subr.bf16.mxu0 0
      %1461 = vmatpush2.bf16.msra.mxu0 0
      %1462 = vmatprep.mubr.bf16.mxu0 0
      %1463 = vmatmul.mubr.bf16.gmra.mxu0 %v1380
      %v1464 = vpop.f32.mrf.mxu0
      %v1465 = vadd.f32 0.0, %v1464
      %v1466 = vpop.f32.mrf.mxu0
      %v1467 = vpop.f32.mrf.mxu0
      %v1468 = vadd.f32 0.0, %v1467
      %v1469 = vpop.f32.mrf.mxu0
      %1470 = vmatprep.mubr.bf16.mxu0 0
      %1471 = vmatmul.mubr.bf16.gmra.mxu0 %v1383
      %v1472 = vpop.f32.mrf.mxu0
      %v1473 = vadd.f32 0.0, %v1472
      %v1474 = vpop.f32.mrf.mxu0
      %v1475 = vpop.f32.mrf.mxu0
      %v1476 = vadd.f32 0.0, %v1475
      %v1477 = vpop.f32.mrf.mxu0
      %1478 = vmatprep.mubr.bf16.mxu0 0
      %1479 = vmatmul.mubr.bf16.gmra.mxu0 %v1386
      %v1480 = vpop.f32.mrf.mxu0
      %v1481 = vadd.f32 0.0, %v1480
      %v1482 = vpop.f32.mrf.mxu0
      %v1483 = vpop.f32.mrf.mxu0
      %v1484 = vadd.f32 0.0, %v1483
      %v1485 = vpop.f32.mrf.mxu0
      %1486 = vmatprep.mubr.bf16.mxu0 0
      %1487 = vmatmul.mubr.bf16.gmra.mxu0 %v1389
      %v1488 = vpop.f32.mrf.mxu0
      %v1489 = vadd.f32 0.0, %v1488
      %v1490 = vpop.f32.mrf.mxu0
      %v1491 = vpop.f32.mrf.mxu0
      %v1492 = vadd.f32 0.0, %v1491
      %v1493 = vpop.f32.mrf.mxu0
      %1494 = vmatprep.mubr.bf16.mxu0 0
      %1495 = vmatmul.mubr.bf16.gmra.mxu0 %v1392
      %v1496 = vpop.f32.mrf.mxu0
      %v1497 = vadd.f32 0.0, %v1496
      %v1498 = vpop.f32.mrf.mxu0
      %v1499 = vpop.f32.mrf.mxu0
      %v1500 = vadd.f32 0.0, %v1499
      %v1501 = vpop.f32.mrf.mxu0
      %1502 = vmatprep.mubr.bf16.mxu0 0
      %1503 = vmatmul.mubr.bf16.gmra.mxu0 %v1395
      %v1504 = vpop.f32.mrf.mxu0
      %v1505 = vadd.f32 0.0, %v1504
      %v1506 = vpop.f32.mrf.mxu0
      %v1507 = vpop.f32.mrf.mxu0
      %v1508 = vadd.f32 0.0, %v1507
      %v1509 = vpop.f32.mrf.mxu0
      %1510 = vmatprep.mubr.bf16.mxu0 0
      %1511 = vmatmul.mubr.bf16.gmra.mxu0 %v1398
      %v1512 = vpop.f32.mrf.mxu0
      %v1513 = vadd.f32 0.0, %v1512
      %v1514 = vpop.f32.mrf.mxu0
      %v1515 = vpop.f32.mrf.mxu0
      %v1516 = vadd.f32 0.0, %v1515
      %v1517 = vpop.f32.mrf.mxu0
      %1518 = vmatprep.mubr.bf16.mxu0 0
      %1519 = vmatmul.mubr.bf16.gmra.mxu0 %v1401
      %v1520 = vpop.f32.mrf.mxu0
      %v1521 = vadd.f32 0.0, %v1520
      %v1522 = vpop.f32.mrf.mxu0
      %v1523 = vpop.f32.mrf.mxu0
      %v1524 = vadd.f32 0.0, %v1523
      %v1525 = vpop.f32.mrf.mxu0
      %1526 = vmatprep.mubr.bf16.mxu0 0
      %1527 = vmatmul.mubr.bf16.gmra.mxu0 %v1404
      %v1528 = vpop.f32.mrf.mxu0
      %v1529 = vadd.f32 0.0, %v1528
      %v1530 = vpop.f32.mrf.mxu0
      %v1531 = vpop.f32.mrf.mxu0
      %v1532 = vadd.f32 0.0, %v1531
      %v1533 = vpop.f32.mrf.mxu0
      %1534 = vmatprep.mubr.bf16.mxu0 0
      %1535 = vmatmul.mubr.bf16.gmra.mxu0 %v1407
      %v1536 = vpop.f32.mrf.mxu0
      %v1537 = vadd.f32 0.0, %v1536
      %v1538 = vpop.f32.mrf.mxu0
      %v1539 = vpop.f32.mrf.mxu0
      %v1540 = vadd.f32 0.0, %v1539
      %v1541 = vpop.f32.mrf.mxu0
      %1542 = vmatprep.mubr.bf16.mxu0 0
      %1543 = vmatmul.mubr.bf16.gmra.mxu0 %v1410
      %v1544 = vpop.f32.mrf.mxu0
      %v1545 = vadd.f32 0.0, %v1544
      %v1546 = vpop.f32.mrf.mxu0
      %v1547 = vpop.f32.mrf.mxu0
      %v1548 = vadd.f32 0.0, %v1547
      %v1549 = vpop.f32.mrf.mxu0
      %1550 = vmatprep.mubr.bf16.mxu0 0
      %1551 = vmatmul.mubr.bf16.gmra.mxu0 %v1413
      %v1552 = vpop.f32.mrf.mxu0
      %v1553 = vadd.f32 0.0, %v1552
      %v1554 = vpop.f32.mrf.mxu0
      %v1555 = vpop.f32.mrf.mxu0
      %v1556 = vadd.f32 0.0, %v1555
      %v1557 = vpop.f32.mrf.mxu0
      %1558 = vmatprep.mubr.bf16.mxu0 0
      %1559 = vmatmul.mubr.bf16.gmra.mxu0 %v1416
      %v1560 = vpop.f32.mrf.mxu0
      %v1561 = vadd.f32 0.0, %v1560
      %v1562 = vpop.f32.mrf.mxu0
      %v1563 = vpop.f32.mrf.mxu0
      %v1564 = vadd.f32 0.0, %v1563
      %v1565 = vpop.f32.mrf.mxu0
      %1566 = vmatprep.mubr.bf16.mxu0 0
      %1567 = vmatmul.mubr.bf16.gmra.mxu0 %v1419
      %v1568 = vpop.f32.mrf.mxu0
      %v1569 = vadd.f32 0.0, %v1568
      %v1570 = vpop.f32.mrf.mxu0
      %v1571 = vpop.f32.mrf.mxu0
      %v1572 = vadd.f32 0.0, %v1571
      %v1573 = vpop.f32.mrf.mxu0
      %1574 = vmatprep.mubr.bf16.mxu0 0
      %1575 = vmatmul.mubr.bf16.gmra.mxu0 %v1422
      %v1576 = vpop.f32.mrf.mxu0
      %v1577 = vadd.f32 0.0, %v1576
      %v1578 = vpop.f32.mrf.mxu0
      %v1579 = vpop.f32.mrf.mxu0
      %v1580 = vadd.f32 0.0, %v1579
      %v1581 = vpop.f32.mrf.mxu0
      %1582 = vmatprep.mubr.bf16.mxu0 0
      %1583 = vmatmul.mubr.bf16.gmra.mxu0 %v1425
      %v1584 = vpop.f32.mrf.mxu0
      %v1585 = vadd.f32 0.0, %v1584
      %v1586 = vpop.f32.mrf.mxu0
      %v1587 = vpop.f32.mrf.mxu0
      %v1588 = vadd.f32 0.0, %v1587
      %v1589 = vpop.f32.mrf.mxu0
      %1590 = vdwg.mxu0
      %v1591 = vadd.f32 %v1072, %v1465
      %v1592 = vadd.f32 %v1075, %v1468
      %v1593 = vadd.f32 %v1080, %v1473
      %v1594 = vadd.f32 %v1083, %v1476
      %v1595 = vadd.f32 %v1088, %v1481
      %v1596 = vadd.f32 %v1091, %v1484
      %v1597 = vadd.f32 %v1096, %v1489
      %v1598 = vadd.f32 %v1099, %v1492
      %v1599 = vadd.f32 %v1104, %v1497
      %v1600 = vadd.f32 %v1107, %v1500
      %v1601 = vadd.f32 %v1112, %v1505
      %v1602 = vadd.f32 %v1115, %v1508
      %v1603 = vadd.f32 %v1120, %v1513
      %v1604 = vadd.f32 %v1123, %v1516
      %v1605 = vadd.f32 %v1128, %v1521
      %v1606 = vadd.f32 %v1131, %v1524
      %v1607 = vadd.f32 %v1136, %v1529
      %v1608 = vadd.f32 %v1139, %v1532
      %v1609 = vadd.f32 %v1144, %v1537
      %v1610 = vadd.f32 %v1147, %v1540
      %v1611 = vadd.f32 %v1152, %v1545
      %v1612 = vadd.f32 %v1155, %v1548
      %v1613 = vadd.f32 %v1160, %v1553
      %v1614 = vadd.f32 %v1163, %v1556
      %v1615 = vadd.f32 %v1168, %v1561
      %v1616 = vadd.f32 %v1171, %v1564
      %v1617 = vadd.f32 %v1176, %v1569
      %v1618 = vadd.f32 %v1179, %v1572
      %v1619 = vadd.f32 %v1184, %v1577
      %v1620 = vadd.f32 %v1187, %v1580
      %v1621 = vadd.f32 %v1192, %v1585
      %v1622 = vadd.f32 %v1195, %v1588
      %s1623 = scalar_lea.vmem %s1, 6
      %v1624 = vld [vmem:[%s1623] sm:$0x3]
      %v1627 = vunpack.c.l.b16 %v248
      %v1628 = vunpack.c.l.b16 %v249
      %v1629 = vpack.c.b16 %v1628, %v1627
      %v1631 = vsel %vm692, %v1629, 0
      %v1634 = vsel %vm741, %v1624, 0
      %1636 = vmatprep.subr.bf16.mxu0 0
      %1637 = vmatpush1.bf16.msra.mxu0 0
      %1638 = vmatprep.subr.bf16.mxu0 0
      %1639 = vmatpush1.bf16.msra.mxu0 0
      %1640 = vmatprep.subr.bf16.mxu0 0
      %1641 = vmatpush1.bf16.msra.mxu0 0
      %1642 = vmatprep.subr.bf16.mxu0 0
      %1643 = vmatpush1.bf16.msra.mxu0 0
      %1644 = vmatprep.subr.bf16.mxu0 0
      %1645 = vmatpush1.bf16.msra.mxu0 0
      %1646 = vmatprep.subr.bf16.mxu0 0
      %1647 = vmatpush1.bf16.msra.mxu0 0
      %1648 = vmatprep.subr.bf16.mxu0 0
      %1649 = vmatpush1.bf16.msra.mxu0 0
      %1650 = vmatprep.subr.bf16.mxu0 0
      %1651 = vmatpush1.bf16.msra.mxu0 %v1634
      %1652 = vmatprep.subr.bf16.mxu0 0
      %1653 = vmatpush2.bf16.msra.mxu0 0
      %1654 = vmatprep.subr.bf16.mxu0 0
      %1655 = vmatpush2.bf16.msra.mxu0 0
      %1656 = vmatprep.subr.bf16.mxu0 0
      %1657 = vmatpush2.bf16.msra.mxu0 0
      %1658 = vmatprep.subr.bf16.mxu0 0
      %1659 = vmatpush2.bf16.msra.mxu0 0
      %1660 = vmatprep.subr.bf16.mxu0 0
      %1661 = vmatpush2.bf16.msra.mxu0 0
      %1662 = vmatprep.subr.bf16.mxu0 0
      %1663 = vmatpush2.bf16.msra.mxu0 0
      %1664 = vmatprep.subr.bf16.mxu0 0
      %1665 = vmatpush2.bf16.msra.mxu0 0
      %1666 = vmatprep.subr.bf16.mxu0 0
      %1667 = vmatpush2.bf16.msra.mxu0 0
      %1668 = vmatprep.mubr.bf16.mxu0 0
      %1669 = vmatmul.mubr.bf16.gmra.mxu0 %v990
      %v1670 = vpop.f32.mrf.mxu0
      %v1671 = vadd.f32 0.0, %v1670
      %v1672 = vpop.f32.mrf.mxu0
      %v1673 = vpop.f32.mrf.mxu0
      %v1674 = vadd.f32 0.0, %v1673
      %v1675 = vpop.f32.mrf.mxu0
      %1676 = vmatprep.mubr.bf16.mxu0 0
      %1677 = vmatmul.mubr.bf16.gmra.mxu0 %v993
      %v1678 = vpop.f32.mrf.mxu0
      %v1679 = vadd.f32 0.0, %v1678
      %v1680 = vpop.f32.mrf.mxu0
      %v1681 = vpop.f32.mrf.mxu0
      %v1682 = vadd.f32 0.0, %v1681
      %v1683 = vpop.f32.mrf.mxu0
      %1684 = vmatprep.mubr.bf16.mxu0 0
      %1685 = vmatmul.mubr.bf16.gmra.mxu0 %v996
      %v1686 = vpop.f32.mrf.mxu0
      %v1687 = vadd.f32 0.0, %v1686
      %v1688 = vpop.f32.mrf.mxu0
      %v1689 = vpop.f32.mrf.mxu0
      %v1690 = vadd.f32 0.0, %v1689
      %v1691 = vpop.f32.mrf.mxu0
      %1692 = vmatprep.mubr.bf16.mxu0 0
      %1693 = vmatmul.mubr.bf16.gmra.mxu0 %v999
      %v1694 = vpop.f32.mrf.mxu0
      %v1695 = vadd.f32 0.0, %v1694
      %v1696 = vpop.f32.mrf.mxu0
      %v1697 = vpop.f32.mrf.mxu0
      %v1698 = vadd.f32 0.0, %v1697
      %v1699 = vpop.f32.mrf.mxu0
      %1700 = vmatprep.mubr.bf16.mxu0 0
      %1701 = vmatmul.mubr.bf16.gmra.mxu0 %v1002
      %v1702 = vpop.f32.mrf.mxu0
      %v1703 = vadd.f32 0.0, %v1702
      %v1704 = vpop.f32.mrf.mxu0
      %v1705 = vpop.f32.mrf.mxu0
      %v1706 = vadd.f32 0.0, %v1705
      %v1707 = vpop.f32.mrf.mxu0
      %1708 = vmatprep.mubr.bf16.mxu0 0
      %1709 = vmatmul.mubr.bf16.gmra.mxu0 %v1005
      %v1710 = vpop.f32.mrf.mxu0
      %v1711 = vadd.f32 0.0, %v1710
      %v1712 = vpop.f32.mrf.mxu0
      %v1713 = vpop.f32.mrf.mxu0
      %v1714 = vadd.f32 0.0, %v1713
      %v1715 = vpop.f32.mrf.mxu0
      %1716 = vmatprep.mubr.bf16.mxu0 0
      %1717 = vmatmul.mubr.bf16.gmra.mxu0 %v1008
      %v1718 = vpop.f32.mrf.mxu0
      %v1719 = vadd.f32 0.0, %v1718
      %v1720 = vpop.f32.mrf.mxu0
      %v1721 = vpop.f32.mrf.mxu0
      %v1722 = vadd.f32 0.0, %v1721
      %v1723 = vpop.f32.mrf.mxu0
      %1724 = vmatprep.mubr.bf16.mxu0 0
      %1725 = vmatmul.mubr.bf16.gmra.mxu0 %v1011
      %v1726 = vpop.f32.mrf.mxu0
      %v1727 = vadd.f32 0.0, %v1726
      %v1728 = vpop.f32.mrf.mxu0
      %v1729 = vpop.f32.mrf.mxu0
      %v1730 = vadd.f32 0.0, %v1729
      %v1731 = vpop.f32.mrf.mxu0
      %1732 = vmatprep.mubr.bf16.mxu0 0
      %1733 = vmatmul.mubr.bf16.gmra.mxu0 %v1014
      %v1734 = vpop.f32.mrf.mxu0
      %v1735 = vadd.f32 0.0, %v1734
      %v1736 = vpop.f32.mrf.mxu0
      %v1737 = vpop.f32.mrf.mxu0
      %v1738 = vadd.f32 0.0, %v1737
      %v1739 = vpop.f32.mrf.mxu0
      %1740 = vmatprep.mubr.bf16.mxu0 0
      %1741 = vmatmul.mubr.bf16.gmra.mxu0 %v1017
      %v1742 = vpop.f32.mrf.mxu0
      %v1743 = vadd.f32 0.0, %v1742
      %v1744 = vpop.f32.mrf.mxu0
      %v1745 = vpop.f32.mrf.mxu0
      %v1746 = vadd.f32 0.0, %v1745
      %v1747 = vpop.f32.mrf.mxu0
      %1748 = vmatprep.mubr.bf16.mxu0 0
      %1749 = vmatmul.mubr.bf16.gmra.mxu0 %v1020
      %v1750 = vpop.f32.mrf.mxu0
      %v1751 = vadd.f32 0.0, %v1750
      %v1752 = vpop.f32.mrf.mxu0
      %v1753 = vpop.f32.mrf.mxu0
      %v1754 = vadd.f32 0.0, %v1753
      %v1755 = vpop.f32.mrf.mxu0
      %1756 = vmatprep.mubr.bf16.mxu0 0
      %1757 = vmatmul.mubr.bf16.gmra.mxu0 %v1023
      %v1758 = vpop.f32.mrf.mxu0
      %v1759 = vadd.f32 0.0, %v1758
      %v1760 = vpop.f32.mrf.mxu0
      %v1761 = vpop.f32.mrf.mxu0
      %v1762 = vadd.f32 0.0, %v1761
      %v1763 = vpop.f32.mrf.mxu0
      %1764 = vmatprep.mubr.bf16.mxu0 0
      %1765 = vmatmul.mubr.bf16.gmra.mxu0 %v1026
      %v1766 = vpop.f32.mrf.mxu0
      %v1767 = vadd.f32 0.0, %v1766
      %v1768 = vpop.f32.mrf.mxu0
      %v1769 = vpop.f32.mrf.mxu0
      %v1770 = vadd.f32 0.0, %v1769
      %v1771 = vpop.f32.mrf.mxu0
      %1772 = vmatprep.mubr.bf16.mxu0 0
      %1773 = vmatmul.mubr.bf16.gmra.mxu0 %v1029
      %v1774 = vpop.f32.mrf.mxu0
      %v1775 = vadd.f32 0.0, %v1774
      %v1776 = vpop.f32.mrf.mxu0
      %v1777 = vpop.f32.mrf.mxu0
      %v1778 = vadd.f32 0.0, %v1777
      %v1779 = vpop.f32.mrf.mxu0
      %1780 = vmatprep.mubr.bf16.mxu0 0
      %1781 = vmatmul.mubr.bf16.gmra.mxu0 %v1032
      %v1782 = vpop.f32.mrf.mxu0
      %v1783 = vadd.f32 0.0, %v1782
      %v1784 = vpop.f32.mrf.mxu0
      %v1785 = vpop.f32.mrf.mxu0
      %v1786 = vadd.f32 0.0, %v1785
      %v1787 = vpop.f32.mrf.mxu0
      %1788 = vmatprep.mubr.bf16.mxu0 0
      %1789 = vmatmul.mubr.bf16.gmra.mxu0 %v1631
      %v1790 = vpop.f32.mrf.mxu0
      %v1791 = vadd.f32 0.0, %v1790
      %v1792 = vpop.f32.mrf.mxu0
      %v1793 = vpop.f32.mrf.mxu0
      %v1794 = vadd.f32 0.0, %v1793
      %v1795 = vpop.f32.mrf.mxu0
      %1796 = vdwg.mxu0
      %v1797 = vadd.f32 %v1591, %v1671
      %v1798 = vadd.f32 %v1592, %v1674
      %v1799 = vadd.f32 %v1593, %v1679
      %v1800 = vadd.f32 %v1594, %v1682
      %v1801 = vadd.f32 %v1595, %v1687
      %v1802 = vadd.f32 %v1596, %v1690
      %v1803 = vadd.f32 %v1597, %v1695
      %v1804 = vadd.f32 %v1598, %v1698
      %v1805 = vadd.f32 %v1599, %v1703
      %v1806 = vadd.f32 %v1600, %v1706
      %v1807 = vadd.f32 %v1601, %v1711
      %v1808 = vadd.f32 %v1602, %v1714
      %v1809 = vadd.f32 %v1603, %v1719
      %v1810 = vadd.f32 %v1604, %v1722
      %v1811 = vadd.f32 %v1605, %v1727
      %v1812 = vadd.f32 %v1606, %v1730
      %v1813 = vadd.f32 %v1607, %v1735
      %v1814 = vadd.f32 %v1608, %v1738
      %v1815 = vadd.f32 %v1609, %v1743
      %v1816 = vadd.f32 %v1610, %v1746
      %v1817 = vadd.f32 %v1611, %v1751
      %v1818 = vadd.f32 %v1612, %v1754
      %v1819 = vadd.f32 %v1613, %v1759
      %v1820 = vadd.f32 %v1614, %v1762
      %v1821 = vadd.f32 %v1615, %v1767
      %v1822 = vadd.f32 %v1616, %v1770
      %v1823 = vadd.f32 %v1617, %v1775
      %v1824 = vadd.f32 %v1618, %v1778
      %v1825 = vadd.f32 %v1619, %v1783
      %v1826 = vadd.f32 %v1620, %v1786
      %v1827 = vadd.f32 %v1621, %v1791
      %v1828 = vadd.f32 %v1622, %v1794
      %v1830 = vshrl.u32 %v248, 16
      %v1832 = vrot.slane %v1830, 4
      %v1833 = vshll.u32 %v248, 16
      %v1835 = vrot.slane %v1833, 5
      %v1836 = vor.u32 %v1832, %v1835
      %v1837 = vrot.slane %v1836, 4
      %v1839 = vshll.u32 %v249, 16
      %v1841 = vrot.slane %v1839, 5
      %v1842 = vsel %vm257, %v1837, %v1841
      %v1843 = vshrl.u32 %v249, 16
      %v1845 = vrot.slane %v1843, 4
      %v1846 = vor.u32 %v1845, %v1841
      %v1847 = vrot.slane %v1846, 4
      %v1849 = vshll.u32 %v250, 16
      %v1851 = vrot.slane %v1849, 5
      %v1852 = vsel %vm257, %v1847, %v1851
      %s1853 = scalar_lea.vmem %s1, 8
      %v1854 = vld [vmem:[%s1853] sm:$0x3]
      %v1855 = vunpack.c.l.b16 %v1842
      %v1856 = vunpack.c.l.b16 %v1852
      %v1857 = vpack.c.b16 %v1856, %v1855
      %v1859 = vsel %vm692, %v1857, 0
      %v1862 = vsel %vm741, %v1854, 0
      %1864 = vmatprep.subr.bf16.mxu0 0
      %1865 = vmatpush1.bf16.msra.mxu0 0
      %1866 = vmatprep.subr.bf16.mxu0 0
      %1867 = vmatpush1.bf16.msra.mxu0 0
      %1868 = vmatprep.subr.bf16.mxu0 0
      %1869 = vmatpush1.bf16.msra.mxu0 0
      %1870 = vmatprep.subr.bf16.mxu0 0
      %1871 = vmatpush1.bf16.msra.mxu0 0
      %1872 = vmatprep.subr.bf16.mxu0 0
      %1873 = vmatpush1.bf16.msra.mxu0 0
      %1874 = vmatprep.subr.bf16.mxu0 0
      %1875 = vmatpush1.bf16.msra.mxu0 0
      %1876 = vmatprep.subr.bf16.mxu0 0
      %1877 = vmatpush1.bf16.msra.mxu0 0
      %1878 = vmatprep.subr.bf16.mxu0 0
      %1879 = vmatpush1.bf16.msra.mxu0 %v1862
      %1880 = vmatprep.subr.bf16.mxu0 0
      %1881 = vmatpush2.bf16.msra.mxu0 0
      %1882 = vmatprep.subr.bf16.mxu0 0
      %1883 = vmatpush2.bf16.msra.mxu0 0
      %1884 = vmatprep.subr.bf16.mxu0 0
      %1885 = vmatpush2.bf16.msra.mxu0 0
      %1886 = vmatprep.subr.bf16.mxu0 0
      %1887 = vmatpush2.bf16.msra.mxu0 0
      %1888 = vmatprep.subr.bf16.mxu0 0
      %1889 = vmatpush2.bf16.msra.mxu0 0
      %1890 = vmatprep.subr.bf16.mxu0 0
      %1891 = vmatpush2.bf16.msra.mxu0 0
      %1892 = vmatprep.subr.bf16.mxu0 0
      %1893 = vmatpush2.bf16.msra.mxu0 0
      %1894 = vmatprep.subr.bf16.mxu0 0
      %1895 = vmatpush2.bf16.msra.mxu0 0
      %1896 = vmatprep.mubr.bf16.mxu0 0
      %1897 = vmatmul.mubr.bf16.gmra.mxu0 %v697
      %v1898 = vpop.f32.mrf.mxu0
      %v1899 = vadd.f32 0.0, %v1898
      %v1900 = vpop.f32.mrf.mxu0
      %v1901 = vpop.f32.mrf.mxu0
      %v1902 = vadd.f32 0.0, %v1901
      %v1903 = vpop.f32.mrf.mxu0
      %1904 = vmatprep.mubr.bf16.mxu0 0
      %1905 = vmatmul.mubr.bf16.gmra.mxu0 %v700
      %v1906 = vpop.f32.mrf.mxu0
      %v1907 = vadd.f32 0.0, %v1906
      %v1908 = vpop.f32.mrf.mxu0
      %v1909 = vpop.f32.mrf.mxu0
      %v1910 = vadd.f32 0.0, %v1909
      %v1911 = vpop.f32.mrf.mxu0
      %1912 = vmatprep.mubr.bf16.mxu0 0
      %1913 = vmatmul.mubr.bf16.gmra.mxu0 %v703
      %v1914 = vpop.f32.mrf.mxu0
      %v1915 = vadd.f32 0.0, %v1914
      %v1916 = vpop.f32.mrf.mxu0
      %v1917 = vpop.f32.mrf.mxu0
      %v1918 = vadd.f32 0.0, %v1917
      %v1919 = vpop.f32.mrf.mxu0
      %1920 = vmatprep.mubr.bf16.mxu0 0
      %1921 = vmatmul.mubr.bf16.gmra.mxu0 %v706
      %v1922 = vpop.f32.mrf.mxu0
      %v1923 = vadd.f32 0.0, %v1922
      %v1924 = vpop.f32.mrf.mxu0
      %v1925 = vpop.f32.mrf.mxu0
      %v1926 = vadd.f32 0.0, %v1925
      %v1927 = vpop.f32.mrf.mxu0
      %1928 = vmatprep.mubr.bf16.mxu0 0
      %1929 = vmatmul.mubr.bf16.gmra.mxu0 %v709
      %v1930 = vpop.f32.mrf.mxu0
      %v1931 = vadd.f32 0.0, %v1930
      %v1932 = vpop.f32.mrf.mxu0
      %v1933 = vpop.f32.mrf.mxu0
      %v1934 = vadd.f32 0.0, %v1933
      %v1935 = vpop.f32.mrf.mxu0
      %1936 = vmatprep.mubr.bf16.mxu0 0
      %1937 = vmatmul.mubr.bf16.gmra.mxu0 %v712
      %v1938 = vpop.f32.mrf.mxu0
      %v1939 = vadd.f32 0.0, %v1938
      %v1940 = vpop.f32.mrf.mxu0
      %v1941 = vpop.f32.mrf.mxu0
      %v1942 = vadd.f32 0.0, %v1941
      %v1943 = vpop.f32.mrf.mxu0
      %1944 = vmatprep.mubr.bf16.mxu0 0
      %1945 = vmatmul.mubr.bf16.gmra.mxu0 %v715
      %v1946 = vpop.f32.mrf.mxu0
      %v1947 = vadd.f32 0.0, %v1946
      %v1948 = vpop.f32.mrf.mxu0
      %v1949 = vpop.f32.mrf.mxu0
      %v1950 = vadd.f32 0.0, %v1949
      %v1951 = vpop.f32.mrf.mxu0
      %1952 = vmatprep.mubr.bf16.mxu0 0
      %1953 = vmatmul.mubr.bf16.gmra.mxu0 %v718
      %v1954 = vpop.f32.mrf.mxu0
      %v1955 = vadd.f32 0.0, %v1954
      %v1956 = vpop.f32.mrf.mxu0
      %v1957 = vpop.f32.mrf.mxu0
      %v1958 = vadd.f32 0.0, %v1957
      %v1959 = vpop.f32.mrf.mxu0
      %1960 = vmatprep.mubr.bf16.mxu0 0
      %1961 = vmatmul.mubr.bf16.gmra.mxu0 %v721
      %v1962 = vpop.f32.mrf.mxu0
      %v1963 = vadd.f32 0.0, %v1962
      %v1964 = vpop.f32.mrf.mxu0
      %v1965 = vpop.f32.mrf.mxu0
      %v1966 = vadd.f32 0.0, %v1965
      %v1967 = vpop.f32.mrf.mxu0
      %1968 = vmatprep.mubr.bf16.mxu0 0
      %1969 = vmatmul.mubr.bf16.gmra.mxu0 %v724
      %v1970 = vpop.f32.mrf.mxu0
      %v1971 = vadd.f32 0.0, %v1970
      %v1972 = vpop.f32.mrf.mxu0
      %v1973 = vpop.f32.mrf.mxu0
      %v1974 = vadd.f32 0.0, %v1973
      %v1975 = vpop.f32.mrf.mxu0
      %1976 = vmatprep.mubr.bf16.mxu0 0
      %1977 = vmatmul.mubr.bf16.gmra.mxu0 %v727
      %v1978 = vpop.f32.mrf.mxu0
      %v1979 = vadd.f32 0.0, %v1978
      %v1980 = vpop.f32.mrf.mxu0
      %v1981 = vpop.f32.mrf.mxu0
      %v1982 = vadd.f32 0.0, %v1981
      %v1983 = vpop.f32.mrf.mxu0
      %1984 = vmatprep.mubr.bf16.mxu0 0
      %1985 = vmatmul.mubr.bf16.gmra.mxu0 %v730
      %v1986 = vpop.f32.mrf.mxu0
      %v1987 = vadd.f32 0.0, %v1986
      %v1988 = vpop.f32.mrf.mxu0
      %v1989 = vpop.f32.mrf.mxu0
      %v1990 = vadd.f32 0.0, %v1989
      %v1991 = vpop.f32.mrf.mxu0
      %1992 = vmatprep.mubr.bf16.mxu0 0
      %1993 = vmatmul.mubr.bf16.gmra.mxu0 %v733
      %v1994 = vpop.f32.mrf.mxu0
      %v1995 = vadd.f32 0.0, %v1994
      %v1996 = vpop.f32.mrf.mxu0
      %v1997 = vpop.f32.mrf.mxu0
      %v1998 = vadd.f32 0.0, %v1997
      %v1999 = vpop.f32.mrf.mxu0
      %2000 = vmatprep.mubr.bf16.mxu0 0
      %2001 = vmatmul.mubr.bf16.gmra.mxu0 %v736
      %v2002 = vpop.f32.mrf.mxu0
      %v2003 = vadd.f32 0.0, %v2002
      %v2004 = vpop.f32.mrf.mxu0
      %v2005 = vpop.f32.mrf.mxu0
      %v2006 = vadd.f32 0.0, %v2005
      %v2007 = vpop.f32.mrf.mxu0
      %2008 = vmatprep.mubr.bf16.mxu0 0
      %2009 = vmatmul.mubr.bf16.gmra.mxu0 %v739
      %v2010 = vpop.f32.mrf.mxu0
      %v2011 = vadd.f32 0.0, %v2010
      %v2012 = vpop.f32.mrf.mxu0
      %v2013 = vpop.f32.mrf.mxu0
      %v2014 = vadd.f32 0.0, %v2013
      %v2015 = vpop.f32.mrf.mxu0
      %2016 = vmatprep.mubr.bf16.mxu0 0
      %2017 = vmatmul.mubr.bf16.gmra.mxu0 %v1859
      %v2018 = vpop.f32.mrf.mxu0
      %v2019 = vadd.f32 0.0, %v2018
      %v2020 = vpop.f32.mrf.mxu0
      %v2021 = vpop.f32.mrf.mxu0
      %v2022 = vadd.f32 0.0, %v2021
      %v2023 = vpop.f32.mrf.mxu0
      %2024 = vdwg.mxu0
      %v2025 = vadd.f32 %v1797, %v1899
      %v2026 = vadd.f32 %v1798, %v1902
      %v2027 = vadd.f32 %v1799, %v1907
      %v2028 = vadd.f32 %v1800, %v1910
      %v2029 = vadd.f32 %v1801, %v1915
      %v2030 = vadd.f32 %v1802, %v1918
      %v2031 = vadd.f32 %v1803, %v1923
      %v2032 = vadd.f32 %v1804, %v1926
      %v2033 = vadd.f32 %v1805, %v1931
      %v2034 = vadd.f32 %v1806, %v1934
      %v2035 = vadd.f32 %v1807, %v1939
      %v2036 = vadd.f32 %v1808, %v1942
      %v2037 = vadd.f32 %v1809, %v1947
      %v2038 = vadd.f32 %v1810, %v1950
      %v2039 = vadd.f32 %v1811, %v1955
      %v2040 = vadd.f32 %v1812, %v1958
      %v2041 = vadd.f32 %v1813, %v1963
      %v2042 = vadd.f32 %v1814, %v1966
      %v2043 = vadd.f32 %v1815, %v1971
      %v2044 = vadd.f32 %v1816, %v1974
      %v2045 = vadd.f32 %v1817, %v1979
      %v2046 = vadd.f32 %v1818, %v1982
      %v2047 = vadd.f32 %v1819, %v1987
      %v2048 = vadd.f32 %v1820, %v1990
      %v2049 = vadd.f32 %v1821, %v1995
      %v2050 = vadd.f32 %v1822, %v1998
      %v2051 = vadd.f32 %v1823, %v2003
      %v2052 = vadd.f32 %v1824, %v2006
      %v2053 = vadd.f32 %v1825, %v2011
      %v2054 = vadd.f32 %v1826, %v2014
      %v2055 = vadd.f32 %v1827, %v2019
      %v2056 = vadd.f32 %v1828, %v2022
      %v2058 = vrot.slane %v248, 5
      %v2059 = vrot.slane %v2058, 4
      %v2060 = vrot.slane %v249, 5
      %v2061 = vsel %vm1216, %v2059, %v2060
      %v2062 = vrot.slane %v2060, 4
      %v2063 = vrot.slane %v250, 5
      %v2064 = vsel %vm1216, %v2062, %v2063
      %s2065 = scalar_lea.vmem %s1, 10
      %v2066 = vld [vmem:[%s2065] sm:$0x3]
      %v2067 = vunpack.c.l.b16 %v2061
      %v2068 = vunpack.c.l.b16 %v2064
      %v2069 = vpack.c.b16 %v2068, %v2067
      %v2071 = vsel %vm692, %v2069, 0
      %v2074 = vsel %vm741, %v2066, 0
      %2076 = vmatprep.subr.bf16.mxu0 0
      %2077 = vmatpush1.bf16.msra.mxu0 0
      %2078 = vmatprep.subr.bf16.mxu0 0
      %2079 = vmatpush1.bf16.msra.mxu0 0
      %2080 = vmatprep.subr.bf16.mxu0 0
      %2081 = vmatpush1.bf16.msra.mxu0 0
      %2082 = vmatprep.subr.bf16.mxu0 0
      %2083 = vmatpush1.bf16.msra.mxu0 0
      %2084 = vmatprep.subr.bf16.mxu0 0
      %2085 = vmatpush1.bf16.msra.mxu0 0
      %2086 = vmatprep.subr.bf16.mxu0 0
      %2087 = vmatpush1.bf16.msra.mxu0 0
      %2088 = vmatprep.subr.bf16.mxu0 0
      %2089 = vmatpush1.bf16.msra.mxu0 0
      %2090 = vmatprep.subr.bf16.mxu0 0
      %2091 = vmatpush1.bf16.msra.mxu0 %v2074
      %2092 = vmatprep.subr.bf16.mxu0 0
      %2093 = vmatpush2.bf16.msra.mxu0 0
      %2094 = vmatprep.subr.bf16.mxu0 0
      %2095 = vmatpush2.bf16.msra.mxu0 0
      %2096 = vmatprep.subr.bf16.mxu0 0
      %2097 = vmatpush2.bf16.msra.mxu0 0
      %2098 = vmatprep.subr.bf16.mxu0 0
      %2099 = vmatpush2.bf16.msra.mxu0 0
      %2100 = vmatprep.subr.bf16.mxu0 0
      %2101 = vmatpush2.bf16.msra.mxu0 0
      %2102 = vmatprep.subr.bf16.mxu0 0
      %2103 = vmatpush2.bf16.msra.mxu0 0
      %2104 = vmatprep.subr.bf16.mxu0 0
      %2105 = vmatpush2.bf16.msra.mxu0 0
      %2106 = vmatprep.subr.bf16.mxu0 0
      %2107 = vmatpush2.bf16.msra.mxu0 0
      %2108 = vmatprep.mubr.bf16.mxu0 0
      %2109 = vmatmul.mubr.bf16.gmra.mxu0 %v1383
      %v2110 = vpop.f32.mrf.mxu0
      %v2111 = vadd.f32 0.0, %v2110
      %v2112 = vpop.f32.mrf.mxu0
      %v2113 = vpop.f32.mrf.mxu0
      %v2114 = vadd.f32 0.0, %v2113
      %v2115 = vpop.f32.mrf.mxu0
      %2116 = vmatprep.mubr.bf16.mxu0 0
      %2117 = vmatmul.mubr.bf16.gmra.mxu0 %v1386
      %v2118 = vpop.f32.mrf.mxu0
      %v2119 = vadd.f32 0.0, %v2118
      %v2120 = vpop.f32.mrf.mxu0
      %v2121 = vpop.f32.mrf.mxu0
      %v2122 = vadd.f32 0.0, %v2121
      %v2123 = vpop.f32.mrf.mxu0
      %2124 = vmatprep.mubr.bf16.mxu0 0
      %2125 = vmatmul.mubr.bf16.gmra.mxu0 %v1389
      %v2126 = vpop.f32.mrf.mxu0
      %v2127 = vadd.f32 0.0, %v2126
      %v2128 = vpop.f32.mrf.mxu0
      %v2129 = vpop.f32.mrf.mxu0
      %v2130 = vadd.f32 0.0, %v2129
      %v2131 = vpop.f32.mrf.mxu0
      %2132 = vmatprep.mubr.bf16.mxu0 0
      %2133 = vmatmul.mubr.bf16.gmra.mxu0 %v1392
      %v2134 = vpop.f32.mrf.mxu0
      %v2135 = vadd.f32 0.0, %v2134
      %v2136 = vpop.f32.mrf.mxu0
      %v2137 = vpop.f32.mrf.mxu0
      %v2138 = vadd.f32 0.0, %v2137
      %v2139 = vpop.f32.mrf.mxu0
      %2140 = vmatprep.mubr.bf16.mxu0 0
      %2141 = vmatmul.mubr.bf16.gmra.mxu0 %v1395
      %v2142 = vpop.f32.mrf.mxu0
      %v2143 = vadd.f32 0.0, %v2142
      %v2144 = vpop.f32.mrf.mxu0
      %v2145 = vpop.f32.mrf.mxu0
      %v2146 = vadd.f32 0.0, %v2145
      %v2147 = vpop.f32.mrf.mxu0
      %2148 = vmatprep.mubr.bf16.mxu0 0
      %2149 = vmatmul.mubr.bf16.gmra.mxu0 %v1398
      %v2150 = vpop.f32.mrf.mxu0
      %v2151 = vadd.f32 0.0, %v2150
      %v2152 = vpop.f32.mrf.mxu0
      %v2153 = vpop.f32.mrf.mxu0
      %v2154 = vadd.f32 0.0, %v2153
      %v2155 = vpop.f32.mrf.mxu0
      %2156 = vmatprep.mubr.bf16.mxu0 0
      %2157 = vmatmul.mubr.bf16.gmra.mxu0 %v1401
      %v2158 = vpop.f32.mrf.mxu0
      %v2159 = vadd.f32 0.0, %v2158
      %v2160 = vpop.f32.mrf.mxu0
      %v2161 = vpop.f32.mrf.mxu0
      %v2162 = vadd.f32 0.0, %v2161
      %v2163 = vpop.f32.mrf.mxu0
      %2164 = vmatprep.mubr.bf16.mxu0 0
      %2165 = vmatmul.mubr.bf16.gmra.mxu0 %v1404
      %v2166 = vpop.f32.mrf.mxu0
      %v2167 = vadd.f32 0.0, %v2166
      %v2168 = vpop.f32.mrf.mxu0
      %v2169 = vpop.f32.mrf.mxu0
      %v2170 = vadd.f32 0.0, %v2169
      %v2171 = vpop.f32.mrf.mxu0
      %2172 = vmatprep.mubr.bf16.mxu0 0
      %2173 = vmatmul.mubr.bf16.gmra.mxu0 %v1407
      %v2174 = vpop.f32.mrf.mxu0
      %v2175 = vadd.f32 0.0, %v2174
      %v2176 = vpop.f32.mrf.mxu0
      %v2177 = vpop.f32.mrf.mxu0
      %v2178 = vadd.f32 0.0, %v2177
      %v2179 = vpop.f32.mrf.mxu0
      %2180 = vmatprep.mubr.bf16.mxu0 0
      %2181 = vmatmul.mubr.bf16.gmra.mxu0 %v1410
      %v2182 = vpop.f32.mrf.mxu0
      %v2183 = vadd.f32 0.0, %v2182
      %v2184 = vpop.f32.mrf.mxu0
      %v2185 = vpop.f32.mrf.mxu0
      %v2186 = vadd.f32 0.0, %v2185
      %v2187 = vpop.f32.mrf.mxu0
      %2188 = vmatprep.mubr.bf16.mxu0 0
      %2189 = vmatmul.mubr.bf16.gmra.mxu0 %v1413
      %v2190 = vpop.f32.mrf.mxu0
      %v2191 = vadd.f32 0.0, %v2190
      %v2192 = vpop.f32.mrf.mxu0
      %v2193 = vpop.f32.mrf.mxu0
      %v2194 = vadd.f32 0.0, %v2193
      %v2195 = vpop.f32.mrf.mxu0
      %2196 = vmatprep.mubr.bf16.mxu0 0
      %2197 = vmatmul.mubr.bf16.gmra.mxu0 %v1416
      %v2198 = vpop.f32.mrf.mxu0
      %v2199 = vadd.f32 0.0, %v2198
      %v2200 = vpop.f32.mrf.mxu0
      %v2201 = vpop.f32.mrf.mxu0
      %v2202 = vadd.f32 0.0, %v2201
      %v2203 = vpop.f32.mrf.mxu0
      %2204 = vmatprep.mubr.bf16.mxu0 0
      %2205 = vmatmul.mubr.bf16.gmra.mxu0 %v1419
      %v2206 = vpop.f32.mrf.mxu0
      %v2207 = vadd.f32 0.0, %v2206
      %v2208 = vpop.f32.mrf.mxu0
      %v2209 = vpop.f32.mrf.mxu0
      %v2210 = vadd.f32 0.0, %v2209
      %v2211 = vpop.f32.mrf.mxu0
      %2212 = vmatprep.mubr.bf16.mxu0 0
      %2213 = vmatmul.mubr.bf16.gmra.mxu0 %v1422
      %v2214 = vpop.f32.mrf.mxu0
      %v2215 = vadd.f32 0.0, %v2214
      %v2216 = vpop.f32.mrf.mxu0
      %v2217 = vpop.f32.mrf.mxu0
      %v2218 = vadd.f32 0.0, %v2217
      %v2219 = vpop.f32.mrf.mxu0
      %2220 = vmatprep.mubr.bf16.mxu0 0
      %2221 = vmatmul.mubr.bf16.gmra.mxu0 %v1425
      %v2222 = vpop.f32.mrf.mxu0
      %v2223 = vadd.f32 0.0, %v2222
      %v2224 = vpop.f32.mrf.mxu0
      %v2225 = vpop.f32.mrf.mxu0
      %v2226 = vadd.f32 0.0, %v2225
      %v2227 = vpop.f32.mrf.mxu0
      %2228 = vmatprep.mubr.bf16.mxu0 0
      %2229 = vmatmul.mubr.bf16.gmra.mxu0 %v2071
      %v2230 = vpop.f32.mrf.mxu0
      %v2231 = vadd.f32 0.0, %v2230
      %v2232 = vpop.f32.mrf.mxu0
      %v2233 = vpop.f32.mrf.mxu0
      %v2234 = vadd.f32 0.0, %v2233
      %v2235 = vpop.f32.mrf.mxu0
      %2236 = vdwg.mxu0
      %v2237 = vadd.f32 %v2025, %v2111
      %v2238 = vadd.f32 %v2026, %v2114
      %v2239 = vadd.f32 %v2027, %v2119
      %v2240 = vadd.f32 %v2028, %v2122
      %v2241 = vadd.f32 %v2029, %v2127
      %v2242 = vadd.f32 %v2030, %v2130
      %v2243 = vadd.f32 %v2031, %v2135
      %v2244 = vadd.f32 %v2032, %v2138
      %v2245 = vadd.f32 %v2033, %v2143
      %v2246 = vadd.f32 %v2034, %v2146
      %v2247 = vadd.f32 %v2035, %v2151
      %v2248 = vadd.f32 %v2036, %v2154
      %v2249 = vadd.f32 %v2037, %v2159
      %v2250 = vadd.f32 %v2038, %v2162
      %v2251 = vadd.f32 %v2039, %v2167
      %v2252 = vadd.f32 %v2040, %v2170
      %v2253 = vadd.f32 %v2041, %v2175
      %v2254 = vadd.f32 %v2042, %v2178
      %v2255 = vadd.f32 %v2043, %v2183
      %v2256 = vadd.f32 %v2044, %v2186
      %v2257 = vadd.f32 %v2045, %v2191
      %v2258 = vadd.f32 %v2046, %v2194
      %v2259 = vadd.f32 %v2047, %v2199
      %v2260 = vadd.f32 %v2048, %v2202
      %v2261 = vadd.f32 %v2049, %v2207
      %v2262 = vadd.f32 %v2050, %v2210
      %v2263 = vadd.f32 %v2051, %v2215
      %v2264 = vadd.f32 %v2052, %v2218
      %v2265 = vadd.f32 %v2053, %v2223
      %v2266 = vadd.f32 %v2054, %v2226
      %v2267 = vadd.f32 %v2055, %v2231
      %v2268 = vadd.f32 %v2056, %v2234
      %s2269 = scalar_lea.vmem %s1, 12
      %v2270 = vld [vmem:[%s2269] sm:$0x3]
      %v2273 = vunpack.c.l.b16 %v251
      %v2274 = vunpack.c.l.b16 %v252
      %v2275 = vpack.c.b16 %v2274, %v2273
      %v2277 = vsel %vm692, %v2275, 0
      %v2280 = vsel %vm741, %v2270, 0
      %2282 = vmatprep.subr.bf16.mxu0 0
      %2283 = vmatpush1.bf16.msra.mxu0 0
      %2284 = vmatprep.subr.bf16.mxu0 0
      %2285 = vmatpush1.bf16.msra.mxu0 0
      %2286 = vmatprep.subr.bf16.mxu0 0
      %2287 = vmatpush1.bf16.msra.mxu0 0
      %2288 = vmatprep.subr.bf16.mxu0 0
      %2289 = vmatpush1.bf16.msra.mxu0 0
      %2290 = vmatprep.subr.bf16.mxu0 0
      %2291 = vmatpush1.bf16.msra.mxu0 0
      %2292 = vmatprep.subr.bf16.mxu0 0
      %2293 = vmatpush1.bf16.msra.mxu0 0
      %2294 = vmatprep.subr.bf16.mxu0 0
      %2295 = vmatpush1.bf16.msra.mxu0 0
      %2296 = vmatprep.subr.bf16.mxu0 0
      %2297 = vmatpush1.bf16.msra.mxu0 %v2280
      %2298 = vmatprep.subr.bf16.mxu0 0
      %2299 = vmatpush2.bf16.msra.mxu0 0
      %2300 = vmatprep.subr.bf16.mxu0 0
      %2301 = vmatpush2.bf16.msra.mxu0 0
      %2302 = vmatprep.subr.bf16.mxu0 0
      %2303 = vmatpush2.bf16.msra.mxu0 0
      %2304 = vmatprep.subr.bf16.mxu0 0
      %2305 = vmatpush2.bf16.msra.mxu0 0
      %2306 = vmatprep.subr.bf16.mxu0 0
      %2307 = vmatpush2.bf16.msra.mxu0 0
      %2308 = vmatprep.subr.bf16.mxu0 0
      %2309 = vmatpush2.bf16.msra.mxu0 0
      %2310 = vmatprep.subr.bf16.mxu0 0
      %2311 = vmatpush2.bf16.msra.mxu0 0
      %2312 = vmatprep.subr.bf16.mxu0 0
      %2313 = vmatpush2.bf16.msra.mxu0 0
      %2314 = vmatprep.mubr.bf16.mxu0 0
      %2315 = vmatmul.mubr.bf16.gmra.mxu0 %v993
      %v2316 = vpop.f32.mrf.mxu0
      %v2317 = vadd.f32 0.0, %v2316
      %v2318 = vpop.f32.mrf.mxu0
      %v2319 = vpop.f32.mrf.mxu0
      %v2320 = vadd.f32 0.0, %v2319
      %v2321 = vpop.f32.mrf.mxu0
      %2322 = vmatprep.mubr.bf16.mxu0 0
      %2323 = vmatmul.mubr.bf16.gmra.mxu0 %v996
      %v2324 = vpop.f32.mrf.mxu0
      %v2325 = vadd.f32 0.0, %v2324
      %v2326 = vpop.f32.mrf.mxu0
      %v2327 = vpop.f32.mrf.mxu0
      %v2328 = vadd.f32 0.0, %v2327
      %v2329 = vpop.f32.mrf.mxu0
      %2330 = vmatprep.mubr.bf16.mxu0 0
      %2331 = vmatmul.mubr.bf16.gmra.mxu0 %v999
      %v2332 = vpop.f32.mrf.mxu0
      %v2333 = vadd.f32 0.0, %v2332
      %v2334 = vpop.f32.mrf.mxu0
      %v2335 = vpop.f32.mrf.mxu0
      %v2336 = vadd.f32 0.0, %v2335
      %v2337 = vpop.f32.mrf.mxu0
      %2338 = vmatprep.mubr.bf16.mxu0 0
      %2339 = vmatmul.mubr.bf16.gmra.mxu0 %v1002
      %v2340 = vpop.f32.mrf.mxu0
      %v2341 = vadd.f32 0.0, %v2340
      %v2342 = vpop.f32.mrf.mxu0
      %v2343 = vpop.f32.mrf.mxu0
      %v2344 = vadd.f32 0.0, %v2343
      %v2345 = vpop.f32.mrf.mxu0
      %2346 = vmatprep.mubr.bf16.mxu0 0
      %2347 = vmatmul.mubr.bf16.gmra.mxu0 %v1005
      %v2348 = vpop.f32.mrf.mxu0
      %v2349 = vadd.f32 0.0, %v2348
      %v2350 = vpop.f32.mrf.mxu0
      %v2351 = vpop.f32.mrf.mxu0
      %v2352 = vadd.f32 0.0, %v2351
      %v2353 = vpop.f32.mrf.mxu0
      %2354 = vmatprep.mubr.bf16.mxu0 0
      %2355 = vmatmul.mubr.bf16.gmra.mxu0 %v1008
      %v2356 = vpop.f32.mrf.mxu0
      %v2357 = vadd.f32 0.0, %v2356
      %v2358 = vpop.f32.mrf.mxu0
      %v2359 = vpop.f32.mrf.mxu0
      %v2360 = vadd.f32 0.0, %v2359
      %v2361 = vpop.f32.mrf.mxu0
      %2362 = vmatprep.mubr.bf16.mxu0 0
      %2363 = vmatmul.mubr.bf16.gmra.mxu0 %v1011
      %v2364 = vpop.f32.mrf.mxu0
      %v2365 = vadd.f32 0.0, %v2364
      %v2366 = vpop.f32.mrf.mxu0
      %v2367 = vpop.f32.mrf.mxu0
      %v2368 = vadd.f32 0.0, %v2367
      %v2369 = vpop.f32.mrf.mxu0
      %2370 = vmatprep.mubr.bf16.mxu0 0
      %2371 = vmatmul.mubr.bf16.gmra.mxu0 %v1014
      %v2372 = vpop.f32.mrf.mxu0
      %v2373 = vadd.f32 0.0, %v2372
      %v2374 = vpop.f32.mrf.mxu0
      %v2375 = vpop.f32.mrf.mxu0
      %v2376 = vadd.f32 0.0, %v2375
      %v2377 = vpop.f32.mrf.mxu0
      %2378 = vmatprep.mubr.bf16.mxu0 0
      %2379 = vmatmul.mubr.bf16.gmra.mxu0 %v1017
      %v2380 = vpop.f32.mrf.mxu0
      %v2381 = vadd.f32 0.0, %v2380
      %v2382 = vpop.f32.mrf.mxu0
      %v2383 = vpop.f32.mrf.mxu0
      %v2384 = vadd.f32 0.0, %v2383
      %v2385 = vpop.f32.mrf.mxu0
      %2386 = vmatprep.mubr.bf16.mxu0 0
      %2387 = vmatmul.mubr.bf16.gmra.mxu0 %v1020
      %v2388 = vpop.f32.mrf.mxu0
      %v2389 = vadd.f32 0.0, %v2388
      %v2390 = vpop.f32.mrf.mxu0
      %v2391 = vpop.f32.mrf.mxu0
      %v2392 = vadd.f32 0.0, %v2391
      %v2393 = vpop.f32.mrf.mxu0
      %2394 = vmatprep.mubr.bf16.mxu0 0
      %2395 = vmatmul.mubr.bf16.gmra.mxu0 %v1023
      %v2396 = vpop.f32.mrf.mxu0
      %v2397 = vadd.f32 0.0, %v2396
      %v2398 = vpop.f32.mrf.mxu0
      %v2399 = vpop.f32.mrf.mxu0
      %v2400 = vadd.f32 0.0, %v2399
      %v2401 = vpop.f32.mrf.mxu0
      %2402 = vmatprep.mubr.bf16.mxu0 0
      %2403 = vmatmul.mubr.bf16.gmra.mxu0 %v1026
      %v2404 = vpop.f32.mrf.mxu0
      %v2405 = vadd.f32 0.0, %v2404
      %v2406 = vpop.f32.mrf.mxu0
      %v2407 = vpop.f32.mrf.mxu0
      %v2408 = vadd.f32 0.0, %v2407
      %v2409 = vpop.f32.mrf.mxu0
      %2410 = vmatprep.mubr.bf16.mxu0 0
      %2411 = vmatmul.mubr.bf16.gmra.mxu0 %v1029
      %v2412 = vpop.f32.mrf.mxu0
      %v2413 = vadd.f32 0.0, %v2412
      %v2414 = vpop.f32.mrf.mxu0
      %v2415 = vpop.f32.mrf.mxu0
      %v2416 = vadd.f32 0.0, %v2415
      %v2417 = vpop.f32.mrf.mxu0
      %2418 = vmatprep.mubr.bf16.mxu0 0
      %2419 = vmatmul.mubr.bf16.gmra.mxu0 %v1032
      %v2420 = vpop.f32.mrf.mxu0
      %v2421 = vadd.f32 0.0, %v2420
      %v2422 = vpop.f32.mrf.mxu0
      %v2423 = vpop.f32.mrf.mxu0
      %v2424 = vadd.f32 0.0, %v2423
      %v2425 = vpop.f32.mrf.mxu0
      %2426 = vmatprep.mubr.bf16.mxu0 0
      %2427 = vmatmul.mubr.bf16.gmra.mxu0 %v1631
      %v2428 = vpop.f32.mrf.mxu0
      %v2429 = vadd.f32 0.0, %v2428
      %v2430 = vpop.f32.mrf.mxu0
      %v2431 = vpop.f32.mrf.mxu0
      %v2432 = vadd.f32 0.0, %v2431
      %v2433 = vpop.f32.mrf.mxu0
      %2434 = vmatprep.mubr.bf16.mxu0 0
      %2435 = vmatmul.mubr.bf16.gmra.mxu0 %v2277
      %v2436 = vpop.f32.mrf.mxu0
      %v2437 = vadd.f32 0.0, %v2436
      %v2438 = vpop.f32.mrf.mxu0
      %v2439 = vpop.f32.mrf.mxu0
      %v2440 = vadd.f32 0.0, %v2439
      %v2441 = vpop.f32.mrf.mxu0
      %2442 = vdwg.mxu0
      %v2443 = vadd.f32 %v2237, %v2317
      %v2444 = vadd.f32 %v2238, %v2320
      %v2445 = vadd.f32 %v2239, %v2325
      %v2446 = vadd.f32 %v2240, %v2328
      %v2447 = vadd.f32 %v2241, %v2333
      %v2448 = vadd.f32 %v2242, %v2336
      %v2449 = vadd.f32 %v2243, %v2341
      %v2450 = vadd.f32 %v2244, %v2344
      %v2451 = vadd.f32 %v2245, %v2349
      %v2452 = vadd.f32 %v2246, %v2352
      %v2453 = vadd.f32 %v2247, %v2357
      %v2454 = vadd.f32 %v2248, %v2360
      %v2455 = vadd.f32 %v2249, %v2365
      %v2456 = vadd.f32 %v2250, %v2368
      %v2457 = vadd.f32 %v2251, %v2373
      %v2458 = vadd.f32 %v2252, %v2376
      %v2459 = vadd.f32 %v2253, %v2381
      %v2460 = vadd.f32 %v2254, %v2384
      %v2461 = vadd.f32 %v2255, %v2389
      %v2462 = vadd.f32 %v2256, %v2392
      %v2463 = vadd.f32 %v2257, %v2397
      %v2464 = vadd.f32 %v2258, %v2400
      %v2465 = vadd.f32 %v2259, %v2405
      %v2466 = vadd.f32 %v2260, %v2408
      %v2467 = vadd.f32 %v2261, %v2413
      %v2468 = vadd.f32 %v2262, %v2416
      %v2469 = vadd.f32 %v2263, %v2421
      %v2470 = vadd.f32 %v2264, %v2424
      %v2471 = vadd.f32 %v2265, %v2429
      %v2472 = vadd.f32 %v2266, %v2432
      %v2473 = vadd.f32 %v2267, %v2437
      %v2474 = vadd.f32 %v2268, %v2440
      %v2476 = vshrl.u32 %v251, 16
      %v2478 = vrot.slane %v2476, 4
      %v2479 = vshll.u32 %v251, 16
      %v2481 = vrot.slane %v2479, 5
      %v2482 = vor.u32 %v2478, %v2481
      %v2483 = vrot.slane %v2482, 4
      %v2485 = vshll.u32 %v252, 16
      %v2487 = vrot.slane %v2485, 5
      %v2488 = vsel %vm257, %v2483, %v2487
      %v2489 = vshrl.u32 %v252, 16
      %v2491 = vrot.slane %v2489, 4
      %v2492 = vor.u32 %v2491, %v2487
      %v2493 = vrot.slane %v2492, 4
      %v2495 = vshll.u32 %v253, 16
      %v2497 = vrot.slane %v2495, 5
      %v2498 = vsel %vm257, %v2493, %v2497
      %s2499 = scalar_lea.vmem %s1, 14
      %v2500 = vld [vmem:[%s2499] sm:$0x3]
      %v2501 = vunpack.c.l.b16 %v2488
      %v2502 = vunpack.c.l.b16 %v2498
      %v2503 = vpack.c.b16 %v2502, %v2501
      %v2505 = vsel %vm692, %v2503, 0
      %v2508 = vsel %vm741, %v2500, 0
      %2510 = vmatprep.subr.bf16.mxu0 0
      %2511 = vmatpush1.bf16.msra.mxu0 0
      %2512 = vmatprep.subr.bf16.mxu0 0
      %2513 = vmatpush1.bf16.msra.mxu0 0
      %2514 = vmatprep.subr.bf16.mxu0 0
      %2515 = vmatpush1.bf16.msra.mxu0 0
      %2516 = vmatprep.subr.bf16.mxu0 0
      %2517 = vmatpush1.bf16.msra.mxu0 0
      %2518 = vmatprep.subr.bf16.mxu0 0
      %2519 = vmatpush1.bf16.msra.mxu0 0
      %2520 = vmatprep.subr.bf16.mxu0 0
      %2521 = vmatpush1.bf16.msra.mxu0 0
      %2522 = vmatprep.subr.bf16.mxu0 0
      %2523 = vmatpush1.bf16.msra.mxu0 0
      %2524 = vmatprep.subr.bf16.mxu0 0
      %2525 = vmatpush1.bf16.msra.mxu0 %v2508
      %2526 = vmatprep.subr.bf16.mxu0 0
      %2527 = vmatpush2.bf16.msra.mxu0 0
      %2528 = vmatprep.subr.bf16.mxu0 0
      %2529 = vmatpush2.bf16.msra.mxu0 0
      %2530 = vmatprep.subr.bf16.mxu0 0
      %2531 = vmatpush2.bf16.msra.mxu0 0
      %2532 = vmatprep.subr.bf16.mxu0 0
      %2533 = vmatpush2.bf16.msra.mxu0 0
      %2534 = vmatprep.subr.bf16.mxu0 0
      %2535 = vmatpush2.bf16.msra.mxu0 0
      %2536 = vmatprep.subr.bf16.mxu0 0
      %2537 = vmatpush2.bf16.msra.mxu0 0
      %2538 = vmatprep.subr.bf16.mxu0 0
      %2539 = vmatpush2.bf16.msra.mxu0 0
      %2540 = vmatprep.subr.bf16.mxu0 0
      %2541 = vmatpush2.bf16.msra.mxu0 0
      %2542 = vmatprep.mubr.bf16.mxu0 0
      %2543 = vmatmul.mubr.bf16.gmra.mxu0 %v700
      %v2544 = vpop.f32.mrf.mxu0
      %v2545 = vadd.f32 0.0, %v2544
      %v2546 = vpop.f32.mrf.mxu0
      %v2547 = vpop.f32.mrf.mxu0
      %v2548 = vadd.f32 0.0, %v2547
      %v2549 = vpop.f32.mrf.mxu0
      %2550 = vmatprep.mubr.bf16.mxu0 0
      %2551 = vmatmul.mubr.bf16.gmra.mxu0 %v703
      %v2552 = vpop.f32.mrf.mxu0
      %v2553 = vadd.f32 0.0, %v2552
      %v2554 = vpop.f32.mrf.mxu0
      %v2555 = vpop.f32.mrf.mxu0
      %v2556 = vadd.f32 0.0, %v2555
      %v2557 = vpop.f32.mrf.mxu0
      %2558 = vmatprep.mubr.bf16.mxu0 0
      %2559 = vmatmul.mubr.bf16.gmra.mxu0 %v706
      %v2560 = vpop.f32.mrf.mxu0
      %v2561 = vadd.f32 0.0, %v2560
      %v2562 = vpop.f32.mrf.mxu0
      %v2563 = vpop.f32.mrf.mxu0
      %v2564 = vadd.f32 0.0, %v2563
      %v2565 = vpop.f32.mrf.mxu0
      %2566 = vmatprep.mubr.bf16.mxu0 0
      %2567 = vmatmul.mubr.bf16.gmra.mxu0 %v709
      %v2568 = vpop.f32.mrf.mxu0
      %v2569 = vadd.f32 0.0, %v2568
      %v2570 = vpop.f32.mrf.mxu0
      %v2571 = vpop.f32.mrf.mxu0
      %v2572 = vadd.f32 0.0, %v2571
      %v2573 = vpop.f32.mrf.mxu0
      %2574 = vmatprep.mubr.bf16.mxu0 0
      %2575 = vmatmul.mubr.bf16.gmra.mxu0 %v712
      %v2576 = vpop.f32.mrf.mxu0
      %v2577 = vadd.f32 0.0, %v2576
      %v2578 = vpop.f32.mrf.mxu0
      %v2579 = vpop.f32.mrf.mxu0
      %v2580 = vadd.f32 0.0, %v2579
      %v2581 = vpop.f32.mrf.mxu0
      %2582 = vmatprep.mubr.bf16.mxu0 0
      %2583 = vmatmul.mubr.bf16.gmra.mxu0 %v715
      %v2584 = vpop.f32.mrf.mxu0
      %v2585 = vadd.f32 0.0, %v2584
      %v2586 = vpop.f32.mrf.mxu0
      %v2587 = vpop.f32.mrf.mxu0
      %v2588 = vadd.f32 0.0, %v2587
      %v2589 = vpop.f32.mrf.mxu0
      %2590 = vmatprep.mubr.bf16.mxu0 0
      %2591 = vmatmul.mubr.bf16.gmra.mxu0 %v718
      %v2592 = vpop.f32.mrf.mxu0
      %v2593 = vadd.f32 0.0, %v2592
      %v2594 = vpop.f32.mrf.mxu0
      %v2595 = vpop.f32.mrf.mxu0
      %v2596 = vadd.f32 0.0, %v2595
      %v2597 = vpop.f32.mrf.mxu0
      %2598 = vmatprep.mubr.bf16.mxu0 0
      %2599 = vmatmul.mubr.bf16.gmra.mxu0 %v721
      %v2600 = vpop.f32.mrf.mxu0
      %v2601 = vadd.f32 0.0, %v2600
      %v2602 = vpop.f32.mrf.mxu0
      %v2603 = vpop.f32.mrf.mxu0
      %v2604 = vadd.f32 0.0, %v2603
      %v2605 = vpop.f32.mrf.mxu0
      %2606 = vmatprep.mubr.bf16.mxu0 0
      %2607 = vmatmul.mubr.bf16.gmra.mxu0 %v724
      %v2608 = vpop.f32.mrf.mxu0
      %v2609 = vadd.f32 0.0, %v2608
      %v2610 = vpop.f32.mrf.mxu0
      %v2611 = vpop.f32.mrf.mxu0
      %v2612 = vadd.f32 0.0, %v2611
      %v2613 = vpop.f32.mrf.mxu0
      %2614 = vmatprep.mubr.bf16.mxu0 0
      %2615 = vmatmul.mubr.bf16.gmra.mxu0 %v727
      %v2616 = vpop.f32.mrf.mxu0
      %v2617 = vadd.f32 0.0, %v2616
      %v2618 = vpop.f32.mrf.mxu0
      %v2619 = vpop.f32.mrf.mxu0
      %v2620 = vadd.f32 0.0, %v2619
      %v2621 = vpop.f32.mrf.mxu0
      %2622 = vmatprep.mubr.bf16.mxu0 0
      %2623 = vmatmul.mubr.bf16.gmra.mxu0 %v730
      %v2624 = vpop.f32.mrf.mxu0
      %v2625 = vadd.f32 0.0, %v2624
      %v2626 = vpop.f32.mrf.mxu0
      %v2627 = vpop.f32.mrf.mxu0
      %v2628 = vadd.f32 0.0, %v2627
      %v2629 = vpop.f32.mrf.mxu0
      %2630 = vmatprep.mubr.bf16.mxu0 0
      %2631 = vmatmul.mubr.bf16.gmra.mxu0 %v733
      %v2632 = vpop.f32.mrf.mxu0
      %v2633 = vadd.f32 0.0, %v2632
      %v2634 = vpop.f32.mrf.mxu0
      %v2635 = vpop.f32.mrf.mxu0
      %v2636 = vadd.f32 0.0, %v2635
      %v2637 = vpop.f32.mrf.mxu0
      %2638 = vmatprep.mubr.bf16.mxu0 0
      %2639 = vmatmul.mubr.bf16.gmra.mxu0 %v736
      %v2640 = vpop.f32.mrf.mxu0
      %v2641 = vadd.f32 0.0, %v2640
      %v2642 = vpop.f32.mrf.mxu0
      %v2643 = vpop.f32.mrf.mxu0
      %v2644 = vadd.f32 0.0, %v2643
      %v2645 = vpop.f32.mrf.mxu0
      %2646 = vmatprep.mubr.bf16.mxu0 0
      %2647 = vmatmul.mubr.bf16.gmra.mxu0 %v739
      %v2648 = vpop.f32.mrf.mxu0
      %v2649 = vadd.f32 0.0, %v2648
      %v2650 = vpop.f32.mrf.mxu0
      %v2651 = vpop.f32.mrf.mxu0
      %v2652 = vadd.f32 0.0, %v2651
      %v2653 = vpop.f32.mrf.mxu0
      %2654 = vmatprep.mubr.bf16.mxu0 0
      %2655 = vmatmul.mubr.bf16.gmra.mxu0 %v1859
      %v2656 = vpop.f32.mrf.mxu0
      %v2657 = vadd.f32 0.0, %v2656
      %v2658 = vpop.f32.mrf.mxu0
      %v2659 = vpop.f32.mrf.mxu0
      %v2660 = vadd.f32 0.0, %v2659
      %v2661 = vpop.f32.mrf.mxu0
      %2662 = vmatprep.mubr.bf16.mxu0 0
      %2663 = vmatmul.mubr.bf16.gmra.mxu0 %v2505
      %v2664 = vpop.f32.mrf.mxu0
      %v2665 = vadd.f32 0.0, %v2664
      %v2666 = vpop.f32.mrf.mxu0
      %v2667 = vpop.f32.mrf.mxu0
      %v2668 = vadd.f32 0.0, %v2667
      %v2669 = vpop.f32.mrf.mxu0
      %2670 = vdwg.mxu0
      %v2671 = vadd.f32 %v2443, %v2545
      %v2672 = vadd.f32 %v2444, %v2548
      %v2673 = vadd.f32 %v2445, %v2553
      %v2674 = vadd.f32 %v2446, %v2556
      %v2675 = vadd.f32 %v2447, %v2561
      %v2676 = vadd.f32 %v2448, %v2564
      %v2677 = vadd.f32 %v2449, %v2569
      %v2678 = vadd.f32 %v2450, %v2572
      %v2679 = vadd.f32 %v2451, %v2577
      %v2680 = vadd.f32 %v2452, %v2580
      %v2681 = vadd.f32 %v2453, %v2585
      %v2682 = vadd.f32 %v2454, %v2588
      %v2683 = vadd.f32 %v2455, %v2593
      %v2684 = vadd.f32 %v2456, %v2596
      %v2685 = vadd.f32 %v2457, %v2601
      %v2686 = vadd.f32 %v2458, %v2604
      %v2687 = vadd.f32 %v2459, %v2609
      %v2688 = vadd.f32 %v2460, %v2612
      %v2689 = vadd.f32 %v2461, %v2617
      %v2690 = vadd.f32 %v2462, %v2620
      %v2691 = vadd.f32 %v2463, %v2625
      %v2692 = vadd.f32 %v2464, %v2628
      %v2693 = vadd.f32 %v2465, %v2633
      %v2694 = vadd.f32 %v2466, %v2636
      %v2695 = vadd.f32 %v2467, %v2641
      %v2696 = vadd.f32 %v2468, %v2644
      %v2697 = vadd.f32 %v2469, %v2649
      %v2698 = vadd.f32 %v2470, %v2652
      %v2699 = vadd.f32 %v2471, %v2657
      %v2700 = vadd.f32 %v2472, %v2660
      %v2701 = vadd.f32 %v2473, %v2665
      %v2702 = vadd.f32 %v2474, %v2668
      %v2704 = vrot.slane %v251, 5
      %v2705 = vrot.slane %v2704, 4
      %v2706 = vrot.slane %v252, 5
      %v2707 = vsel %vm1216, %v2705, %v2706
      %v2708 = vrot.slane %v2706, 4
      %v2709 = vrot.slane %v253, 5
      %v2710 = vsel %vm1216, %v2708, %v2709
      %s2711 = scalar_lea.vmem %s1, 16
      %v2712 = vld [vmem:[%s2711] sm:$0x3]
      %v2713 = vunpack.c.l.b16 %v2707
      %v2714 = vunpack.c.l.b16 %v2710
      %v2715 = vpack.c.b16 %v2714, %v2713
      %v2717 = vsel %vm692, %v2715, 0
      %v2720 = vsel %vm741, %v2712, 0
      %2722 = vmatprep.subr.bf16.mxu0 0
      %2723 = vmatpush1.bf16.msra.mxu0 0
      %2724 = vmatprep.subr.bf16.mxu0 0
      %2725 = vmatpush1.bf16.msra.mxu0 0
      %2726 = vmatprep.subr.bf16.mxu0 0
      %2727 = vmatpush1.bf16.msra.mxu0 0
      %2728 = vmatprep.subr.bf16.mxu0 0
      %2729 = vmatpush1.bf16.msra.mxu0 0
      %2730 = vmatprep.subr.bf16.mxu0 0
      %2731 = vmatpush1.bf16.msra.mxu0 0
      %2732 = vmatprep.subr.bf16.mxu0 0
      %2733 = vmatpush1.bf16.msra.mxu0 0
      %2734 = vmatprep.subr.bf16.mxu0 0
      %2735 = vmatpush1.bf16.msra.mxu0 0
      %2736 = vmatprep.subr.bf16.mxu0 0
      %2737 = vmatpush1.bf16.msra.mxu0 %v2720
      %2738 = vmatprep.subr.bf16.mxu0 0
      %2739 = vmatpush2.bf16.msra.mxu0 0
      %2740 = vmatprep.subr.bf16.mxu0 0
      %2741 = vmatpush2.bf16.msra.mxu0 0
      %2742 = vmatprep.subr.bf16.mxu0 0
      %2743 = vmatpush2.bf16.msra.mxu0 0
      %2744 = vmatprep.subr.bf16.mxu0 0
      %2745 = vmatpush2.bf16.msra.mxu0 0
      %2746 = vmatprep.subr.bf16.mxu0 0
      %2747 = vmatpush2.bf16.msra.mxu0 0
      %2748 = vmatprep.subr.bf16.mxu0 0
      %2749 = vmatpush2.bf16.msra.mxu0 0
      %2750 = vmatprep.subr.bf16.mxu0 0
      %2751 = vmatpush2.bf16.msra.mxu0 0
      %2752 = vmatprep.subr.bf16.mxu0 0
      %2753 = vmatpush2.bf16.msra.mxu0 0
      %2754 = vmatprep.mubr.bf16.mxu0 0
      %2755 = vmatmul.mubr.bf16.gmra.mxu0 %v1386
      %v2756 = vpop.f32.mrf.mxu0
      %v2757 = vadd.f32 0.0, %v2756
      %v2758 = vpop.f32.mrf.mxu0
      %v2759 = vpop.f32.mrf.mxu0
      %v2760 = vadd.f32 0.0, %v2759
      %v2761 = vpop.f32.mrf.mxu0
      %2762 = vmatprep.mubr.bf16.mxu0 0
      %2763 = vmatmul.mubr.bf16.gmra.mxu0 %v1389
      %v2764 = vpop.f32.mrf.mxu0
      %v2765 = vadd.f32 0.0, %v2764
      %v2766 = vpop.f32.mrf.mxu0
      %v2767 = vpop.f32.mrf.mxu0
      %v2768 = vadd.f32 0.0, %v2767
      %v2769 = vpop.f32.mrf.mxu0
      %2770 = vmatprep.mubr.bf16.mxu0 0
      %2771 = vmatmul.mubr.bf16.gmra.mxu0 %v1392
      %v2772 = vpop.f32.mrf.mxu0
      %v2773 = vadd.f32 0.0, %v2772
      %v2774 = vpop.f32.mrf.mxu0
      %v2775 = vpop.f32.mrf.mxu0
      %v2776 = vadd.f32 0.0, %v2775
      %v2777 = vpop.f32.mrf.mxu0
      %2778 = vmatprep.mubr.bf16.mxu0 0
      %2779 = vmatmul.mubr.bf16.gmra.mxu0 %v1395
      %v2780 = vpop.f32.mrf.mxu0
      %v2781 = vadd.f32 0.0, %v2780
      %v2782 = vpop.f32.mrf.mxu0
      %v2783 = vpop.f32.mrf.mxu0
      %v2784 = vadd.f32 0.0, %v2783
      %v2785 = vpop.f32.mrf.mxu0
      %2786 = vmatprep.mubr.bf16.mxu0 0
      %2787 = vmatmul.mubr.bf16.gmra.mxu0 %v1398
      %v2788 = vpop.f32.mrf.mxu0
      %v2789 = vadd.f32 0.0, %v2788
      %v2790 = vpop.f32.mrf.mxu0
      %v2791 = vpop.f32.mrf.mxu0
      %v2792 = vadd.f32 0.0, %v2791
      %v2793 = vpop.f32.mrf.mxu0
      %2794 = vmatprep.mubr.bf16.mxu0 0
      %2795 = vmatmul.mubr.bf16.gmra.mxu0 %v1401
      %v2796 = vpop.f32.mrf.mxu0
      %v2797 = vadd.f32 0.0, %v2796
      %v2798 = vpop.f32.mrf.mxu0
      %v2799 = vpop.f32.mrf.mxu0
      %v2800 = vadd.f32 0.0, %v2799
      %v2801 = vpop.f32.mrf.mxu0
      %2802 = vmatprep.mubr.bf16.mxu0 0
      %2803 = vmatmul.mubr.bf16.gmra.mxu0 %v1404
      %v2804 = vpop.f32.mrf.mxu0
      %v2805 = vadd.f32 0.0, %v2804
      %v2806 = vpop.f32.mrf.mxu0
      %v2807 = vpop.f32.mrf.mxu0
      %v2808 = vadd.f32 0.0, %v2807
      %v2809 = vpop.f32.mrf.mxu0
      %2810 = vmatprep.mubr.bf16.mxu0 0
      %2811 = vmatmul.mubr.bf16.gmra.mxu0 %v1407
      %v2812 = vpop.f32.mrf.mxu0
      %v2813 = vadd.f32 0.0, %v2812
      %v2814 = vpop.f32.mrf.mxu0
      %v2815 = vpop.f32.mrf.mxu0
      %v2816 = vadd.f32 0.0, %v2815
      %v2817 = vpop.f32.mrf.mxu0
      %2818 = vmatprep.mubr.bf16.mxu0 0
      %2819 = vmatmul.mubr.bf16.gmra.mxu0 %v1410
      %v2820 = vpop.f32.mrf.mxu0
      %v2821 = vadd.f32 0.0, %v2820
      %v2822 = vpop.f32.mrf.mxu0
      %v2823 = vpop.f32.mrf.mxu0
      %v2824 = vadd.f32 0.0, %v2823
      %v2825 = vpop.f32.mrf.mxu0
      %2826 = vmatprep.mubr.bf16.mxu0 0
      %2827 = vmatmul.mubr.bf16.gmra.mxu0 %v1413
      %v2828 = vpop.f32.mrf.mxu0
      %v2829 = vadd.f32 0.0, %v2828
      %v2830 = vpop.f32.mrf.mxu0
      %v2831 = vpop.f32.mrf.mxu0
      %v2832 = vadd.f32 0.0, %v2831
      %v2833 = vpop.f32.mrf.mxu0
      %2834 = vmatprep.mubr.bf16.mxu0 0
      %2835 = vmatmul.mubr.bf16.gmra.mxu0 %v1416
      %v2836 = vpop.f32.mrf.mxu0
      %v2837 = vadd.f32 0.0, %v2836
      %v2838 = vpop.f32.mrf.mxu0
      %v2839 = vpop.f32.mrf.mxu0
      %v2840 = vadd.f32 0.0, %v2839
      %v2841 = vpop.f32.mrf.mxu0
      %2842 = vmatprep.mubr.bf16.mxu0 0
      %2843 = vmatmul.mubr.bf16.gmra.mxu0 %v1419
      %v2844 = vpop.f32.mrf.mxu0
      %v2845 = vadd.f32 0.0, %v2844
      %v2846 = vpop.f32.mrf.mxu0
      %v2847 = vpop.f32.mrf.mxu0
      %v2848 = vadd.f32 0.0, %v2847
      %v2849 = vpop.f32.mrf.mxu0
      %2850 = vmatprep.mubr.bf16.mxu0 0
      %2851 = vmatmul.mubr.bf16.gmra.mxu0 %v1422
      %v2852 = vpop.f32.mrf.mxu0
      %v2853 = vadd.f32 0.0, %v2852
      %v2854 = vpop.f32.mrf.mxu0
      %v2855 = vpop.f32.mrf.mxu0
      %v2856 = vadd.f32 0.0, %v2855
      %v2857 = vpop.f32.mrf.mxu0
      %2858 = vmatprep.mubr.bf16.mxu0 0
      %2859 = vmatmul.mubr.bf16.gmra.mxu0 %v1425
      %v2860 = vpop.f32.mrf.mxu0
      %v2861 = vadd.f32 0.0, %v2860
      %v2862 = vpop.f32.mrf.mxu0
      %v2863 = vpop.f32.mrf.mxu0
      %v2864 = vadd.f32 0.0, %v2863
      %v2865 = vpop.f32.mrf.mxu0
      %2866 = vmatprep.mubr.bf16.mxu0 0
      %2867 = vmatmul.mubr.bf16.gmra.mxu0 %v2071
      %v2868 = vpop.f32.mrf.mxu0
      %v2869 = vadd.f32 0.0, %v2868
      %v2870 = vpop.f32.mrf.mxu0
      %v2871 = vpop.f32.mrf.mxu0
      %v2872 = vadd.f32 0.0, %v2871
      %v2873 = vpop.f32.mrf.mxu0
      %2874 = vmatprep.mubr.bf16.mxu0 0
      %2875 = vmatmul.mubr.bf16.gmra.mxu0 %v2717
      %v2876 = vpop.f32.mrf.mxu0
      %v2877 = vadd.f32 0.0, %v2876
      %v2878 = vpop.f32.mrf.mxu0
      %v2879 = vpop.f32.mrf.mxu0
      %v2880 = vadd.f32 0.0, %v2879
      %v2881 = vpop.f32.mrf.mxu0
      %2882 = vdwg.mxu0
      %v2883 = vadd.f32 %v2671, %v2757
      %v2884 = vadd.f32 %v2672, %v2760
      %v2885 = vadd.f32 %v2673, %v2765
      %v2886 = vadd.f32 %v2674, %v2768
      %v2887 = vadd.f32 %v2675, %v2773
      %v2888 = vadd.f32 %v2676, %v2776
      %v2889 = vadd.f32 %v2677, %v2781
      %v2890 = vadd.f32 %v2678, %v2784
      %v2891 = vadd.f32 %v2679, %v2789
      %v2892 = vadd.f32 %v2680, %v2792
      %v2893 = vadd.f32 %v2681, %v2797
      %v2894 = vadd.f32 %v2682, %v2800
      %v2895 = vadd.f32 %v2683, %v2805
      %v2896 = vadd.f32 %v2684, %v2808
      %v2897 = vadd.f32 %v2685, %v2813
      %v2898 = vadd.f32 %v2686, %v2816
      %v2899 = vadd.f32 %v2687, %v2821
      %v2900 = vadd.f32 %v2688, %v2824
      %v2901 = vadd.f32 %v2689, %v2829
      %v2902 = vadd.f32 %v2690, %v2832
      %v2903 = vadd.f32 %v2691, %v2837
      %v2904 = vadd.f32 %v2692, %v2840
      %v2905 = vadd.f32 %v2693, %v2845
      %v2906 = vadd.f32 %v2694, %v2848
      %v2907 = vadd.f32 %v2695, %v2853
      %v2908 = vadd.f32 %v2696, %v2856
      %v2909 = vadd.f32 %v2697, %v2861
      %v2910 = vadd.f32 %v2698, %v2864
      %v2911 = vadd.f32 %v2699, %v2869
      %v2912 = vadd.f32 %v2700, %v2872
      %v2913 = vadd.f32 %v2701, %v2877
      %v2914 = vadd.f32 %v2702, %v2880
      %v2915 = vadd.f32 %v2883, %v2884
      %v2916 = vadd.f32 %v2915, %v2885
      %v2917 = vadd.f32 %v2916, %v2886
      %v2918 = vadd.f32 %v2917, %v2887
      %v2919 = vadd.f32 %v2918, %v2888
      %v2920 = vadd.f32 %v2919, %v2889
      %v2921 = vadd.f32 %v2920, %v2890
      %v2922 = vadd.f32 %v2921, %v2891
      %v2923 = vadd.f32 %v2922, %v2892
      %v2924 = vadd.f32 %v2923, %v2893
      %v2925 = vadd.f32 %v2924, %v2894
      %v2926 = vadd.f32 %v2925, %v2895
      %v2927 = vadd.f32 %v2926, %v2896
      %v2928 = vadd.f32 %v2927, %v2897
      %v2929 = vadd.f32 %v2928, %v2898
      %v2930 = vadd.f32 %v2929, %v2899
      %v2931 = vadd.f32 %v2930, %v2900
      %v2932 = vadd.f32 %v2931, %v2901
      %v2933 = vadd.f32 %v2932, %v2902
      %v2934 = vadd.f32 %v2933, %v2903
      %v2935 = vadd.f32 %v2934, %v2904
      %v2936 = vadd.f32 %v2935, %v2905
      %v2937 = vadd.f32 %v2936, %v2906
      %v2938 = vadd.f32 %v2937, %v2907
      %v2939 = vadd.f32 %v2938, %v2908
      %v2940 = vadd.f32 %v2939, %v2909
      %v2941 = vadd.f32 %v2940, %v2910
      %v2942 = vadd.f32 %v2941, %v2911
      %v2943 = vadd.f32 %v2942, %v2912
      %v2944 = vadd.f32 %v2943, %v2913
      %v2945 = vadd.f32 %v2944, %v2914
      %v2946 = vrot.slane %v2945, 4
      %v2947 = vadd.f32 %v2945, %v2946
      %v2948 = vrot.slane %v2947, 2
      %v2949 = vadd.f32 %v2947, %v2948
      %v2950 = vrot.slane %v2949, 1
      %v2951 = vadd.f32 %v2949, %v2950
      %v2952 = vmul.f32 %v2883, %v2883
      %v2953 = vmul.f32 %v2884, %v2884
      %v2954 = vmul.f32 %v2885, %v2885
      %v2955 = vmul.f32 %v2886, %v2886
      %v2956 = vmul.f32 %v2887, %v2887
      %v2957 = vmul.f32 %v2888, %v2888
      %v2958 = vmul.f32 %v2889, %v2889
      %v2959 = vmul.f32 %v2890, %v2890
      %v2960 = vmul.f32 %v2891, %v2891
      %v2961 = vmul.f32 %v2892, %v2892
      %v2962 = vmul.f32 %v2893, %v2893
      %v2963 = vmul.f32 %v2894, %v2894
      %v2964 = vmul.f32 %v2895, %v2895
      %v2965 = vmul.f32 %v2896, %v2896
      %v2966 = vmul.f32 %v2897, %v2897
      %v2967 = vmul.f32 %v2898, %v2898
      %v2968 = vmul.f32 %v2899, %v2899
      %v2969 = vmul.f32 %v2900, %v2900
      %v2970 = vmul.f32 %v2901, %v2901
      %v2971 = vmul.f32 %v2902, %v2902
      %v2972 = vmul.f32 %v2903, %v2903
      %v2973 = vmul.f32 %v2904, %v2904
      %v2974 = vmul.f32 %v2905, %v2905
      %v2975 = vmul.f32 %v2906, %v2906
      %v2976 = vmul.f32 %v2907, %v2907
      %v2977 = vmul.f32 %v2908, %v2908
      %v2978 = vmul.f32 %v2909, %v2909
      %v2979 = vmul.f32 %v2910, %v2910
      %v2980 = vmul.f32 %v2911, %v2911
      %v2981 = vmul.f32 %v2912, %v2912
      %v2982 = vmul.f32 %v2913, %v2913
      %v2983 = vmul.f32 %v2914, %v2914
      %v2984 = vadd.f32 %v2952, %v2953
      %v2985 = vadd.f32 %v2984, %v2954
      %v2986 = vadd.f32 %v2985, %v2955
      %v2987 = vadd.f32 %v2986, %v2956
      %v2988 = vadd.f32 %v2987, %v2957
      %v2989 = vadd.f32 %v2988, %v2958
      %v2990 = vadd.f32 %v2989, %v2959
      %v2991 = vadd.f32 %v2990, %v2960
      %v2992 = vadd.f32 %v2991, %v2961
      %v2993 = vadd.f32 %v2992, %v2962
      %v2994 = vadd.f32 %v2993, %v2963
      %v2995 = vadd.f32 %v2994, %v2964
      %v2996 = vadd.f32 %v2995, %v2965
      %v2997 = vadd.f32 %v2996, %v2966
      %v2998 = vadd.f32 %v2997, %v2967
      %v2999 = vadd.f32 %v2998, %v2968
      %v3000 = vadd.f32 %v2999, %v2969
      %v3001 = vadd.f32 %v3000, %v2970
      %v3002 = vadd.f32 %v3001, %v2971
      %v3003 = vadd.f32 %v3002, %v2972
      %v3004 = vadd.f32 %v3003, %v2973
      %v3005 = vadd.f32 %v3004, %v2974
      %v3006 = vadd.f32 %v3005, %v2975
      %v3007 = vadd.f32 %v3006, %v2976
      %v3008 = vadd.f32 %v3007, %v2977
      %v3009 = vadd.f32 %v3008, %v2978
      %v3010 = vadd.f32 %v3009, %v2979
      %v3011 = vadd.f32 %v3010, %v2980
      %v3012 = vadd.f32 %v3011, %v2981
      %v3013 = vadd.f32 %v3012, %v2982
      %v3014 = vadd.f32 %v3013, %v2983
      %v3015 = vrot.slane %v3014, 4
      %v3016 = vadd.f32 %v3014, %v3015
      %v3017 = vrot.slane %v3016, 2
      %v3018 = vadd.f32 %v3016, %v3017
      %v3019 = vrot.slane %v3018, 1
      %v3020 = vadd.f32 %v3018, %v3019
      %p3021 = scmp.eq.s32.totalorder %s20, 0
      // Predicated region
      $region29: #{conv_batch_norm_block.2} parent=27 // pred_check
        %p3022 = pneg %p3021
      $region30: #{conv_batch_norm_block.2} parent=27 // pred_check_branch
        %3024 = sbr.rel (%p3022) target = $region32
      $region31: #{conv_batch_norm_block.2} parent=27 // pred_region
        %3025 = vst [vmem:[%s194] sm:$0xff] 0.0
        %3026 = vst [vmem:[%s198] sm:$0xff] 0.0
      $region32: #{conv_batch_norm_block.2} parent=27 // pred_fallthru
        _
      %v3027 = vld [vmem:[%s194] sm:$0xff]
      %v3028 = vadd.f32 %v3027, %v2951
      %3029 = vst [vmem:[%s194] sm:$0xff] %v3028
      %v3030 = vld [vmem:[%s198] sm:$0xff]
      %v3031 = vadd.f32 %v3030, %v3020
      %3032 = vst [vmem:[%s198] sm:$0xff] %v3031
      %p3033 = scmp.lt.s32.totalorder %s19, 1
      %s3034 = scalar_select %p3033, %s19, 1
      %s3035 = smul.addr %s3034, 8
      %s3036 = scalar_lea.vmem %s2, %s3035
      %p3037 = scmp.lt.s32.totalorder %s19, 1
      %s3038 = scalar_select %p3037, %s19, 1
      %s3039 = smul.addr %s3038, 8
      %s3040 = scalar_lea.vmem %s3, %s3039
      // Predicated region
      $region33: #{conv_batch_norm_block.2} parent=27 // pred_check
        %p3041 = pneg %p94
      $region34: #{conv_batch_norm_block.2} parent=27 // pred_check_branch
        %3043 = sbr.rel (%p3041) target = $region36
      $region35: #{conv_batch_norm_block.2} parent=27 // pred_region
        _
      $region36: #{conv_batch_norm_block.2} parent=27 // pred_fallthru
        _
      // Predicated region
      $region37: #{conv_batch_norm_block.2} parent=27 // pred_check
        %p3044 = pneg %p120
      $region38: #{conv_batch_norm_block.2} parent=27 // pred_check_branch
        %3046 = sbr.rel (%p3044) target = $region40
      $region39: #{conv_batch_norm_block.2} parent=27 // pred_region
        _
      $region40: #{conv_batch_norm_block.2} parent=27 // pred_fallthru
        _
    $region28: #{conv_batch_norm_block.2} parent=5 // pred_fallthru
      _
    %p3047 = scmp.le.s32.totalorder 2, %s10
    // Predicated region
    $region41: #{conv_batch_norm_block.2} parent=5 // pred_check
      %p3048 = pneg %p3047
    $region42: #{conv_batch_norm_block.2} parent=5 // pred_check_branch
      %3050 = sbr.rel (%p3048) target = $region44
    $region43: #{conv_batch_norm_block.2} parent=5 // pred_region
      %s3051 = ssub.s32 %s10, 2
      // Predicated region
      $region45: #{conv_batch_norm_block.2} parent=43 // pred_check
        %p3052 = pneg %p100
      $region46: #{conv_batch_norm_block.2} parent=43 // pred_check_branch
        %3054 = sbr.rel (%p3052) target = $region48
      $region47: #{conv_batch_norm_block.2} parent=43 // pred_region
        %p3055 = scmp.lt.s32.totalorder %s21, 1
        %s3056 = scalar_select %p3055, %s21, 1
        %s3057 = smul.addr %s3056, 8
        %s3058 = scalar_lea.vmem %s2, %s3057
      $region48: #{conv_batch_norm_block.2} parent=43 // pred_fallthru
        _
      // Predicated region
      $region49: #{conv_batch_norm_block.2} parent=43 // pred_check
        %p3059 = pneg %p126
      $region50: #{conv_batch_norm_block.2} parent=43 // pred_check_branch
        %3061 = sbr.rel (%p3059) target = $region52
      $region51: #{conv_batch_norm_block.2} parent=43 // pred_region
        %p3062 = scmp.lt.s32.totalorder %s21, 1
        %s3063 = scalar_select %p3062, %s21, 1
        %s3064 = smul.addr %s3063, 8
        %s3065 = scalar_lea.vmem %s3, %s3064
      $region52: #{conv_batch_norm_block.2} parent=43 // pred_fallthru
        _
    $region44: #{conv_batch_norm_block.2} parent=5 // pred_fallthru
      _
  $region6: #{conv_batch_norm_block.2} parent=0 // loop_footer
    %s14 = sadd.s32 1, %s10
  $region7: #{conv_batch_norm_block.2} parent=0 // loop_footer_branch
    %9 = sbr.rel target = $region3
  $region8: #{conv_batch_norm_block.2} parent=0 // loop_exit
    _

</llo_original>
